<compile_context>
chip_gen: v7x
topology: tpu7x:2x2x1
jax: 0.10.0
libtpu: 0.0.40
codegen_flags: <defaults>
</compile_context>

<pallas_src>
import numpy as np
import jax
import jax.numpy as jnp
from jax.experimental import pallas as pl
from jax.experimental.pallas import tpu as pltpu


N_STAGE_PARAMS = 12  # entries per stage parameter list


def _sigmoid(z):
    return 1.0 / (1.0 + jnp.exp(-z))


def _dot(a, b):
    return jnp.dot(a, b, preferred_element_type=jnp.float32)


def _flat_shift(x, s):
    """out[p] = x[p + s] with zeros out of bounds (shift along the row axis)."""
    n, c = x.shape
    if s == 0:
        return x
    if abs(s) >= n:
        return jnp.zeros_like(x)
    if s > 0:
        pad = jnp.zeros((s, c), x.dtype)
        return jnp.concatenate([x[s:, :], pad], axis=0)
    pad = jnp.zeros((-s, c), x.dtype)
    return jnp.concatenate([pad, x[: n + s, :]], axis=0)


def _unpack_bias(pack, lengths):
    """pack: (n_rows, width); returns list of (1, len) row prefixes."""
    return [pack[i:i + 1, :n] for i, n in enumerate(lengths)]


def _stage_math(x_in, x, tap_mask, params, *, W, dia, approx_recip):
    """One Attention_2D_unique stage for a single batch element.

    x_in: (F, HW, C) flattened inputs, x: (HW, C) stage input,
    tap_mask: (HW, 9) validity mask for the 9 dilated-conv taps.
    Pure jnp ops; used inside the Pallas kernel and (with approx_recip=False)
    as the pure-JAX reference.
    """
    (ca_w1t, ca_w2t, sa_w1t, sa_cwt, sa_lw, fc_wt, fc2_w, fca_wt, fsa_ws,
     fc2_b_col, fsa_b_col, bias_pack) = params

    F = x_in.shape[0]
    HW, C = x.shape
    crca = ca_w1t.shape[1]
    crsa = sa_w1t.shape[1]
    d = fc_wt.shape[1]

    (ca_b1, ca_b2, sa_b1, sa_cb, sa_lb, fc_b, fca_b) = _unpack_bias(
        bias_pack, [crca, C, crsa, crsa, 1, d, F * C])

    # ---- BAM channel attention (BN folded into the linears) ----
    pooled = jnp.mean(x, axis=0, keepdims=True)                    # (1, C) avg pool
    h = jnp.maximum(_dot(pooled, ca_w1t) + ca_b1, 0.0)             # (1, crca)
    ca_out = _sigmoid(_dot(h, ca_w2t) + ca_b2)                     # (1, C) caller's sigmoid
    ca_p = _sigmoid(_dot(ca_out, fc_wt) + fc_b)                    # (1, d)

    # ---- BAM spatial attention (BN folded) ----
    xm = jnp.maximum(_dot(x, sa_w1t) + sa_b1, 0.0)                 # (HW, crsa) 1x1 conv
    taps = []
    for ki in range(3):                                            # dilated 3x3 conv as
        for kj in range(3):                                        # shifted+masked reads
            s = (ki - 1) * dia * W + (kj - 1) * dia
            t = ki * 3 + kj
            taps.append(_flat_shift(xm, s) * tap_mask[:, t:t + 1])
    stacked = jnp.concatenate(taps, axis=-1)                       # (HW, 9*crsa)
    conv = jnp.maximum(_dot(stacked, sa_cwt) + sa_cb, 0.0)         # (HW, crsa)
    sa_col = _sigmoid(_dot(conv, sa_lw) + sa_lb)                   # (HW, 1) caller's sigmoid
    sa_fc = _sigmoid(_dot(fc2_w, sa_col) + fc2_b_col)              # (dsa, 1) column form

    # ---- per-fusion weights (F matmuls fused), softmax over fusion, ADD_type=1 ----
    wca = _sigmoid(_dot(ca_p, fca_wt) + fca_b)                     # (1, F*C)
    wsa = _sigmoid(_dot(fsa_ws, sa_fc) + fsa_b_col)                # (F*HW, 1)
    logits = []
    for f in range(F):
        logits.append(wca[:, f * C:(f + 1) * C] + wsa[f * HW:(f + 1) * HW, :])  # (HW, C)
    lg = jnp.stack(logits, axis=0)                                 # (F, HW, C)
    m = jnp.max(lg, axis=0, keepdims=True)
    e = jnp.exp(lg - m)
    denom = jnp.sum(e, axis=0, keepdims=True)
    if approx_recip:
        inv = pl.reciprocal(denom, approx=True)
    else:
        inv = 1.0 / denom
    return jnp.sum(x_in * (1.0 + e * inv), axis=0)                 # (HW, C)


def make_fused_kernel(F, H, W, dia, n_params):
    def kernel(*refs):
        x_in_ref = refs[0]
        tap_ref = refs[1]
        pa = [r[...] for r in refs[2:2 + n_params]]
        pb = [r[...] for r in refs[2 + n_params:2 + 2 * n_params]]
        out_ref = refs[-1]

        x_in = x_in_ref[...]                      # (F, HW, C) for this batch element
        tap = tap_ref[...]                        # (HW, 9)
        x0 = jnp.sum(x_in, axis=0)                # inner stage's x = x_input.sum(0)
        x1 = _stage_math(x_in, x0, tap, pa, W=W, dia=dia, approx_recip=True)
        x2 = _stage_math(x_in, x1, tap, pb, W=W, dia=dia, approx_recip=True)
        out_ref[...] = x2
    return kernel


def _const_spec(arr):
    nd = arr.ndim
    return pl.BlockSpec(arr.shape, lambda b, _nd=nd: (0,) * _nd)


def iattention_forward(x_input, tap_mask, paramsA, paramsB, dia):
    F, B, C, H, W = x_input.shape
    HW = H * W
    xb = jnp.transpose(x_input, (1, 0, 3, 4, 2)).reshape(B, F, HW, C)

    n_params = len(paramsA)
    kernel = make_fused_kernel(F, H, W, dia, n_params)

    in_specs = [pl.BlockSpec((None, F, HW, C), lambda b: (b, 0, 0, 0)),
                _const_spec(tap_mask)]
    in_specs += [_const_spec(p) for p in paramsA]
    in_specs += [_const_spec(p) for p in paramsB]

    out = pl.pallas_call(
        kernel,
        grid=(B,),
        out_shape=jax.ShapeDtypeStruct((B, HW, C), jnp.float32),
        in_specs=in_specs,
        out_specs=pl.BlockSpec((None, HW, C), lambda b: (b, 0, 0)),
        compiler_params=pltpu.CompilerParams(dimension_semantics=("parallel",)),
    )(xb, tap_mask, *paramsA, *paramsB)

    return jnp.transpose(out.reshape(B, H, W, C), (0, 3, 1, 2))    # back to NCHW


def reference_forward(x_input, tap_mask, paramsA, paramsB, dia):
    F, B, C, H, W = x_input.shape
    HW = H * W
    xb = jnp.transpose(x_input, (1, 0, 3, 4, 2)).reshape(B, F, HW, C)

    def one(x_in):
        x0 = jnp.sum(x_in, axis=0)
        x1 = _stage_math(x_in, x0, tap_mask, paramsA, W=W, dia=dia, approx_recip=False)
        x2 = _stage_math(x_in, x1, tap_mask, paramsB, W=W, dia=dia, approx_recip=False)
        return x2

    out = jax.vmap(one)(xb)
    return jnp.transpose(out.reshape(B, H, W, C), (0, 3, 1, 2))


def build_tap_mask(H, W, dia):
    """(HW, 9) validity mask for the 9 taps of a 3x3 conv with dilation=padding=dia."""
    HW = H * W
    mask = np.zeros((HW, 9), np.float32)
    for i in range(H):
        for j in range(W):
            for ki in range(3):
                for kj in range(3):
                    ii = i + (ki - 1) * dia
                    jj = j + (kj - 1) * dia
                    if 0 <= ii < H and 0 <= jj < W:
                        mask[i * W + j, ki * 3 + kj] = 1.0
    return jnp.asarray(mask)


def init_stage_params(key, C, H, W, F, red_ca, red_sa, d, dsa):
    HW = H * W
    crca = C // red_ca
    crsa = C // red_sa
    ks = iter(jax.random.split(key, 32))

    def rw(shape, scale=0.1):
        return jax.random.normal(next(ks), shape, jnp.float32) * scale

    def rb(shape, scale=0.05):
        return jax.random.normal(next(ks), shape, jnp.float32) * scale

    s_bn = np.float32(1.0 / np.sqrt(1.0 + 1e-5))   # eval-mode BN (default running stats) fold

    ca_w1, ca_b1 = rw((crca, C)), rb((crca,))
    ca_w2, ca_b2 = rw((C, crca)), rb((C,))
    sa_w1, sa_b1 = rw((crsa, C)), rb((crsa,))      # 1x1 conv
    convw, convb = rw((crsa, crsa, 3, 3)), rb((crsa,))
    lastw, lastb = rw((1, crsa)), rb((1,))         # final 1x1 conv
    fc_w, fc_b = rw((d, C)), rb((d,))
    fc2_w, fc2_b = rw((dsa, HW)), rb((dsa,))
    fca_w, fca_b = rw((F, C, d)), rb((F, C))
    fsa_w, fsa_b = rw((F, HW, dsa)), rb((F, HW))

    # fold eval-mode BN into the preceding linear / conv
    ca_w1t = (ca_w1 * s_bn).T                                        # (C, crca)
    ca_b1f = ca_b1 * s_bn
    ca_w2t = ca_w2.T                                                 # (crca, C)
    sa_w1t = (sa_w1 * s_bn).T                                        # (C, crsa)
    sa_b1f = sa_b1 * s_bn
    # taps stacked along rows, order t = ki*3 + kj, layout (in, out), BN folded
    sa_cwt = jnp.concatenate(
        [(convw[:, :, ki, kj] * s_bn).T for ki in range(3) for kj in range(3)], axis=0)  # (9*crsa, crsa)
    sa_cbf = convb * s_bn
    sa_lw = lastw.T                                                  # (crsa, 1)
    fc_wt = fc_w.T                                                   # (C, d)
    fca_wt = jnp.concatenate([fca_w[f].T for f in range(F)], axis=1)  # (d, F*C)
    fsa_ws = fsa_w.reshape(F * HW, dsa)                              # (F*HW, dsa)
    fc2_b_col = fc2_b.reshape(dsa, 1)
    fsa_b_col = fsa_b.reshape(F * HW, 1)

    # pack the row-oriented biases into one array (one row per bias, prefix used)
    bias_rows = [ca_b1f, ca_b2, sa_b1f, sa_cbf, lastb, fc_b, fca_b.reshape(-1)]
    width = max(int(r.shape[0]) for r in bias_rows)
    pack = jnp.zeros((len(bias_rows), width), jnp.float32)
    for i, r in enumerate(bias_rows):
        pack = pack.at[i, : r.shape[0]].set(r)

    return [ca_w1t, ca_w2t, sa_w1t, sa_cwt, sa_lw, fc_wt, fc2_w, fca_wt, fsa_ws,
            fc2_b_col, fsa_b_col, pack]


if __name__ == "__main__":
    # small shapes consistent with the module: channel=32, img_size=[4,4], fusion_num=4
    F, B, C, H, W = 4, 2, 32, 4, 4
    red_ca = red_sa = 4
    L, red_ca_att, red_sa_att = 32, 4, 4
    d = max(L, C // red_ca_att)              # 32
    dsa = max(H, H * W // red_sa_att)        # 4
    dia = 2

    key = jax.random.PRNGKey(0)
    k_in, kA, kB = jax.random.split(key, 3)
    x_input = jax.random.normal(k_in, (F, B, C, H, W), jnp.float32)

    tap_mask = build_tap_mask(H, W, dia)
    paramsA = init_stage_params(kA, C, H, W, F, red_ca, red_sa, d, dsa)  # inner Attention params
    paramsB = init_stage_params(kB, C, H, W, F, red_ca, red_sa, d, dsa)  # outer iAttention params

    out = iattention_forward(x_input, tap_mask, paramsA, paramsB, dia)
    out = jax.block_until_ready(out)

    ref = reference_forward(x_input, tap_mask, paramsA, paramsB, dia)
    ref = jax.block_until_ready(ref)

    assert out.shape == (B, C, H, W)
    assert np.all(np.isfinite(np.asarray(out)))
    np.testing.assert_allclose(np.asarray(out), np.asarray(ref), rtol=2e-3, atol=2e-3)
    print("KERNEL_OK")
</pallas_src>

<mosaic_0001>
module attributes {stable_mosaic.version = 11 : i64} {
  func.func @kernel(%arg0: i32, %arg1: memref<1x4x16x32xf32, #tpu.memory_space<vmem>>, %arg2: memref<16x9xf32, #tpu.memory_space<vmem>>, %arg3: memref<32x8xf32, #tpu.memory_space<vmem>>, %arg4: memref<8x32xf32, #tpu.memory_space<vmem>>, %arg5: memref<32x8xf32, #tpu.memory_space<vmem>>, %arg6: memref<72x8xf32, #tpu.memory_space<vmem>>, %arg7: memref<8x1xf32, #tpu.memory_space<vmem>>, %arg8: memref<32x32xf32, #tpu.memory_space<vmem>>, %arg9: memref<4x16xf32, #tpu.memory_space<vmem>>, %arg10: memref<32x128xf32, #tpu.memory_space<vmem>>, %arg11: memref<64x4xf32, #tpu.memory_space<vmem>>, %arg12: memref<4x1xf32, #tpu.memory_space<vmem>>, %arg13: memref<64x1xf32, #tpu.memory_space<vmem>>, %arg14: memref<7x128xf32, #tpu.memory_space<vmem>>, %arg15: memref<32x8xf32, #tpu.memory_space<vmem>>, %arg16: memref<8x32xf32, #tpu.memory_space<vmem>>, %arg17: memref<32x8xf32, #tpu.memory_space<vmem>>, %arg18: memref<72x8xf32, #tpu.memory_space<vmem>>, %arg19: memref<8x1xf32, #tpu.memory_space<vmem>>, %arg20: memref<32x32xf32, #tpu.memory_space<vmem>>, %arg21: memref<4x16xf32, #tpu.memory_space<vmem>>, %arg22: memref<32x128xf32, #tpu.memory_space<vmem>>, %arg23: memref<64x4xf32, #tpu.memory_space<vmem>>, %arg24: memref<4x1xf32, #tpu.memory_space<vmem>>, %arg25: memref<64x1xf32, #tpu.memory_space<vmem>>, %arg26: memref<7x128xf32, #tpu.memory_space<vmem>>, %arg27: memref<1x16x32xf32, #tpu.memory_space<vmem>>) attributes {dimension_semantics = [#tpu.dimension_semantics<parallel>], iteration_bounds = array<i64: 2>, scalar_prefetch = 0 : i64, scratch_operands = 0 : i64, tpu.core_type = #tpu.core_type<tc>, window_params = [{transform_indices = @transform_0, window_bounds = array<i64: 1, 4, 16, 32>}, {pipeline_mode = #tpu.pipeline_mode<synchronous>, transform_indices = @transform_1, window_bounds = array<i64: 16, 9>}, {pipeline_mode = #tpu.pipeline_mode<synchronous>, transform_indices = @transform_2, window_bounds = array<i64: 32, 8>}, {pipeline_mode = #tpu.pipeline_mode<synchronous>, transform_indices = @transform_3, window_bounds = array<i64: 8, 32>}, {pipeline_mode = #tpu.pipeline_mode<synchronous>, transform_indices = @transform_4, window_bounds = array<i64: 32, 8>}, {pipeline_mode = #tpu.pipeline_mode<synchronous>, transform_indices = @transform_5, window_bounds = array<i64: 72, 8>}, {pipeline_mode = #tpu.pipeline_mode<synchronous>, transform_indices = @transform_6, window_bounds = array<i64: 8, 1>}, {pipeline_mode = #tpu.pipeline_mode<synchronous>, transform_indices = @transform_7, window_bounds = array<i64: 32, 32>}, {pipeline_mode = #tpu.pipeline_mode<synchronous>, transform_indices = @transform_8, window_bounds = array<i64: 4, 16>}, {pipeline_mode = #tpu.pipeline_mode<synchronous>, transform_indices = @transform_9, window_bounds = array<i64: 32, 128>}, {pipeline_mode = #tpu.pipeline_mode<synchronous>, transform_indices = @transform_10, window_bounds = array<i64: 64, 4>}, {pipeline_mode = #tpu.pipeline_mode<synchronous>, transform_indices = @transform_11, window_bounds = array<i64: 4, 1>}, {pipeline_mode = #tpu.pipeline_mode<synchronous>, transform_indices = @transform_12, window_bounds = array<i64: 64, 1>}, {pipeline_mode = #tpu.pipeline_mode<synchronous>, transform_indices = @transform_13, window_bounds = array<i64: 7, 128>}, {pipeline_mode = #tpu.pipeline_mode<synchronous>, transform_indices = @transform_14, window_bounds = array<i64: 32, 8>}, {pipeline_mode = #tpu.pipeline_mode<synchronous>, transform_indices = @transform_15, window_bounds = array<i64: 8, 32>}, {pipeline_mode = #tpu.pipeline_mode<synchronous>, transform_indices = @transform_16, window_bounds = array<i64: 32, 8>}, {pipeline_mode = #tpu.pipeline_mode<synchronous>, transform_indices = @transform_17, window_bounds = array<i64: 72, 8>}, {pipeline_mode = #tpu.pipeline_mode<synchronous>, transform_indices = @transform_18, window_bounds = array<i64: 8, 1>}, {pipeline_mode = #tpu.pipeline_mode<synchronous>, transform_indices = @transform_19, window_bounds = array<i64: 32, 32>}, {pipeline_mode = #tpu.pipeline_mode<synchronous>, transform_indices = @transform_20, window_bounds = array<i64: 4, 16>}, {pipeline_mode = #tpu.pipeline_mode<synchronous>, transform_indices = @transform_21, window_bounds = array<i64: 32, 128>}, {pipeline_mode = #tpu.pipeline_mode<synchronous>, transform_indices = @transform_22, window_bounds = array<i64: 64, 4>}, {pipeline_mode = #tpu.pipeline_mode<synchronous>, transform_indices = @transform_23, window_bounds = array<i64: 4, 1>}, {pipeline_mode = #tpu.pipeline_mode<synchronous>, transform_indices = @transform_24, window_bounds = array<i64: 64, 1>}, {pipeline_mode = #tpu.pipeline_mode<synchronous>, transform_indices = @transform_25, window_bounds = array<i64: 7, 128>}, {transform_indices = @transform_26, window_bounds = array<i64: 1, 16, 32>}]} {
    %c0 = arith.constant 0 : index
    %c0_0 = arith.constant 0 : index
    %0 = vector.load %arg3[%c0, %c0_0] : memref<32x8xf32, #tpu.memory_space<vmem>>, vector<32x8xf32>
    %c0_1 = arith.constant 0 : index
    %c0_2 = arith.constant 0 : index
    %1 = vector.load %arg4[%c0_1, %c0_2] : memref<8x32xf32, #tpu.memory_space<vmem>>, vector<8x32xf32>
    %c0_3 = arith.constant 0 : index
    %c0_4 = arith.constant 0 : index
    %2 = vector.load %arg5[%c0_3, %c0_4] : memref<32x8xf32, #tpu.memory_space<vmem>>, vector<32x8xf32>
    %c0_5 = arith.constant 0 : index
    %c0_6 = arith.constant 0 : index
    %3 = vector.load %arg6[%c0_5, %c0_6] : memref<72x8xf32, #tpu.memory_space<vmem>>, vector<72x8xf32>
    %c0_7 = arith.constant 0 : index
    %c0_8 = arith.constant 0 : index
    %4 = vector.load %arg7[%c0_7, %c0_8] : memref<8x1xf32, #tpu.memory_space<vmem>>, vector<8x1xf32>
    %c0_9 = arith.constant 0 : index
    %c0_10 = arith.constant 0 : index
    %5 = vector.load %arg8[%c0_9, %c0_10] : memref<32x32xf32, #tpu.memory_space<vmem>>, vector<32x32xf32>
    %c0_11 = arith.constant 0 : index
    %c0_12 = arith.constant 0 : index
    %6 = vector.load %arg9[%c0_11, %c0_12] : memref<4x16xf32, #tpu.memory_space<vmem>>, vector<4x16xf32>
    %c0_13 = arith.constant 0 : index
    %c0_14 = arith.constant 0 : index
    %7 = vector.load %arg10[%c0_13, %c0_14] : memref<32x128xf32, #tpu.memory_space<vmem>>, vector<32x128xf32>
    %c0_15 = arith.constant 0 : index
    %c0_16 = arith.constant 0 : index
    %8 = vector.load %arg11[%c0_15, %c0_16] : memref<64x4xf32, #tpu.memory_space<vmem>>, vector<64x4xf32>
    %c0_17 = arith.constant 0 : index
    %c0_18 = arith.constant 0 : index
    %9 = vector.load %arg12[%c0_17, %c0_18] : memref<4x1xf32, #tpu.memory_space<vmem>>, vector<4x1xf32>
    %c0_19 = arith.constant 0 : index
    %c0_20 = arith.constant 0 : index
    %10 = vector.load %arg13[%c0_19, %c0_20] : memref<64x1xf32, #tpu.memory_space<vmem>>, vector<64x1xf32>
    %c0_21 = arith.constant 0 : index
    %c0_22 = arith.constant 0 : index
    %11 = vector.load %arg14[%c0_21, %c0_22] : memref<7x128xf32, #tpu.memory_space<vmem>>, vector<7x128xf32>
    %c0_23 = arith.constant 0 : index
    %c0_24 = arith.constant 0 : index
    %12 = vector.load %arg15[%c0_23, %c0_24] : memref<32x8xf32, #tpu.memory_space<vmem>>, vector<32x8xf32>
    %c0_25 = arith.constant 0 : index
    %c0_26 = arith.constant 0 : index
    %13 = vector.load %arg16[%c0_25, %c0_26] : memref<8x32xf32, #tpu.memory_space<vmem>>, vector<8x32xf32>
    %c0_27 = arith.constant 0 : index
    %c0_28 = arith.constant 0 : index
    %14 = vector.load %arg17[%c0_27, %c0_28] : memref<32x8xf32, #tpu.memory_space<vmem>>, vector<32x8xf32>
    %c0_29 = arith.constant 0 : index
    %c0_30 = arith.constant 0 : index
    %15 = vector.load %arg18[%c0_29, %c0_30] : memref<72x8xf32, #tpu.memory_space<vmem>>, vector<72x8xf32>
    %c0_31 = arith.constant 0 : index
    %c0_32 = arith.constant 0 : index
    %16 = vector.load %arg19[%c0_31, %c0_32] : memref<8x1xf32, #tpu.memory_space<vmem>>, vector<8x1xf32>
    %c0_33 = arith.constant 0 : index
    %c0_34 = arith.constant 0 : index
    %17 = vector.load %arg20[%c0_33, %c0_34] : memref<32x32xf32, #tpu.memory_space<vmem>>, vector<32x32xf32>
    %c0_35 = arith.constant 0 : index
    %c0_36 = arith.constant 0 : index
    %18 = vector.load %arg21[%c0_35, %c0_36] : memref<4x16xf32, #tpu.memory_space<vmem>>, vector<4x16xf32>
    %c0_37 = arith.constant 0 : index
    %c0_38 = arith.constant 0 : index
    %19 = vector.load %arg22[%c0_37, %c0_38] : memref<32x128xf32, #tpu.memory_space<vmem>>, vector<32x128xf32>
    %c0_39 = arith.constant 0 : index
    %c0_40 = arith.constant 0 : index
    %20 = vector.load %arg23[%c0_39, %c0_40] : memref<64x4xf32, #tpu.memory_space<vmem>>, vector<64x4xf32>
    %c0_41 = arith.constant 0 : index
    %c0_42 = arith.constant 0 : index
    %21 = vector.load %arg24[%c0_41, %c0_42] : memref<4x1xf32, #tpu.memory_space<vmem>>, vector<4x1xf32>
    %c0_43 = arith.constant 0 : index
    %c0_44 = arith.constant 0 : index
    %22 = vector.load %arg25[%c0_43, %c0_44] : memref<64x1xf32, #tpu.memory_space<vmem>>, vector<64x1xf32>
    %c0_45 = arith.constant 0 : index
    %c0_46 = arith.constant 0 : index
    %23 = vector.load %arg26[%c0_45, %c0_46] : memref<7x128xf32, #tpu.memory_space<vmem>>, vector<7x128xf32>
    %c0_47 = arith.constant 0 : index
    %c0_48 = arith.constant 0 : index
    %c0_49 = arith.constant 0 : index
    %c0_50 = arith.constant 0 : index
    %24 = vector.load %arg1[%c0_47, %c0_48, %c0_49, %c0_50] : memref<1x4x16x32xf32, #tpu.memory_space<vmem>>, vector<1x4x16x32xf32>
    %25 = vector.shape_cast %24 : vector<1x4x16x32xf32> to vector<4x16x32xf32>
    %c0_51 = arith.constant 0 : index
    %c0_52 = arith.constant 0 : index
    %26 = vector.load %arg2[%c0_51, %c0_52] : memref<16x9xf32, #tpu.memory_space<vmem>>, vector<16x9xf32>
    %cst = arith.constant dense<0.000000e+00> : vector<16x32xf32>
    %27 = vector.multi_reduction <add>, %25, %cst [0] : vector<4x16x32xf32> to vector<16x32xf32>
    %28 = vector.extract_strided_slice %11 {offsets = [0, 0], sizes = [1, 8], strides = [1, 1]} : vector<7x128xf32> to vector<1x8xf32>
    %29 = vector.extract_strided_slice %11 {offsets = [1, 0], sizes = [1, 32], strides = [1, 1]} : vector<7x128xf32> to vector<1x32xf32>
    %30 = vector.extract_strided_slice %11 {offsets = [2, 0], sizes = [1, 8], strides = [1, 1]} : vector<7x128xf32> to vector<1x8xf32>
    %31 = vector.extract_strided_slice %11 {offsets = [3, 0], sizes = [1, 8], strides = [1, 1]} : vector<7x128xf32> to vector<1x8xf32>
    %32 = vector.extract_strided_slice %11 {offsets = [4, 0], sizes = [1, 1], strides = [1, 1]} : vector<7x128xf32> to vector<1x1xf32>
    %33 = vector.extract_strided_slice %11 {offsets = [5, 0], sizes = [1, 32], strides = [1, 1]} : vector<7x128xf32> to vector<1x32xf32>
    %34 = vector.extract_strided_slice %11 {offsets = [6, 0], sizes = [1, 128], strides = [1, 1]} : vector<7x128xf32> to vector<1x128xf32>
    %cst_53 = arith.constant dense<0.000000e+00> : vector<32xf32>
    %35 = vector.multi_reduction <add>, %27, %cst_53 [0] : vector<16x32xf32> to vector<32xf32>
    %36 = vector.shape_cast %35 : vector<32xf32> to vector<1x32xf32>
    %cst_54 = arith.constant 1.600000e+01 : f32
    %37 = vector.broadcast %cst_54 : f32 to vector<1x32xf32>
    %38 = arith.divf %36, %37 : vector<1x32xf32>
    %cst_55 = arith.constant dense<0.000000e+00> : vector<1x8xf32>
    %39 = tpu.matmul %38, %0, %cst_55 {dimension_numbers = #tpu.dot_dimension_numbers<[1], [0], [0], [1], [0, 0, 1, 1], [], []>} : vector<1x32xf32>, vector<32x8xf32>, vector<1x8xf32> -> vector<1x8xf32>
    %40 = arith.addf %39, %28 : vector<1x8xf32>
    %cst_56 = arith.constant 0.000000e+00 : f32
    %41 = vector.broadcast %cst_56 : f32 to vector<1x8xf32>
    %42 = arith.maximumf %40, %41 : vector<1x8xf32>
    %cst_57 = arith.constant dense<0.000000e+00> : vector<1x32xf32>
    %43 = tpu.matmul %42, %1, %cst_57 {dimension_numbers = #tpu.dot_dimension_numbers<[1], [0], [0], [1], [0, 0, 1, 1], [], []>} : vector<1x8xf32>, vector<8x32xf32>, vector<1x32xf32> -> vector<1x32xf32>
    %44 = arith.addf %43, %29 : vector<1x32xf32>
    %cst_58 = arith.constant 0.000000e+00 : f32
    %45 = vector.broadcast %cst_58 : f32 to vector<1x32xf32>
    %46 = arith.subf %45, %44 : vector<1x32xf32>
    %47 = math.exp %46 : vector<1x32xf32>
    %cst_59 = arith.constant 1.000000e+00 : f32
    %48 = vector.broadcast %cst_59 : f32 to vector<1x32xf32>
    %49 = arith.addf %48, %47 : vector<1x32xf32>
    %cst_60 = arith.constant 1.000000e+00 : f32
    %50 = vector.broadcast %cst_60 : f32 to vector<1x32xf32>
    %51 = arith.divf %50, %49 : vector<1x32xf32>
    %cst_61 = arith.constant dense<0.000000e+00> : vector<1x32xf32>
    %52 = tpu.matmul %51, %5, %cst_61 {dimension_numbers = #tpu.dot_dimension_numbers<[1], [0], [0], [1], [0, 0, 1, 1], [], []>} : vector<1x32xf32>, vector<32x32xf32>, vector<1x32xf32> -> vector<1x32xf32>
    %53 = arith.addf %52, %33 : vector<1x32xf32>
    %cst_62 = arith.constant 0.000000e+00 : f32
    %54 = vector.broadcast %cst_62 : f32 to vector<1x32xf32>
    %55 = arith.subf %54, %53 : vector<1x32xf32>
    %56 = math.exp %55 : vector<1x32xf32>
    %cst_63 = arith.constant 1.000000e+00 : f32
    %57 = vector.broadcast %cst_63 : f32 to vector<1x32xf32>
    %58 = arith.addf %57, %56 : vector<1x32xf32>
    %cst_64 = arith.constant 1.000000e+00 : f32
    %59 = vector.broadcast %cst_64 : f32 to vector<1x32xf32>
    %60 = arith.divf %59, %58 : vector<1x32xf32>
    %cst_65 = arith.constant dense<0.000000e+00> : vector<16x8xf32>
    %61 = tpu.matmul %27, %2, %cst_65 {dimension_numbers = #tpu.dot_dimension_numbers<[1], [0], [0], [1], [0, 0, 1, 1], [], []>} : vector<16x32xf32>, vector<32x8xf32>, vector<16x8xf32> -> vector<16x8xf32>
    %62 = vector.broadcast %30 : vector<1x8xf32> to vector<16x8xf32>
    %63 = arith.addf %61, %62 : vector<16x8xf32>
    %cst_66 = arith.constant 0.000000e+00 : f32
    %64 = vector.broadcast %cst_66 : f32 to vector<16x8xf32>
    %65 = arith.maximumf %63, %64 : vector<16x8xf32>
    %cst_67 = arith.constant 0.000000e+00 : f32
    %66 = vector.broadcast %cst_67 : f32 to vector<10x8xf32>
    %67 = vector.extract_strided_slice %65 {offsets = [0, 0], sizes = [6, 8], strides = [1, 1]} : vector<16x8xf32> to vector<6x8xf32>
    %68 = tpu.concatenate %66, %67 in 0 : vector<10x8xf32>, vector<6x8xf32> -> vector<16x8xf32>
    %69 = vector.extract_strided_slice %26 {offsets = [0, 0], sizes = [16, 1], strides = [1, 1]} : vector<16x9xf32> to vector<16x1xf32>
    %70 = vector.broadcast %69 : vector<16x1xf32> to vector<16x8xf32>
    %71 = arith.mulf %68, %70 : vector<16x8xf32>
    %cst_68 = arith.constant 0.000000e+00 : f32
    %72 = vector.broadcast %cst_68 : f32 to vector<8x8xf32>
    %73 = vector.extract_strided_slice %65 {offsets = [0, 0], sizes = [8, 8], strides = [1, 1]} : vector<16x8xf32> to vector<8x8xf32>
    %74 = tpu.concatenate %72, %73 in 0 : vector<8x8xf32>, vector<8x8xf32> -> vector<16x8xf32>
    %75 = vector.extract_strided_slice %26 {offsets = [0, 1], sizes = [16, 1], strides = [1, 1]} : vector<16x9xf32> to vector<16x1xf32>
    %76 = vector.broadcast %75 : vector<16x1xf32> to vector<16x8xf32>
    %77 = arith.mulf %74, %76 : vector<16x8xf32>
    %cst_69 = arith.constant 0.000000e+00 : f32
    %78 = vector.broadcast %cst_69 : f32 to vector<6x8xf32>
    %79 = vector.extract_strided_slice %65 {offsets = [0, 0], sizes = [10, 8], strides = [1, 1]} : vector<16x8xf32> to vector<10x8xf32>
    %80 = tpu.concatenate %78, %79 in 0 : vector<6x8xf32>, vector<10x8xf32> -> vector<16x8xf32>
    %81 = vector.extract_strided_slice %26 {offsets = [0, 2], sizes = [16, 1], strides = [1, 1]} : vector<16x9xf32> to vector<16x1xf32>
    %82 = vector.broadcast %81 : vector<16x1xf32> to vector<16x8xf32>
    %83 = arith.mulf %80, %82 : vector<16x8xf32>
    %cst_70 = arith.constant 0.000000e+00 : f32
    %84 = vector.broadcast %cst_70 : f32 to vector<2x8xf32>
    %85 = vector.extract_strided_slice %65 {offsets = [0, 0], sizes = [14, 8], strides = [1, 1]} : vector<16x8xf32> to vector<14x8xf32>
    %86 = tpu.concatenate %84, %85 in 0 : vector<2x8xf32>, vector<14x8xf32> -> vector<16x8xf32>
    %87 = vector.extract_strided_slice %26 {offsets = [0, 3], sizes = [16, 1], strides = [1, 1]} : vector<16x9xf32> to vector<16x1xf32>
    %88 = vector.broadcast %87 : vector<16x1xf32> to vector<16x8xf32>
    %89 = arith.mulf %86, %88 : vector<16x8xf32>
    %90 = vector.extract_strided_slice %26 {offsets = [0, 4], sizes = [16, 1], strides = [1, 1]} : vector<16x9xf32> to vector<16x1xf32>
    %91 = vector.broadcast %90 : vector<16x1xf32> to vector<16x8xf32>
    %92 = arith.mulf %65, %91 : vector<16x8xf32>
    %cst_71 = arith.constant 0.000000e+00 : f32
    %93 = vector.broadcast %cst_71 : f32 to vector<2x8xf32>
    %94 = vector.extract_strided_slice %65 {offsets = [2, 0], sizes = [14, 8], strides = [1, 1]} : vector<16x8xf32> to vector<14x8xf32>
    %95 = tpu.concatenate %94, %93 in 0 : vector<14x8xf32>, vector<2x8xf32> -> vector<16x8xf32>
    %96 = vector.extract_strided_slice %26 {offsets = [0, 5], sizes = [16, 1], strides = [1, 1]} : vector<16x9xf32> to vector<16x1xf32>
    %97 = vector.broadcast %96 : vector<16x1xf32> to vector<16x8xf32>
    %98 = arith.mulf %95, %97 : vector<16x8xf32>
    %cst_72 = arith.constant 0.000000e+00 : f32
    %99 = vector.broadcast %cst_72 : f32 to vector<6x8xf32>
    %100 = vector.extract_strided_slice %65 {offsets = [6, 0], sizes = [10, 8], strides = [1, 1]} : vector<16x8xf32> to vector<10x8xf32>
    %101 = tpu.concatenate %100, %99 in 0 : vector<10x8xf32>, vector<6x8xf32> -> vector<16x8xf32>
    %102 = vector.extract_strided_slice %26 {offsets = [0, 6], sizes = [16, 1], strides = [1, 1]} : vector<16x9xf32> to vector<16x1xf32>
    %103 = vector.broadcast %102 : vector<16x1xf32> to vector<16x8xf32>
    %104 = arith.mulf %101, %103 : vector<16x8xf32>
    %cst_73 = arith.constant 0.000000e+00 : f32
    %105 = vector.broadcast %cst_73 : f32 to vector<8x8xf32>
    %106 = vector.extract_strided_slice %65 {offsets = [8, 0], sizes = [8, 8], strides = [1, 1]} : vector<16x8xf32> to vector<8x8xf32>
    %107 = tpu.concatenate %106, %105 in 0 : vector<8x8xf32>, vector<8x8xf32> -> vector<16x8xf32>
    %108 = vector.extract_strided_slice %26 {offsets = [0, 7], sizes = [16, 1], strides = [1, 1]} : vector<16x9xf32> to vector<16x1xf32>
    %109 = vector.broadcast %108 : vector<16x1xf32> to vector<16x8xf32>
    %110 = arith.mulf %107, %109 : vector<16x8xf32>
    %cst_74 = arith.constant 0.000000e+00 : f32
    %111 = vector.broadcast %cst_74 : f32 to vector<10x8xf32>
    %112 = vector.extract_strided_slice %65 {offsets = [10, 0], sizes = [6, 8], strides = [1, 1]} : vector<16x8xf32> to vector<6x8xf32>
    %113 = tpu.concatenate %112, %111 in 0 : vector<6x8xf32>, vector<10x8xf32> -> vector<16x8xf32>
    %114 = vector.extract_strided_slice %26 {offsets = [0, 8], sizes = [16, 1], strides = [1, 1]} : vector<16x9xf32> to vector<16x1xf32>
    %115 = vector.broadcast %114 : vector<16x1xf32> to vector<16x8xf32>
    %116 = arith.mulf %113, %115 : vector<16x8xf32>
    %117 = tpu.concatenate %71, %77, %83, %89, %92, %98, %104, %110, %116 in 1 : vector<16x8xf32>, vector<16x8xf32>, vector<16x8xf32>, vector<16x8xf32>, vector<16x8xf32>, vector<16x8xf32>, vector<16x8xf32>, vector<16x8xf32>, vector<16x8xf32> -> vector<16x72xf32>
    %cst_75 = arith.constant dense<0.000000e+00> : vector<16x8xf32>
    %118 = tpu.matmul %117, %3, %cst_75 {dimension_numbers = #tpu.dot_dimension_numbers<[1], [0], [0], [1], [0, 0, 1, 1], [], []>} : vector<16x72xf32>, vector<72x8xf32>, vector<16x8xf32> -> vector<16x8xf32>
    %119 = vector.broadcast %31 : vector<1x8xf32> to vector<16x8xf32>
    %120 = arith.addf %118, %119 : vector<16x8xf32>
    %cst_76 = arith.constant 0.000000e+00 : f32
    %121 = vector.broadcast %cst_76 : f32 to vector<16x8xf32>
    %122 = arith.maximumf %120, %121 : vector<16x8xf32>
    %cst_77 = arith.constant dense<0.000000e+00> : vector<16x1xf32>
    %123 = tpu.matmul %122, %4, %cst_77 {dimension_numbers = #tpu.dot_dimension_numbers<[1], [0], [0], [1], [0, 0, 1, 1], [], []>} : vector<16x8xf32>, vector<8x1xf32>, vector<16x1xf32> -> vector<16x1xf32>
    %124 = vector.broadcast %32 : vector<1x1xf32> to vector<16x1xf32>
    %125 = arith.addf %123, %124 : vector<16x1xf32>
    %cst_78 = arith.constant 0.000000e+00 : f32
    %126 = vector.broadcast %cst_78 : f32 to vector<16x1xf32>
    %127 = arith.subf %126, %125 : vector<16x1xf32>
    %128 = math.exp %127 : vector<16x1xf32>
    %cst_79 = arith.constant 1.000000e+00 : f32
    %129 = vector.broadcast %cst_79 : f32 to vector<16x1xf32>
    %130 = arith.addf %129, %128 : vector<16x1xf32>
    %cst_80 = arith.constant 1.000000e+00 : f32
    %131 = vector.broadcast %cst_80 : f32 to vector<16x1xf32>
    %132 = arith.divf %131, %130 : vector<16x1xf32>
    %cst_81 = arith.constant dense<0.000000e+00> : vector<4x1xf32>
    %133 = tpu.matmul %6, %132, %cst_81 {dimension_numbers = #tpu.dot_dimension_numbers<[1], [0], [0], [1], [0, 0, 1, 1], [], []>} : vector<4x16xf32>, vector<16x1xf32>, vector<4x1xf32> -> vector<4x1xf32>
    %134 = arith.addf %133, %9 : vector<4x1xf32>
    %cst_82 = arith.constant 0.000000e+00 : f32
    %135 = vector.broadcast %cst_82 : f32 to vector<4x1xf32>
    %136 = arith.subf %135, %134 : vector<4x1xf32>
    %137 = math.exp %136 : vector<4x1xf32>
    %cst_83 = arith.constant 1.000000e+00 : f32
    %138 = vector.broadcast %cst_83 : f32 to vector<4x1xf32>
    %139 = arith.addf %138, %137 : vector<4x1xf32>
    %cst_84 = arith.constant 1.000000e+00 : f32
    %140 = vector.broadcast %cst_84 : f32 to vector<4x1xf32>
    %141 = arith.divf %140, %139 : vector<4x1xf32>
    %cst_85 = arith.constant dense<0.000000e+00> : vector<1x128xf32>
    %142 = tpu.matmul %60, %7, %cst_85 {dimension_numbers = #tpu.dot_dimension_numbers<[1], [0], [0], [1], [0, 0, 1, 1], [], []>} : vector<1x32xf32>, vector<32x128xf32>, vector<1x128xf32> -> vector<1x128xf32>
    %143 = arith.addf %142, %34 : vector<1x128xf32>
    %cst_86 = arith.constant 0.000000e+00 : f32
    %144 = vector.broadcast %cst_86 : f32 to vector<1x128xf32>
    %145 = arith.subf %144, %143 : vector<1x128xf32>
    %146 = math.exp %145 : vector<1x128xf32>
    %cst_87 = arith.constant 1.000000e+00 : f32
    %147 = vector.broadcast %cst_87 : f32 to vector<1x128xf32>
    %148 = arith.addf %147, %146 : vector<1x128xf32>
    %cst_88 = arith.constant 1.000000e+00 : f32
    %149 = vector.broadcast %cst_88 : f32 to vector<1x128xf32>
    %150 = arith.divf %149, %148 : vector<1x128xf32>
    %cst_89 = arith.constant dense<0.000000e+00> : vector<64x1xf32>
    %151 = tpu.matmul %8, %141, %cst_89 {dimension_numbers = #tpu.dot_dimension_numbers<[1], [0], [0], [1], [0, 0, 1, 1], [], []>} : vector<64x4xf32>, vector<4x1xf32>, vector<64x1xf32> -> vector<64x1xf32>
    %152 = arith.addf %151, %10 : vector<64x1xf32>
    %cst_90 = arith.constant 0.000000e+00 : f32
    %153 = vector.broadcast %cst_90 : f32 to vector<64x1xf32>
    %154 = arith.subf %153, %152 : vector<64x1xf32>
    %155 = math.exp %154 : vector<64x1xf32>
    %cst_91 = arith.constant 1.000000e+00 : f32
    %156 = vector.broadcast %cst_91 : f32 to vector<64x1xf32>
    %157 = arith.addf %156, %155 : vector<64x1xf32>
    %cst_92 = arith.constant 1.000000e+00 : f32
    %158 = vector.broadcast %cst_92 : f32 to vector<64x1xf32>
    %159 = arith.divf %158, %157 : vector<64x1xf32>
    %160 = vector.extract_strided_slice %150 {offsets = [0, 0], sizes = [1, 32], strides = [1, 1]} : vector<1x128xf32> to vector<1x32xf32>
    %161 = vector.extract_strided_slice %159 {offsets = [0, 0], sizes = [16, 1], strides = [1, 1]} : vector<64x1xf32> to vector<16x1xf32>
    %162 = vector.broadcast %160 : vector<1x32xf32> to vector<16x32xf32>
    %163 = vector.broadcast %161 : vector<16x1xf32> to vector<16x32xf32>
    %164 = arith.addf %162, %163 : vector<16x32xf32>
    %165 = vector.extract_strided_slice %150 {offsets = [0, 32], sizes = [1, 32], strides = [1, 1]} : vector<1x128xf32> to vector<1x32xf32>
    %166 = vector.extract_strided_slice %159 {offsets = [16, 0], sizes = [16, 1], strides = [1, 1]} : vector<64x1xf32> to vector<16x1xf32>
    %167 = vector.broadcast %165 : vector<1x32xf32> to vector<16x32xf32>
    %168 = vector.broadcast %166 : vector<16x1xf32> to vector<16x32xf32>
    %169 = arith.addf %167, %168 : vector<16x32xf32>
    %170 = vector.extract_strided_slice %150 {offsets = [0, 64], sizes = [1, 32], strides = [1, 1]} : vector<1x128xf32> to vector<1x32xf32>
    %171 = vector.extract_strided_slice %159 {offsets = [32, 0], sizes = [16, 1], strides = [1, 1]} : vector<64x1xf32> to vector<16x1xf32>
    %172 = vector.broadcast %170 : vector<1x32xf32> to vector<16x32xf32>
    %173 = vector.broadcast %171 : vector<16x1xf32> to vector<16x32xf32>
    %174 = arith.addf %172, %173 : vector<16x32xf32>
    %175 = vector.extract_strided_slice %150 {offsets = [0, 96], sizes = [1, 32], strides = [1, 1]} : vector<1x128xf32> to vector<1x32xf32>
    %176 = vector.extract_strided_slice %159 {offsets = [48, 0], sizes = [16, 1], strides = [1, 1]} : vector<64x1xf32> to vector<16x1xf32>
    %177 = vector.broadcast %175 : vector<1x32xf32> to vector<16x32xf32>
    %178 = vector.broadcast %176 : vector<16x1xf32> to vector<16x32xf32>
    %179 = arith.addf %177, %178 : vector<16x32xf32>
    %180 = vector.shape_cast %164 : vector<16x32xf32> to vector<1x16x32xf32>
    %181 = vector.shape_cast %169 : vector<16x32xf32> to vector<1x16x32xf32>
    %182 = vector.shape_cast %174 : vector<16x32xf32> to vector<1x16x32xf32>
    %183 = vector.shape_cast %179 : vector<16x32xf32> to vector<1x16x32xf32>
    %184 = tpu.concatenate %180, %181, %182, %183 in 0 : vector<1x16x32xf32>, vector<1x16x32xf32>, vector<1x16x32xf32>, vector<1x16x32xf32> -> vector<4x16x32xf32>
    %cst_93 = arith.constant dense<0xFF800000> : vector<16x32xf32>
    %185 = vector.multi_reduction <maximumf>, %184, %cst_93 [0] : vector<4x16x32xf32> to vector<16x32xf32>
    %186 = vector.shape_cast %185 : vector<16x32xf32> to vector<1x16x32xf32>
    %187 = vector.broadcast %186 : vector<1x16x32xf32> to vector<4x16x32xf32>
    %188 = arith.subf %184, %187 : vector<4x16x32xf32>
    %189 = math.exp %188 : vector<4x16x32xf32>
    %cst_94 = arith.constant dense<0.000000e+00> : vector<16x32xf32>
    %190 = vector.multi_reduction <add>, %189, %cst_94 [0] : vector<4x16x32xf32> to vector<16x32xf32>
    %191 = vector.shape_cast %190 : vector<16x32xf32> to vector<1x16x32xf32>
    %192 = tpu.reciprocal %191 {approx = true} : vector<1x16x32xf32> -> vector<1x16x32xf32>
    %193 = vector.broadcast %192 : vector<1x16x32xf32> to vector<4x16x32xf32>
    %194 = arith.mulf %189, %193 : vector<4x16x32xf32>
    %cst_95 = arith.constant 1.000000e+00 : f32
    %195 = vector.broadcast %cst_95 : f32 to vector<4x16x32xf32>
    %196 = arith.addf %195, %194 : vector<4x16x32xf32>
    %197 = arith.mulf %25, %196 : vector<4x16x32xf32>
    %cst_96 = arith.constant dense<0.000000e+00> : vector<16x32xf32>
    %198 = vector.multi_reduction <add>, %197, %cst_96 [0] : vector<4x16x32xf32> to vector<16x32xf32>
    %199 = vector.extract_strided_slice %23 {offsets = [0, 0], sizes = [1, 8], strides = [1, 1]} : vector<7x128xf32> to vector<1x8xf32>
    %200 = vector.extract_strided_slice %23 {offsets = [1, 0], sizes = [1, 32], strides = [1, 1]} : vector<7x128xf32> to vector<1x32xf32>
    %201 = vector.extract_strided_slice %23 {offsets = [2, 0], sizes = [1, 8], strides = [1, 1]} : vector<7x128xf32> to vector<1x8xf32>
    %202 = vector.extract_strided_slice %23 {offsets = [3, 0], sizes = [1, 8], strides = [1, 1]} : vector<7x128xf32> to vector<1x8xf32>
    %203 = vector.extract_strided_slice %23 {offsets = [4, 0], sizes = [1, 1], strides = [1, 1]} : vector<7x128xf32> to vector<1x1xf32>
    %204 = vector.extract_strided_slice %23 {offsets = [5, 0], sizes = [1, 32], strides = [1, 1]} : vector<7x128xf32> to vector<1x32xf32>
    %205 = vector.extract_strided_slice %23 {offsets = [6, 0], sizes = [1, 128], strides = [1, 1]} : vector<7x128xf32> to vector<1x128xf32>
    %cst_97 = arith.constant dense<0.000000e+00> : vector<32xf32>
    %206 = vector.multi_reduction <add>, %198, %cst_97 [0] : vector<16x32xf32> to vector<32xf32>
    %207 = vector.shape_cast %206 : vector<32xf32> to vector<1x32xf32>
    %cst_98 = arith.constant 1.600000e+01 : f32
    %208 = vector.broadcast %cst_98 : f32 to vector<1x32xf32>
    %209 = arith.divf %207, %208 : vector<1x32xf32>
    %cst_99 = arith.constant dense<0.000000e+00> : vector<1x8xf32>
    %210 = tpu.matmul %209, %12, %cst_99 {dimension_numbers = #tpu.dot_dimension_numbers<[1], [0], [0], [1], [0, 0, 1, 1], [], []>} : vector<1x32xf32>, vector<32x8xf32>, vector<1x8xf32> -> vector<1x8xf32>
    %211 = arith.addf %210, %199 : vector<1x8xf32>
    %cst_100 = arith.constant 0.000000e+00 : f32
    %212 = vector.broadcast %cst_100 : f32 to vector<1x8xf32>
    %213 = arith.maximumf %211, %212 : vector<1x8xf32>
    %cst_101 = arith.constant dense<0.000000e+00> : vector<1x32xf32>
    %214 = tpu.matmul %213, %13, %cst_101 {dimension_numbers = #tpu.dot_dimension_numbers<[1], [0], [0], [1], [0, 0, 1, 1], [], []>} : vector<1x8xf32>, vector<8x32xf32>, vector<1x32xf32> -> vector<1x32xf32>
    %215 = arith.addf %214, %200 : vector<1x32xf32>
    %cst_102 = arith.constant 0.000000e+00 : f32
    %216 = vector.broadcast %cst_102 : f32 to vector<1x32xf32>
    %217 = arith.subf %216, %215 : vector<1x32xf32>
    %218 = math.exp %217 : vector<1x32xf32>
    %cst_103 = arith.constant 1.000000e+00 : f32
    %219 = vector.broadcast %cst_103 : f32 to vector<1x32xf32>
    %220 = arith.addf %219, %218 : vector<1x32xf32>
    %cst_104 = arith.constant 1.000000e+00 : f32
    %221 = vector.broadcast %cst_104 : f32 to vector<1x32xf32>
    %222 = arith.divf %221, %220 : vector<1x32xf32>
    %cst_105 = arith.constant dense<0.000000e+00> : vector<1x32xf32>
    %223 = tpu.matmul %222, %17, %cst_105 {dimension_numbers = #tpu.dot_dimension_numbers<[1], [0], [0], [1], [0, 0, 1, 1], [], []>} : vector<1x32xf32>, vector<32x32xf32>, vector<1x32xf32> -> vector<1x32xf32>
    %224 = arith.addf %223, %204 : vector<1x32xf32>
    %cst_106 = arith.constant 0.000000e+00 : f32
    %225 = vector.broadcast %cst_106 : f32 to vector<1x32xf32>
    %226 = arith.subf %225, %224 : vector<1x32xf32>
    %227 = math.exp %226 : vector<1x32xf32>
    %cst_107 = arith.constant 1.000000e+00 : f32
    %228 = vector.broadcast %cst_107 : f32 to vector<1x32xf32>
    %229 = arith.addf %228, %227 : vector<1x32xf32>
    %cst_108 = arith.constant 1.000000e+00 : f32
    %230 = vector.broadcast %cst_108 : f32 to vector<1x32xf32>
    %231 = arith.divf %230, %229 : vector<1x32xf32>
    %cst_109 = arith.constant dense<0.000000e+00> : vector<16x8xf32>
    %232 = tpu.matmul %198, %14, %cst_109 {dimension_numbers = #tpu.dot_dimension_numbers<[1], [0], [0], [1], [0, 0, 1, 1], [], []>} : vector<16x32xf32>, vector<32x8xf32>, vector<16x8xf32> -> vector<16x8xf32>
    %233 = vector.broadcast %201 : vector<1x8xf32> to vector<16x8xf32>
    %234 = arith.addf %232, %233 : vector<16x8xf32>
    %cst_110 = arith.constant 0.000000e+00 : f32
    %235 = vector.broadcast %cst_110 : f32 to vector<16x8xf32>
    %236 = arith.maximumf %234, %235 : vector<16x8xf32>
    %cst_111 = arith.constant 0.000000e+00 : f32
    %237 = vector.broadcast %cst_111 : f32 to vector<10x8xf32>
    %238 = vector.extract_strided_slice %236 {offsets = [0, 0], sizes = [6, 8], strides = [1, 1]} : vector<16x8xf32> to vector<6x8xf32>
    %239 = tpu.concatenate %237, %238 in 0 : vector<10x8xf32>, vector<6x8xf32> -> vector<16x8xf32>
    %240 = vector.extract_strided_slice %26 {offsets = [0, 0], sizes = [16, 1], strides = [1, 1]} : vector<16x9xf32> to vector<16x1xf32>
    %241 = vector.broadcast %240 : vector<16x1xf32> to vector<16x8xf32>
    %242 = arith.mulf %239, %241 : vector<16x8xf32>
    %cst_112 = arith.constant 0.000000e+00 : f32
    %243 = vector.broadcast %cst_112 : f32 to vector<8x8xf32>
    %244 = vector.extract_strided_slice %236 {offsets = [0, 0], sizes = [8, 8], strides = [1, 1]} : vector<16x8xf32> to vector<8x8xf32>
    %245 = tpu.concatenate %243, %244 in 0 : vector<8x8xf32>, vector<8x8xf32> -> vector<16x8xf32>
    %246 = vector.extract_strided_slice %26 {offsets = [0, 1], sizes = [16, 1], strides = [1, 1]} : vector<16x9xf32> to vector<16x1xf32>
    %247 = vector.broadcast %246 : vector<16x1xf32> to vector<16x8xf32>
    %248 = arith.mulf %245, %247 : vector<16x8xf32>
    %cst_113 = arith.constant 0.000000e+00 : f32
    %249 = vector.broadcast %cst_113 : f32 to vector<6x8xf32>
    %250 = vector.extract_strided_slice %236 {offsets = [0, 0], sizes = [10, 8], strides = [1, 1]} : vector<16x8xf32> to vector<10x8xf32>
    %251 = tpu.concatenate %249, %250 in 0 : vector<6x8xf32>, vector<10x8xf32> -> vector<16x8xf32>
    %252 = vector.extract_strided_slice %26 {offsets = [0, 2], sizes = [16, 1], strides = [1, 1]} : vector<16x9xf32> to vector<16x1xf32>
    %253 = vector.broadcast %252 : vector<16x1xf32> to vector<16x8xf32>
    %254 = arith.mulf %251, %253 : vector<16x8xf32>
    %cst_114 = arith.constant 0.000000e+00 : f32
    %255 = vector.broadcast %cst_114 : f32 to vector<2x8xf32>
    %256 = vector.extract_strided_slice %236 {offsets = [0, 0], sizes = [14, 8], strides = [1, 1]} : vector<16x8xf32> to vector<14x8xf32>
    %257 = tpu.concatenate %255, %256 in 0 : vector<2x8xf32>, vector<14x8xf32> -> vector<16x8xf32>
    %258 = vector.extract_strided_slice %26 {offsets = [0, 3], sizes = [16, 1], strides = [1, 1]} : vector<16x9xf32> to vector<16x1xf32>
    %259 = vector.broadcast %258 : vector<16x1xf32> to vector<16x8xf32>
    %260 = arith.mulf %257, %259 : vector<16x8xf32>
    %261 = vector.extract_strided_slice %26 {offsets = [0, 4], sizes = [16, 1], strides = [1, 1]} : vector<16x9xf32> to vector<16x1xf32>
    %262 = vector.broadcast %261 : vector<16x1xf32> to vector<16x8xf32>
    %263 = arith.mulf %236, %262 : vector<16x8xf32>
    %cst_115 = arith.constant 0.000000e+00 : f32
    %264 = vector.broadcast %cst_115 : f32 to vector<2x8xf32>
    %265 = vector.extract_strided_slice %236 {offsets = [2, 0], sizes = [14, 8], strides = [1, 1]} : vector<16x8xf32> to vector<14x8xf32>
    %266 = tpu.concatenate %265, %264 in 0 : vector<14x8xf32>, vector<2x8xf32> -> vector<16x8xf32>
    %267 = vector.extract_strided_slice %26 {offsets = [0, 5], sizes = [16, 1], strides = [1, 1]} : vector<16x9xf32> to vector<16x1xf32>
    %268 = vector.broadcast %267 : vector<16x1xf32> to vector<16x8xf32>
    %269 = arith.mulf %266, %268 : vector<16x8xf32>
    %cst_116 = arith.constant 0.000000e+00 : f32
    %270 = vector.broadcast %cst_116 : f32 to vector<6x8xf32>
    %271 = vector.extract_strided_slice %236 {offsets = [6, 0], sizes = [10, 8], strides = [1, 1]} : vector<16x8xf32> to vector<10x8xf32>
    %272 = tpu.concatenate %271, %270 in 0 : vector<10x8xf32>, vector<6x8xf32> -> vector<16x8xf32>
    %273 = vector.extract_strided_slice %26 {offsets = [0, 6], sizes = [16, 1], strides = [1, 1]} : vector<16x9xf32> to vector<16x1xf32>
    %274 = vector.broadcast %273 : vector<16x1xf32> to vector<16x8xf32>
    %275 = arith.mulf %272, %274 : vector<16x8xf32>
    %cst_117 = arith.constant 0.000000e+00 : f32
    %276 = vector.broadcast %cst_117 : f32 to vector<8x8xf32>
    %277 = vector.extract_strided_slice %236 {offsets = [8, 0], sizes = [8, 8], strides = [1, 1]} : vector<16x8xf32> to vector<8x8xf32>
    %278 = tpu.concatenate %277, %276 in 0 : vector<8x8xf32>, vector<8x8xf32> -> vector<16x8xf32>
    %279 = vector.extract_strided_slice %26 {offsets = [0, 7], sizes = [16, 1], strides = [1, 1]} : vector<16x9xf32> to vector<16x1xf32>
    %280 = vector.broadcast %279 : vector<16x1xf32> to vector<16x8xf32>
    %281 = arith.mulf %278, %280 : vector<16x8xf32>
    %cst_118 = arith.constant 0.000000e+00 : f32
    %282 = vector.broadcast %cst_118 : f32 to vector<10x8xf32>
    %283 = vector.extract_strided_slice %236 {offsets = [10, 0], sizes = [6, 8], strides = [1, 1]} : vector<16x8xf32> to vector<6x8xf32>
    %284 = tpu.concatenate %283, %282 in 0 : vector<6x8xf32>, vector<10x8xf32> -> vector<16x8xf32>
    %285 = vector.extract_strided_slice %26 {offsets = [0, 8], sizes = [16, 1], strides = [1, 1]} : vector<16x9xf32> to vector<16x1xf32>
    %286 = vector.broadcast %285 : vector<16x1xf32> to vector<16x8xf32>
    %287 = arith.mulf %284, %286 : vector<16x8xf32>
    %288 = tpu.concatenate %242, %248, %254, %260, %263, %269, %275, %281, %287 in 1 : vector<16x8xf32>, vector<16x8xf32>, vector<16x8xf32>, vector<16x8xf32>, vector<16x8xf32>, vector<16x8xf32>, vector<16x8xf32>, vector<16x8xf32>, vector<16x8xf32> -> vector<16x72xf32>
    %cst_119 = arith.constant dense<0.000000e+00> : vector<16x8xf32>
    %289 = tpu.matmul %288, %15, %cst_119 {dimension_numbers = #tpu.dot_dimension_numbers<[1], [0], [0], [1], [0, 0, 1, 1], [], []>} : vector<16x72xf32>, vector<72x8xf32>, vector<16x8xf32> -> vector<16x8xf32>
    %290 = vector.broadcast %202 : vector<1x8xf32> to vector<16x8xf32>
    %291 = arith.addf %289, %290 : vector<16x8xf32>
    %cst_120 = arith.constant 0.000000e+00 : f32
    %292 = vector.broadcast %cst_120 : f32 to vector<16x8xf32>
    %293 = arith.maximumf %291, %292 : vector<16x8xf32>
    %cst_121 = arith.constant dense<0.000000e+00> : vector<16x1xf32>
    %294 = tpu.matmul %293, %16, %cst_121 {dimension_numbers = #tpu.dot_dimension_numbers<[1], [0], [0], [1], [0, 0, 1, 1], [], []>} : vector<16x8xf32>, vector<8x1xf32>, vector<16x1xf32> -> vector<16x1xf32>
    %295 = vector.broadcast %203 : vector<1x1xf32> to vector<16x1xf32>
    %296 = arith.addf %294, %295 : vector<16x1xf32>
    %cst_122 = arith.constant 0.000000e+00 : f32
    %297 = vector.broadcast %cst_122 : f32 to vector<16x1xf32>
    %298 = arith.subf %297, %296 : vector<16x1xf32>
    %299 = math.exp %298 : vector<16x1xf32>
    %cst_123 = arith.constant 1.000000e+00 : f32
    %300 = vector.broadcast %cst_123 : f32 to vector<16x1xf32>
    %301 = arith.addf %300, %299 : vector<16x1xf32>
    %cst_124 = arith.constant 1.000000e+00 : f32
    %302 = vector.broadcast %cst_124 : f32 to vector<16x1xf32>
    %303 = arith.divf %302, %301 : vector<16x1xf32>
    %cst_125 = arith.constant dense<0.000000e+00> : vector<4x1xf32>
    %304 = tpu.matmul %18, %303, %cst_125 {dimension_numbers = #tpu.dot_dimension_numbers<[1], [0], [0], [1], [0, 0, 1, 1], [], []>} : vector<4x16xf32>, vector<16x1xf32>, vector<4x1xf32> -> vector<4x1xf32>
    %305 = arith.addf %304, %21 : vector<4x1xf32>
    %cst_126 = arith.constant 0.000000e+00 : f32
    %306 = vector.broadcast %cst_126 : f32 to vector<4x1xf32>
    %307 = arith.subf %306, %305 : vector<4x1xf32>
    %308 = math.exp %307 : vector<4x1xf32>
    %cst_127 = arith.constant 1.000000e+00 : f32
    %309 = vector.broadcast %cst_127 : f32 to vector<4x1xf32>
    %310 = arith.addf %309, %308 : vector<4x1xf32>
    %cst_128 = arith.constant 1.000000e+00 : f32
    %311 = vector.broadcast %cst_128 : f32 to vector<4x1xf32>
    %312 = arith.divf %311, %310 : vector<4x1xf32>
    %cst_129 = arith.constant dense<0.000000e+00> : vector<1x128xf32>
    %313 = tpu.matmul %231, %19, %cst_129 {dimension_numbers = #tpu.dot_dimension_numbers<[1], [0], [0], [1], [0, 0, 1, 1], [], []>} : vector<1x32xf32>, vector<32x128xf32>, vector<1x128xf32> -> vector<1x128xf32>
    %314 = arith.addf %313, %205 : vector<1x128xf32>
    %cst_130 = arith.constant 0.000000e+00 : f32
    %315 = vector.broadcast %cst_130 : f32 to vector<1x128xf32>
    %316 = arith.subf %315, %314 : vector<1x128xf32>
    %317 = math.exp %316 : vector<1x128xf32>
    %cst_131 = arith.constant 1.000000e+00 : f32
    %318 = vector.broadcast %cst_131 : f32 to vector<1x128xf32>
    %319 = arith.addf %318, %317 : vector<1x128xf32>
    %cst_132 = arith.constant 1.000000e+00 : f32
    %320 = vector.broadcast %cst_132 : f32 to vector<1x128xf32>
    %321 = arith.divf %320, %319 : vector<1x128xf32>
    %cst_133 = arith.constant dense<0.000000e+00> : vector<64x1xf32>
    %322 = tpu.matmul %20, %312, %cst_133 {dimension_numbers = #tpu.dot_dimension_numbers<[1], [0], [0], [1], [0, 0, 1, 1], [], []>} : vector<64x4xf32>, vector<4x1xf32>, vector<64x1xf32> -> vector<64x1xf32>
    %323 = arith.addf %322, %22 : vector<64x1xf32>
    %cst_134 = arith.constant 0.000000e+00 : f32
    %324 = vector.broadcast %cst_134 : f32 to vector<64x1xf32>
    %325 = arith.subf %324, %323 : vector<64x1xf32>
    %326 = math.exp %325 : vector<64x1xf32>
    %cst_135 = arith.constant 1.000000e+00 : f32
    %327 = vector.broadcast %cst_135 : f32 to vector<64x1xf32>
    %328 = arith.addf %327, %326 : vector<64x1xf32>
    %cst_136 = arith.constant 1.000000e+00 : f32
    %329 = vector.broadcast %cst_136 : f32 to vector<64x1xf32>
    %330 = arith.divf %329, %328 : vector<64x1xf32>
    %331 = vector.extract_strided_slice %321 {offsets = [0, 0], sizes = [1, 32], strides = [1, 1]} : vector<1x128xf32> to vector<1x32xf32>
    %332 = vector.extract_strided_slice %330 {offsets = [0, 0], sizes = [16, 1], strides = [1, 1]} : vector<64x1xf32> to vector<16x1xf32>
    %333 = vector.broadcast %331 : vector<1x32xf32> to vector<16x32xf32>
    %334 = vector.broadcast %332 : vector<16x1xf32> to vector<16x32xf32>
    %335 = arith.addf %333, %334 : vector<16x32xf32>
    %336 = vector.extract_strided_slice %321 {offsets = [0, 32], sizes = [1, 32], strides = [1, 1]} : vector<1x128xf32> to vector<1x32xf32>
    %337 = vector.extract_strided_slice %330 {offsets = [16, 0], sizes = [16, 1], strides = [1, 1]} : vector<64x1xf32> to vector<16x1xf32>
    %338 = vector.broadcast %336 : vector<1x32xf32> to vector<16x32xf32>
    %339 = vector.broadcast %337 : vector<16x1xf32> to vector<16x32xf32>
    %340 = arith.addf %338, %339 : vector<16x32xf32>
    %341 = vector.extract_strided_slice %321 {offsets = [0, 64], sizes = [1, 32], strides = [1, 1]} : vector<1x128xf32> to vector<1x32xf32>
    %342 = vector.extract_strided_slice %330 {offsets = [32, 0], sizes = [16, 1], strides = [1, 1]} : vector<64x1xf32> to vector<16x1xf32>
    %343 = vector.broadcast %341 : vector<1x32xf32> to vector<16x32xf32>
    %344 = vector.broadcast %342 : vector<16x1xf32> to vector<16x32xf32>
    %345 = arith.addf %343, %344 : vector<16x32xf32>
    %346 = vector.extract_strided_slice %321 {offsets = [0, 96], sizes = [1, 32], strides = [1, 1]} : vector<1x128xf32> to vector<1x32xf32>
    %347 = vector.extract_strided_slice %330 {offsets = [48, 0], sizes = [16, 1], strides = [1, 1]} : vector<64x1xf32> to vector<16x1xf32>
    %348 = vector.broadcast %346 : vector<1x32xf32> to vector<16x32xf32>
    %349 = vector.broadcast %347 : vector<16x1xf32> to vector<16x32xf32>
    %350 = arith.addf %348, %349 : vector<16x32xf32>
    %351 = vector.shape_cast %335 : vector<16x32xf32> to vector<1x16x32xf32>
    %352 = vector.shape_cast %340 : vector<16x32xf32> to vector<1x16x32xf32>
    %353 = vector.shape_cast %345 : vector<16x32xf32> to vector<1x16x32xf32>
    %354 = vector.shape_cast %350 : vector<16x32xf32> to vector<1x16x32xf32>
    %355 = tpu.concatenate %351, %352, %353, %354 in 0 : vector<1x16x32xf32>, vector<1x16x32xf32>, vector<1x16x32xf32>, vector<1x16x32xf32> -> vector<4x16x32xf32>
    %cst_137 = arith.constant dense<0xFF800000> : vector<16x32xf32>
    %356 = vector.multi_reduction <maximumf>, %355, %cst_137 [0] : vector<4x16x32xf32> to vector<16x32xf32>
    %357 = vector.shape_cast %356 : vector<16x32xf32> to vector<1x16x32xf32>
    %358 = vector.broadcast %357 : vector<1x16x32xf32> to vector<4x16x32xf32>
    %359 = arith.subf %355, %358 : vector<4x16x32xf32>
    %360 = math.exp %359 : vector<4x16x32xf32>
    %cst_138 = arith.constant dense<0.000000e+00> : vector<16x32xf32>
    %361 = vector.multi_reduction <add>, %360, %cst_138 [0] : vector<4x16x32xf32> to vector<16x32xf32>
    %362 = vector.shape_cast %361 : vector<16x32xf32> to vector<1x16x32xf32>
    %363 = tpu.reciprocal %362 {approx = true} : vector<1x16x32xf32> -> vector<1x16x32xf32>
    %364 = vector.broadcast %363 : vector<1x16x32xf32> to vector<4x16x32xf32>
    %365 = arith.mulf %360, %364 : vector<4x16x32xf32>
    %cst_139 = arith.constant 1.000000e+00 : f32
    %366 = vector.broadcast %cst_139 : f32 to vector<4x16x32xf32>
    %367 = arith.addf %366, %365 : vector<4x16x32xf32>
    %368 = arith.mulf %25, %367 : vector<4x16x32xf32>
    %cst_140 = arith.constant dense<0.000000e+00> : vector<16x32xf32>
    %369 = vector.multi_reduction <add>, %368, %cst_140 [0] : vector<4x16x32xf32> to vector<16x32xf32>
    %c0_141 = arith.constant 0 : index
    %c0_142 = arith.constant 0 : index
    %c0_143 = arith.constant 0 : index
    %370 = vector.load %arg27[%c0_141, %c0_142, %c0_143] : memref<1x16x32xf32, #tpu.memory_space<vmem>>, vector<1x16x32xf32>
    %371 = vector.shape_cast %370 : vector<1x16x32xf32> to vector<16x32xf32>
    %372 = vector.shape_cast %369 : vector<16x32xf32> to vector<1x16x32xf32>
    tpu.vector_store %arg27[%c0_141, %c0_142, %c0_143], %372 {strides = array<i32>} : memref<1x16x32xf32, #tpu.memory_space<vmem>>, vector<1x16x32xf32>,
    return
  }
  func.func @transform_0(%arg0: i32) -> (i32, i32, i32, i32) {
    %c0_i32 = arith.constant 0 : i32
    %c0_i32_0 = arith.constant 0 : i32
    %c0_i32_1 = arith.constant 0 : i32
    %c0_i32_2 = arith.constant 0 : i32
    return %arg0, %c0_i32, %c0_i32_0, %c0_i32_1 : i32, i32, i32, i32
  }
  func.func @transform_1(%arg0: i32) -> (i32, i32) {
    %c0_i32 = arith.constant 0 : i32
    %c0_i32_0 = arith.constant 0 : i32
    %c0_i32_1 = arith.constant 0 : i32
    return %c0_i32, %c0_i32_0 : i32, i32
  }
  func.func @transform_2(%arg0: i32) -> (i32, i32) {
    %c0_i32 = arith.constant 0 : i32
    %c0_i32_0 = arith.constant 0 : i32
    %c0_i32_1 = arith.constant 0 : i32
    return %c0_i32, %c0_i32_0 : i32, i32
  }
  func.func @transform_3(%arg0: i32) -> (i32, i32) {
    %c0_i32 = arith.constant 0 : i32
    %c0_i32_0 = arith.constant 0 : i32
    %c0_i32_1 = arith.constant 0 : i32
    return %c0_i32, %c0_i32_0 : i32, i32
  }
  func.func @transform_4(%arg0: i32) -> (i32, i32) {
    %c0_i32 = arith.constant 0 : i32
    %c0_i32_0 = arith.constant 0 : i32
    %c0_i32_1 = arith.constant 0 : i32
    return %c0_i32, %c0_i32_0 : i32, i32
  }
  func.func @transform_5(%arg0: i32) -> (i32, i32) {
    %c0_i32 = arith.constant 0 : i32
    %c0_i32_0 = arith.constant 0 : i32
    %c0_i32_1 = arith.constant 0 : i32
    return %c0_i32, %c0_i32_0 : i32, i32
  }
  func.func @transform_6(%arg0: i32) -> (i32, i32) {
    %c0_i32 = arith.constant 0 : i32
    %c0_i32_0 = arith.constant 0 : i32
    %c0_i32_1 = arith.constant 0 : i32
    return %c0_i32, %c0_i32_0 : i32, i32
  }
  func.func @transform_7(%arg0: i32) -> (i32, i32) {
    %c0_i32 = arith.constant 0 : i32
    %c0_i32_0 = arith.constant 0 : i32
    %c0_i32_1 = arith.constant 0 : i32
    return %c0_i32, %c0_i32_0 : i32, i32
  }
  func.func @transform_8(%arg0: i32) -> (i32, i32) {
    %c0_i32 = arith.constant 0 : i32
    %c0_i32_0 = arith.constant 0 : i32
    %c0_i32_1 = arith.constant 0 : i32
    return %c0_i32, %c0_i32_0 : i32, i32
  }
  func.func @transform_9(%arg0: i32) -> (i32, i32) {
    %c0_i32 = arith.constant 0 : i32
    %c0_i32_0 = arith.constant 0 : i32
    %c0_i32_1 = arith.constant 0 : i32
    return %c0_i32, %c0_i32_0 : i32, i32
  }
  func.func @transform_10(%arg0: i32) -> (i32, i32) {
    %c0_i32 = arith.constant 0 : i32
    %c0_i32_0 = arith.constant 0 : i32
    %c0_i32_1 = arith.constant 0 : i32
    return %c0_i32, %c0_i32_0 : i32, i32
  }
  func.func @transform_11(%arg0: i32) -> (i32, i32) {
    %c0_i32 = arith.constant 0 : i32
    %c0_i32_0 = arith.constant 0 : i32
    %c0_i32_1 = arith.constant 0 : i32
    return %c0_i32, %c0_i32_0 : i32, i32
  }
  func.func @transform_12(%arg0: i32) -> (i32, i32) {
    %c0_i32 = arith.constant 0 : i32
    %c0_i32_0 = arith.constant 0 : i32
    %c0_i32_1 = arith.constant 0 : i32
    return %c0_i32, %c0_i32_0 : i32, i32
  }
  func.func @transform_13(%arg0: i32) -> (i32, i32) {
    %c0_i32 = arith.constant 0 : i32
    %c0_i32_0 = arith.constant 0 : i32
    %c0_i32_1 = arith.constant 0 : i32
    return %c0_i32, %c0_i32_0 : i32, i32
  }
  func.func @transform_14(%arg0: i32) -> (i32, i32) {
    %c0_i32 = arith.constant 0 : i32
    %c0_i32_0 = arith.constant 0 : i32
    %c0_i32_1 = arith.constant 0 : i32
    return %c0_i32, %c0_i32_0 : i32, i32
  }
  func.func @transform_15(%arg0: i32) -> (i32, i32) {
    %c0_i32 = arith.constant 0 : i32
    %c0_i32_0 = arith.constant 0 : i32
    %c0_i32_1 = arith.constant 0 : i32
    return %c0_i32, %c0_i32_0 : i32, i32
  }
  func.func @transform_16(%arg0: i32) -> (i32, i32) {
    %c0_i32 = arith.constant 0 : i32
    %c0_i32_0 = arith.constant 0 : i32
    %c0_i32_1 = arith.constant 0 : i32
    return %c0_i32, %c0_i32_0 : i32, i32
  }
  func.func @transform_17(%arg0: i32) -> (i32, i32) {
    %c0_i32 = arith.constant 0 : i32
    %c0_i32_0 = arith.constant 0 : i32
    %c0_i32_1 = arith.constant 0 : i32
    return %c0_i32, %c0_i32_0 : i32, i32
  }
  func.func @transform_18(%arg0: i32) -> (i32, i32) {
    %c0_i32 = arith.constant 0 : i32
    %c0_i32_0 = arith.constant 0 : i32
    %c0_i32_1 = arith.constant 0 : i32
    return %c0_i32, %c0_i32_0 : i32, i32
  }
  func.func @transform_19(%arg0: i32) -> (i32, i32) {
    %c0_i32 = arith.constant 0 : i32
    %c0_i32_0 = arith.constant 0 : i32
    %c0_i32_1 = arith.constant 0 : i32
    return %c0_i32, %c0_i32_0 : i32, i32
  }
  func.func @transform_20(%arg0: i32) -> (i32, i32) {
    %c0_i32 = arith.constant 0 : i32
    %c0_i32_0 = arith.constant 0 : i32
    %c0_i32_1 = arith.constant 0 : i32
    return %c0_i32, %c0_i32_0 : i32, i32
  }
  func.func @transform_21(%arg0: i32) -> (i32, i32) {
    %c0_i32 = arith.constant 0 : i32
    %c0_i32_0 = arith.constant 0 : i32
    %c0_i32_1 = arith.constant 0 : i32
    return %c0_i32, %c0_i32_0 : i32, i32
  }
  func.func @transform_22(%arg0: i32) -> (i32, i32) {
    %c0_i32 = arith.constant 0 : i32
    %c0_i32_0 = arith.constant 0 : i32
    %c0_i32_1 = arith.constant 0 : i32
    return %c0_i32, %c0_i32_0 : i32, i32
  }
  func.func @transform_23(%arg0: i32) -> (i32, i32) {
    %c0_i32 = arith.constant 0 : i32
    %c0_i32_0 = arith.constant 0 : i32
    %c0_i32_1 = arith.constant 0 : i32
    return %c0_i32, %c0_i32_0 : i32, i32
  }
  func.func @transform_24(%arg0: i32) -> (i32, i32) {
    %c0_i32 = arith.constant 0 : i32
    %c0_i32_0 = arith.constant 0 : i32
    %c0_i32_1 = arith.constant 0 : i32
    return %c0_i32, %c0_i32_0 : i32, i32
  }
  func.func @transform_25(%arg0: i32) -> (i32, i32) {
    %c0_i32 = arith.constant 0 : i32
    %c0_i32_0 = arith.constant 0 : i32
    %c0_i32_1 = arith.constant 0 : i32
    return %c0_i32, %c0_i32_0 : i32, i32
  }
  func.func @transform_26(%arg0: i32) -> (i32, i32, i32) {
    %c0_i32 = arith.constant 0 : i32
    %c0_i32_0 = arith.constant 0 : i32
    %c0_i32_1 = arith.constant 0 : i32
    return %arg0, %c0_i32, %c0_i32_0 : i32, i32, i32
  }
}

</mosaic_0001>

<llo_original>
// kernel: tpu_custom_call.1
$region0: #{tpu_custom_call.1}
  #allocation0 [shape = 'u32[]', space=smem, size = 0x4, offset = 0x4, fixed_abs, tag = 'smem constant byte address 0x4 - core index']
  #allocation1 [shape = 'u32[144,128]{1,0:T(1,128)}', space=vmem, size = 0x12000, scoped, tag = 'internal scratch']
  %s0 = inlined_call_operand.vmem [shape: f32[2,4,16,32], index: 0, kind: input, shape index: {}]
  %s1 = inlined_call_operand.vmem [shape: f32[16,9], index: 1, kind: input, shape index: {}]
  %s2 = inlined_call_operand.vmem [shape: f32[32,8], index: 2, kind: input, shape index: {}]
  %s3 = inlined_call_operand.vmem [shape: f32[8,32], index: 3, kind: input, shape index: {}]
  %s4 = inlined_call_operand.vmem [shape: f32[32,8], index: 4, kind: input, shape index: {}]
  %s5 = inlined_call_operand.vmem [shape: f32[72,8], index: 5, kind: input, shape index: {}]
  %s6 = inlined_call_operand.vmem [shape: f32[8,1], index: 6, kind: input, shape index: {}]
  %s7 = inlined_call_operand.vmem [shape: f32[32,32], index: 7, kind: input, shape index: {}]
  %s8 = inlined_call_operand.vmem [shape: f32[4,16], index: 8, kind: input, shape index: {}]
  %s9 = inlined_call_operand.vmem [shape: f32[32,128], index: 9, kind: input, shape index: {}]
  %s10 = inlined_call_operand.vmem [shape: f32[64,4], index: 10, kind: input, shape index: {}]
  %s11 = inlined_call_operand.vmem [shape: f32[4,1], index: 11, kind: input, shape index: {}]
  %s12 = inlined_call_operand.vmem [shape: f32[64,1], index: 12, kind: input, shape index: {}]
  %s13 = inlined_call_operand.vmem [shape: f32[7,128], index: 13, kind: input, shape index: {}]
  %s14 = inlined_call_operand.vmem [shape: f32[32,8], index: 14, kind: input, shape index: {}]
  %s15 = inlined_call_operand.vmem [shape: f32[8,32], index: 15, kind: input, shape index: {}]
  %s16 = inlined_call_operand.vmem [shape: f32[32,8], index: 16, kind: input, shape index: {}]
  %s17 = inlined_call_operand.vmem [shape: f32[72,8], index: 17, kind: input, shape index: {}]
  %s18 = inlined_call_operand.vmem [shape: f32[8,1], index: 18, kind: input, shape index: {}]
  %s19 = inlined_call_operand.vmem [shape: f32[32,32], index: 19, kind: input, shape index: {}]
  %s20 = inlined_call_operand.vmem [shape: f32[4,16], index: 20, kind: input, shape index: {}]
  %s21 = inlined_call_operand.vmem [shape: f32[32,128], index: 21, kind: input, shape index: {}]
  %s22 = inlined_call_operand.vmem [shape: f32[64,4], index: 22, kind: input, shape index: {}]
  %s23 = inlined_call_operand.vmem [shape: f32[4,1], index: 23, kind: input, shape index: {}]
  %s24 = inlined_call_operand.vmem [shape: f32[64,1], index: 24, kind: input, shape index: {}]
  %s25 = inlined_call_operand.vmem [shape: f32[7,128], index: 25, kind: input, shape index: {}]
  %s26 = inlined_call_operand.hbm [shape: f32[2,16,32], index: 26, kind: output, shape index: {}]
  %s27 = sld [smem:[#allocation0]]
  $region137: #{tpu_custom_call.1} parent=0
    _
  %s29 = ssub.s32 1, %s27
  %s30 = scalar_select 0, %s29, %s27
  $region1: #{tpu_custom_call.1} parent=0
    #allocation2 [shape = 'u8[16384]{0}', space=vmem, size = 0x4000, scoped, tag = 'output window, operand 0']
    #allocation3 [shape = 's32[2]{0}', space=sflag, size = 0x8, scoped, tag = 'scoped memory for tpu_custom_call.1']
    %31 = vsyncpa [#allocation3], 0
    %s32 = scalar_lea.sflag [#allocation3], 1
    %33 = vsyncpa %s32, 0
    loop: start=0, step=1, limit=4
    $region2: #{tpu_custom_call.1} parent=1 // loop_pre_header
      _
    $region3: #{tpu_custom_call.1} parent=1 // loop_header
      %s35 = sphi 0, %s39
      %p36 = scmp.ge.s32.totalorder %s35, 4
      %s45 = sphi 0, %s47
      %s48 = sphi 0, %s45
      %s49 = sphi 0, %s48
      %s65 = sphi 0, %s49
      %s69 = sphi 0, %s69
      %s71 = sphi 0, %s69
      %s72 = sphi 0, %s71
      %s86 = sphi 0, %s72
      %s90 = sphi 0, %s90
      %s92 = sphi 0, %s90
      %s93 = sphi 0, %s92
      %s107 = sphi 0, %s93
      %s111 = sphi 0, %s111
      %s113 = sphi 0, %s111
      %s114 = sphi 0, %s113
      %s128 = sphi 0, %s114
      %s132 = sphi 0, %s132
      %s134 = sphi 0, %s132
      %s135 = sphi 0, %s134
      %s149 = sphi 0, %s135
      %s153 = sphi 0, %s153
      %s155 = sphi 0, %s153
      %s156 = sphi 0, %s155
      %s170 = sphi 0, %s156
      %s174 = sphi 0, %s174
      %s176 = sphi 0, %s174
      %s177 = sphi 0, %s176
      %s191 = sphi 0, %s177
      %s195 = sphi 0, %s195
      %s197 = sphi 0, %s195
      %s198 = sphi 0, %s197
      %s212 = sphi 0, %s198
      %s216 = sphi 0, %s216
      %s218 = sphi 0, %s216
      %s219 = sphi 0, %s218
      %s233 = sphi 0, %s219
      %s237 = sphi 0, %s237
      %s239 = sphi 0, %s237
      %s240 = sphi 0, %s239
      %s254 = sphi 0, %s240
      %s258 = sphi 0, %s258
      %s260 = sphi 0, %s258
      %s261 = sphi 0, %s260
      %s275 = sphi 0, %s261
      %s279 = sphi 0, %s279
      %s281 = sphi 0, %s279
      %s282 = sphi 0, %s281
      %s296 = sphi 0, %s282
      %s300 = sphi 0, %s300
      %s302 = sphi 0, %s300
      %s303 = sphi 0, %s302
      %s317 = sphi 0, %s303
      %s321 = sphi 0, %s321
      %s323 = sphi 0, %s321
      %s324 = sphi 0, %s323
      %s338 = sphi 0, %s324
      %s342 = sphi 0, %s342
      %s344 = sphi 0, %s342
      %s345 = sphi 0, %s344
      %s359 = sphi 0, %s345
      %s363 = sphi 0, %s363
      %s365 = sphi 0, %s363
      %s366 = sphi 0, %s365
      %s380 = sphi 0, %s366
      %s384 = sphi 0, %s384
      %s386 = sphi 0, %s384
      %s387 = sphi 0, %s386
      %s401 = sphi 0, %s387
      %s405 = sphi 0, %s405
      %s407 = sphi 0, %s405
      %s408 = sphi 0, %s407
      %s422 = sphi 0, %s408
      %s426 = sphi 0, %s426
      %s428 = sphi 0, %s426
      %s429 = sphi 0, %s428
      %s443 = sphi 0, %s429
      %s447 = sphi 0, %s447
      %s449 = sphi 0, %s447
      %s450 = sphi 0, %s449
      %s464 = sphi 0, %s450
      %s468 = sphi 0, %s468
      %s470 = sphi 0, %s468
      %s471 = sphi 0, %s470
      %s485 = sphi 0, %s471
      %s489 = sphi 0, %s489
      %s491 = sphi 0, %s489
      %s492 = sphi 0, %s491
      %s506 = sphi 0, %s492
      %s510 = sphi 0, %s510
      %s512 = sphi 0, %s510
      %s513 = sphi 0, %s512
      %s527 = sphi 0, %s513
      %s531 = sphi 0, %s531
      %s533 = sphi 0, %s531
      %s534 = sphi 0, %s533
      %s548 = sphi 0, %s534
      %s552 = sphi 0, %s552
      %s554 = sphi 0, %s552
      %s555 = sphi 0, %s554
      %s569 = sphi 0, %s555
      %s573 = sphi 0, %s573
      %s575 = sphi 0, %s573
      %s576 = sphi 0, %s575
      %s590 = sphi 0, %s576
      %s596 = sphi 0, %s598
      %s599 = sphi 0, %s596
      %s600 = sphi 0, %s599
      %s616 = sphi 0, %s600
    $region4: #{tpu_custom_call.1} parent=1 // loop_header_branch
      %38 = sbr.rel (%p36) target = $region8
    $region5: #{tpu_custom_call.1} parent=1 // loop_body
      %s40 = ssub.s32 %s35, 1
      %s41 = ssub.s32 %s35, 2
      %s42 = sadd.s32 %s35, 1
      %s43 = ssub.s32 %s35, %s42
      %p44 = scmp.eq.s32.totalorder %s43, 0
      %s46 = sadd.s32 %s45, 1
      %s47 = scalar_select %p44, %s45, %s46
      %p50 = pneg %p44
      %p51 = scmp.eq.s32.totalorder %s35, 1
      %p52 = por %p50, %p51
      %p53 = scmp.ne.s32.totalorder %s45, %s48
      %p54 = scmp.eq.s32.totalorder %s35, 0
      %p55 = por %p53, %p54
      %p56 = scmp.ne.s32.totalorder %s45, %s48
      %p57 = scmp.eq.s32.totalorder %s40, 1
      %p58 = por %p56, %p57
      %p59 = scmp.ne.s32.totalorder %s48, %s49
      %p60 = scmp.eq.s32.totalorder %s40, 0
      %p61 = por %p59, %p60
      %p62 = scmp.ne.s32.totalorder %s48, %s49
      %p63 = scmp.eq.s32.totalorder %s41, 1
      %p64 = por %p62, %p63
      %p66 = scmp.ne.s32.totalorder %s49, %s65
      %p67 = scmp.eq.s32.totalorder %s41, 0
      %p68 = por %p66, %p67
      %s70 = sadd.s32 %s69, 1
      %p73 = scmp.eq.s32.totalorder %s35, 1
      %p74 = scmp.ne.s32.totalorder %s69, %s71
      %p75 = scmp.eq.s32.totalorder %s35, 0
      %p76 = por %p74, %p75
      %p77 = scmp.ne.s32.totalorder %s69, %s71
      %p78 = scmp.eq.s32.totalorder %s40, 1
      %p79 = por %p77, %p78
      %p80 = scmp.ne.s32.totalorder %s71, %s72
      %p81 = scmp.eq.s32.totalorder %s40, 0
      %p82 = por %p80, %p81
      %p83 = scmp.ne.s32.totalorder %s71, %s72
      %p84 = scmp.eq.s32.totalorder %s41, 1
      %p85 = por %p83, %p84
      %p87 = scmp.ne.s32.totalorder %s72, %s86
      %p88 = scmp.eq.s32.totalorder %s41, 0
      %p89 = por %p87, %p88
      %s91 = sadd.s32 %s90, 1
      %p94 = scmp.eq.s32.totalorder %s35, 1
      %p95 = scmp.ne.s32.totalorder %s90, %s92
      %p96 = scmp.eq.s32.totalorder %s35, 0
      %p97 = por %p95, %p96
      %p98 = scmp.ne.s32.totalorder %s90, %s92
      %p99 = scmp.eq.s32.totalorder %s40, 1
      %p100 = por %p98, %p99
      %p101 = scmp.ne.s32.totalorder %s92, %s93
      %p102 = scmp.eq.s32.totalorder %s40, 0
      %p103 = por %p101, %p102
      %p104 = scmp.ne.s32.totalorder %s92, %s93
      %p105 = scmp.eq.s32.totalorder %s41, 1
      %p106 = por %p104, %p105
      %p108 = scmp.ne.s32.totalorder %s93, %s107
      %p109 = scmp.eq.s32.totalorder %s41, 0
      %p110 = por %p108, %p109
      %s112 = sadd.s32 %s111, 1
      %p115 = scmp.eq.s32.totalorder %s35, 1
      %p116 = scmp.ne.s32.totalorder %s111, %s113
      %p117 = scmp.eq.s32.totalorder %s35, 0
      %p118 = por %p116, %p117
      %p119 = scmp.ne.s32.totalorder %s111, %s113
      %p120 = scmp.eq.s32.totalorder %s40, 1
      %p121 = por %p119, %p120
      %p122 = scmp.ne.s32.totalorder %s113, %s114
      %p123 = scmp.eq.s32.totalorder %s40, 0
      %p124 = por %p122, %p123
      %p125 = scmp.ne.s32.totalorder %s113, %s114
      %p126 = scmp.eq.s32.totalorder %s41, 1
      %p127 = por %p125, %p126
      %p129 = scmp.ne.s32.totalorder %s114, %s128
      %p130 = scmp.eq.s32.totalorder %s41, 0
      %p131 = por %p129, %p130
      %s133 = sadd.s32 %s132, 1
      %p136 = scmp.eq.s32.totalorder %s35, 1
      %p137 = scmp.ne.s32.totalorder %s132, %s134
      %p138 = scmp.eq.s32.totalorder %s35, 0
      %p139 = por %p137, %p138
      %p140 = scmp.ne.s32.totalorder %s132, %s134
      %p141 = scmp.eq.s32.totalorder %s40, 1
      %p142 = por %p140, %p141
      %p143 = scmp.ne.s32.totalorder %s134, %s135
      %p144 = scmp.eq.s32.totalorder %s40, 0
      %p145 = por %p143, %p144
      %p146 = scmp.ne.s32.totalorder %s134, %s135
      %p147 = scmp.eq.s32.totalorder %s41, 1
      %p148 = por %p146, %p147
      %p150 = scmp.ne.s32.totalorder %s135, %s149
      %p151 = scmp.eq.s32.totalorder %s41, 0
      %p152 = por %p150, %p151
      %s154 = sadd.s32 %s153, 1
      %p157 = scmp.eq.s32.totalorder %s35, 1
      %p158 = scmp.ne.s32.totalorder %s153, %s155
      %p159 = scmp.eq.s32.totalorder %s35, 0
      %p160 = por %p158, %p159
      %p161 = scmp.ne.s32.totalorder %s153, %s155
      %p162 = scmp.eq.s32.totalorder %s40, 1
      %p163 = por %p161, %p162
      %p164 = scmp.ne.s32.totalorder %s155, %s156
      %p165 = scmp.eq.s32.totalorder %s40, 0
      %p166 = por %p164, %p165
      %p167 = scmp.ne.s32.totalorder %s155, %s156
      %p168 = scmp.eq.s32.totalorder %s41, 1
      %p169 = por %p167, %p168
      %p171 = scmp.ne.s32.totalorder %s156, %s170
      %p172 = scmp.eq.s32.totalorder %s41, 0
      %p173 = por %p171, %p172
      %s175 = sadd.s32 %s174, 1
      %p178 = scmp.eq.s32.totalorder %s35, 1
      %p179 = scmp.ne.s32.totalorder %s174, %s176
      %p180 = scmp.eq.s32.totalorder %s35, 0
      %p181 = por %p179, %p180
      %p182 = scmp.ne.s32.totalorder %s174, %s176
      %p183 = scmp.eq.s32.totalorder %s40, 1
      %p184 = por %p182, %p183
      %p185 = scmp.ne.s32.totalorder %s176, %s177
      %p186 = scmp.eq.s32.totalorder %s40, 0
      %p187 = por %p185, %p186
      %p188 = scmp.ne.s32.totalorder %s176, %s177
      %p189 = scmp.eq.s32.totalorder %s41, 1
      %p190 = por %p188, %p189
      %p192 = scmp.ne.s32.totalorder %s177, %s191
      %p193 = scmp.eq.s32.totalorder %s41, 0
      %p194 = por %p192, %p193
      %s196 = sadd.s32 %s195, 1
      %p199 = scmp.eq.s32.totalorder %s35, 1
      %p200 = scmp.ne.s32.totalorder %s195, %s197
      %p201 = scmp.eq.s32.totalorder %s35, 0
      %p202 = por %p200, %p201
      %p203 = scmp.ne.s32.totalorder %s195, %s197
      %p204 = scmp.eq.s32.totalorder %s40, 1
      %p205 = por %p203, %p204
      %p206 = scmp.ne.s32.totalorder %s197, %s198
      %p207 = scmp.eq.s32.totalorder %s40, 0
      %p208 = por %p206, %p207
      %p209 = scmp.ne.s32.totalorder %s197, %s198
      %p210 = scmp.eq.s32.totalorder %s41, 1
      %p211 = por %p209, %p210
      %p213 = scmp.ne.s32.totalorder %s198, %s212
      %p214 = scmp.eq.s32.totalorder %s41, 0
      %p215 = por %p213, %p214
      %s217 = sadd.s32 %s216, 1
      %p220 = scmp.eq.s32.totalorder %s35, 1
      %p221 = scmp.ne.s32.totalorder %s216, %s218
      %p222 = scmp.eq.s32.totalorder %s35, 0
      %p223 = por %p221, %p222
      %p224 = scmp.ne.s32.totalorder %s216, %s218
      %p225 = scmp.eq.s32.totalorder %s40, 1
      %p226 = por %p224, %p225
      %p227 = scmp.ne.s32.totalorder %s218, %s219
      %p228 = scmp.eq.s32.totalorder %s40, 0
      %p229 = por %p227, %p228
      %p230 = scmp.ne.s32.totalorder %s218, %s219
      %p231 = scmp.eq.s32.totalorder %s41, 1
      %p232 = por %p230, %p231
      %p234 = scmp.ne.s32.totalorder %s219, %s233
      %p235 = scmp.eq.s32.totalorder %s41, 0
      %p236 = por %p234, %p235
      %s238 = sadd.s32 %s237, 1
      %p241 = scmp.eq.s32.totalorder %s35, 1
      %p242 = scmp.ne.s32.totalorder %s237, %s239
      %p243 = scmp.eq.s32.totalorder %s35, 0
      %p244 = por %p242, %p243
      %p245 = scmp.ne.s32.totalorder %s237, %s239
      %p246 = scmp.eq.s32.totalorder %s40, 1
      %p247 = por %p245, %p246
      %p248 = scmp.ne.s32.totalorder %s239, %s240
      %p249 = scmp.eq.s32.totalorder %s40, 0
      %p250 = por %p248, %p249
      %p251 = scmp.ne.s32.totalorder %s239, %s240
      %p252 = scmp.eq.s32.totalorder %s41, 1
      %p253 = por %p251, %p252
      %p255 = scmp.ne.s32.totalorder %s240, %s254
      %p256 = scmp.eq.s32.totalorder %s41, 0
      %p257 = por %p255, %p256
      %s259 = sadd.s32 %s258, 1
      %p262 = scmp.eq.s32.totalorder %s35, 1
      %p263 = scmp.ne.s32.totalorder %s258, %s260
      %p264 = scmp.eq.s32.totalorder %s35, 0
      %p265 = por %p263, %p264
      %p266 = scmp.ne.s32.totalorder %s258, %s260
      %p267 = scmp.eq.s32.totalorder %s40, 1
      %p268 = por %p266, %p267
      %p269 = scmp.ne.s32.totalorder %s260, %s261
      %p270 = scmp.eq.s32.totalorder %s40, 0
      %p271 = por %p269, %p270
      %p272 = scmp.ne.s32.totalorder %s260, %s261
      %p273 = scmp.eq.s32.totalorder %s41, 1
      %p274 = por %p272, %p273
      %p276 = scmp.ne.s32.totalorder %s261, %s275
      %p277 = scmp.eq.s32.totalorder %s41, 0
      %p278 = por %p276, %p277
      %s280 = sadd.s32 %s279, 1
      %p283 = scmp.eq.s32.totalorder %s35, 1
      %p284 = scmp.ne.s32.totalorder %s279, %s281
      %p285 = scmp.eq.s32.totalorder %s35, 0
      %p286 = por %p284, %p285
      %p287 = scmp.ne.s32.totalorder %s279, %s281
      %p288 = scmp.eq.s32.totalorder %s40, 1
      %p289 = por %p287, %p288
      %p290 = scmp.ne.s32.totalorder %s281, %s282
      %p291 = scmp.eq.s32.totalorder %s40, 0
      %p292 = por %p290, %p291
      %p293 = scmp.ne.s32.totalorder %s281, %s282
      %p294 = scmp.eq.s32.totalorder %s41, 1
      %p295 = por %p293, %p294
      %p297 = scmp.ne.s32.totalorder %s282, %s296
      %p298 = scmp.eq.s32.totalorder %s41, 0
      %p299 = por %p297, %p298
      %s301 = sadd.s32 %s300, 1
      %p304 = scmp.eq.s32.totalorder %s35, 1
      %p305 = scmp.ne.s32.totalorder %s300, %s302
      %p306 = scmp.eq.s32.totalorder %s35, 0
      %p307 = por %p305, %p306
      %p308 = scmp.ne.s32.totalorder %s300, %s302
      %p309 = scmp.eq.s32.totalorder %s40, 1
      %p310 = por %p308, %p309
      %p311 = scmp.ne.s32.totalorder %s302, %s303
      %p312 = scmp.eq.s32.totalorder %s40, 0
      %p313 = por %p311, %p312
      %p314 = scmp.ne.s32.totalorder %s302, %s303
      %p315 = scmp.eq.s32.totalorder %s41, 1
      %p316 = por %p314, %p315
      %p318 = scmp.ne.s32.totalorder %s303, %s317
      %p319 = scmp.eq.s32.totalorder %s41, 0
      %p320 = por %p318, %p319
      %s322 = sadd.s32 %s321, 1
      %p325 = scmp.eq.s32.totalorder %s35, 1
      %p326 = scmp.ne.s32.totalorder %s321, %s323
      %p327 = scmp.eq.s32.totalorder %s35, 0
      %p328 = por %p326, %p327
      %p329 = scmp.ne.s32.totalorder %s321, %s323
      %p330 = scmp.eq.s32.totalorder %s40, 1
      %p331 = por %p329, %p330
      %p332 = scmp.ne.s32.totalorder %s323, %s324
      %p333 = scmp.eq.s32.totalorder %s40, 0
      %p334 = por %p332, %p333
      %p335 = scmp.ne.s32.totalorder %s323, %s324
      %p336 = scmp.eq.s32.totalorder %s41, 1
      %p337 = por %p335, %p336
      %p339 = scmp.ne.s32.totalorder %s324, %s338
      %p340 = scmp.eq.s32.totalorder %s41, 0
      %p341 = por %p339, %p340
      %s343 = sadd.s32 %s342, 1
      %p346 = scmp.eq.s32.totalorder %s35, 1
      %p347 = scmp.ne.s32.totalorder %s342, %s344
      %p348 = scmp.eq.s32.totalorder %s35, 0
      %p349 = por %p347, %p348
      %p350 = scmp.ne.s32.totalorder %s342, %s344
      %p351 = scmp.eq.s32.totalorder %s40, 1
      %p352 = por %p350, %p351
      %p353 = scmp.ne.s32.totalorder %s344, %s345
      %p354 = scmp.eq.s32.totalorder %s40, 0
      %p355 = por %p353, %p354
      %p356 = scmp.ne.s32.totalorder %s344, %s345
      %p357 = scmp.eq.s32.totalorder %s41, 1
      %p358 = por %p356, %p357
      %p360 = scmp.ne.s32.totalorder %s345, %s359
      %p361 = scmp.eq.s32.totalorder %s41, 0
      %p362 = por %p360, %p361
      %s364 = sadd.s32 %s363, 1
      %p367 = scmp.eq.s32.totalorder %s35, 1
      %p368 = scmp.ne.s32.totalorder %s363, %s365
      %p369 = scmp.eq.s32.totalorder %s35, 0
      %p370 = por %p368, %p369
      %p371 = scmp.ne.s32.totalorder %s363, %s365
      %p372 = scmp.eq.s32.totalorder %s40, 1
      %p373 = por %p371, %p372
      %p374 = scmp.ne.s32.totalorder %s365, %s366
      %p375 = scmp.eq.s32.totalorder %s40, 0
      %p376 = por %p374, %p375
      %p377 = scmp.ne.s32.totalorder %s365, %s366
      %p378 = scmp.eq.s32.totalorder %s41, 1
      %p379 = por %p377, %p378
      %p381 = scmp.ne.s32.totalorder %s366, %s380
      %p382 = scmp.eq.s32.totalorder %s41, 0
      %p383 = por %p381, %p382
      %s385 = sadd.s32 %s384, 1
      %p388 = scmp.eq.s32.totalorder %s35, 1
      %p389 = scmp.ne.s32.totalorder %s384, %s386
      %p390 = scmp.eq.s32.totalorder %s35, 0
      %p391 = por %p389, %p390
      %p392 = scmp.ne.s32.totalorder %s384, %s386
      %p393 = scmp.eq.s32.totalorder %s40, 1
      %p394 = por %p392, %p393
      %p395 = scmp.ne.s32.totalorder %s386, %s387
      %p396 = scmp.eq.s32.totalorder %s40, 0
      %p397 = por %p395, %p396
      %p398 = scmp.ne.s32.totalorder %s386, %s387
      %p399 = scmp.eq.s32.totalorder %s41, 1
      %p400 = por %p398, %p399
      %p402 = scmp.ne.s32.totalorder %s387, %s401
      %p403 = scmp.eq.s32.totalorder %s41, 0
      %p404 = por %p402, %p403
      %s406 = sadd.s32 %s405, 1
      %p409 = scmp.eq.s32.totalorder %s35, 1
      %p410 = scmp.ne.s32.totalorder %s405, %s407
      %p411 = scmp.eq.s32.totalorder %s35, 0
      %p412 = por %p410, %p411
      %p413 = scmp.ne.s32.totalorder %s405, %s407
      %p414 = scmp.eq.s32.totalorder %s40, 1
      %p415 = por %p413, %p414
      %p416 = scmp.ne.s32.totalorder %s407, %s408
      %p417 = scmp.eq.s32.totalorder %s40, 0
      %p418 = por %p416, %p417
      %p419 = scmp.ne.s32.totalorder %s407, %s408
      %p420 = scmp.eq.s32.totalorder %s41, 1
      %p421 = por %p419, %p420
      %p423 = scmp.ne.s32.totalorder %s408, %s422
      %p424 = scmp.eq.s32.totalorder %s41, 0
      %p425 = por %p423, %p424
      %s427 = sadd.s32 %s426, 1
      %p430 = scmp.eq.s32.totalorder %s35, 1
      %p431 = scmp.ne.s32.totalorder %s426, %s428
      %p432 = scmp.eq.s32.totalorder %s35, 0
      %p433 = por %p431, %p432
      %p434 = scmp.ne.s32.totalorder %s426, %s428
      %p435 = scmp.eq.s32.totalorder %s40, 1
      %p436 = por %p434, %p435
      %p437 = scmp.ne.s32.totalorder %s428, %s429
      %p438 = scmp.eq.s32.totalorder %s40, 0
      %p439 = por %p437, %p438
      %p440 = scmp.ne.s32.totalorder %s428, %s429
      %p441 = scmp.eq.s32.totalorder %s41, 1
      %p442 = por %p440, %p441
      %p444 = scmp.ne.s32.totalorder %s429, %s443
      %p445 = scmp.eq.s32.totalorder %s41, 0
      %p446 = por %p444, %p445
      %s448 = sadd.s32 %s447, 1
      %p451 = scmp.eq.s32.totalorder %s35, 1
      %p452 = scmp.ne.s32.totalorder %s447, %s449
      %p453 = scmp.eq.s32.totalorder %s35, 0
      %p454 = por %p452, %p453
      %p455 = scmp.ne.s32.totalorder %s447, %s449
      %p456 = scmp.eq.s32.totalorder %s40, 1
      %p457 = por %p455, %p456
      %p458 = scmp.ne.s32.totalorder %s449, %s450
      %p459 = scmp.eq.s32.totalorder %s40, 0
      %p460 = por %p458, %p459
      %p461 = scmp.ne.s32.totalorder %s449, %s450
      %p462 = scmp.eq.s32.totalorder %s41, 1
      %p463 = por %p461, %p462
      %p465 = scmp.ne.s32.totalorder %s450, %s464
      %p466 = scmp.eq.s32.totalorder %s41, 0
      %p467 = por %p465, %p466
      %s469 = sadd.s32 %s468, 1
      %p472 = scmp.eq.s32.totalorder %s35, 1
      %p473 = scmp.ne.s32.totalorder %s468, %s470
      %p474 = scmp.eq.s32.totalorder %s35, 0
      %p475 = por %p473, %p474
      %p476 = scmp.ne.s32.totalorder %s468, %s470
      %p477 = scmp.eq.s32.totalorder %s40, 1
      %p478 = por %p476, %p477
      %p479 = scmp.ne.s32.totalorder %s470, %s471
      %p480 = scmp.eq.s32.totalorder %s40, 0
      %p481 = por %p479, %p480
      %p482 = scmp.ne.s32.totalorder %s470, %s471
      %p483 = scmp.eq.s32.totalorder %s41, 1
      %p484 = por %p482, %p483
      %p486 = scmp.ne.s32.totalorder %s471, %s485
      %p487 = scmp.eq.s32.totalorder %s41, 0
      %p488 = por %p486, %p487
      %s490 = sadd.s32 %s489, 1
      %p493 = scmp.eq.s32.totalorder %s35, 1
      %p494 = scmp.ne.s32.totalorder %s489, %s491
      %p495 = scmp.eq.s32.totalorder %s35, 0
      %p496 = por %p494, %p495
      %p497 = scmp.ne.s32.totalorder %s489, %s491
      %p498 = scmp.eq.s32.totalorder %s40, 1
      %p499 = por %p497, %p498
      %p500 = scmp.ne.s32.totalorder %s491, %s492
      %p501 = scmp.eq.s32.totalorder %s40, 0
      %p502 = por %p500, %p501
      %p503 = scmp.ne.s32.totalorder %s491, %s492
      %p504 = scmp.eq.s32.totalorder %s41, 1
      %p505 = por %p503, %p504
      %p507 = scmp.ne.s32.totalorder %s492, %s506
      %p508 = scmp.eq.s32.totalorder %s41, 0
      %p509 = por %p507, %p508
      %s511 = sadd.s32 %s510, 1
      %p514 = scmp.eq.s32.totalorder %s35, 1
      %p515 = scmp.ne.s32.totalorder %s510, %s512
      %p516 = scmp.eq.s32.totalorder %s35, 0
      %p517 = por %p515, %p516
      %p518 = scmp.ne.s32.totalorder %s510, %s512
      %p519 = scmp.eq.s32.totalorder %s40, 1
      %p520 = por %p518, %p519
      %p521 = scmp.ne.s32.totalorder %s512, %s513
      %p522 = scmp.eq.s32.totalorder %s40, 0
      %p523 = por %p521, %p522
      %p524 = scmp.ne.s32.totalorder %s512, %s513
      %p525 = scmp.eq.s32.totalorder %s41, 1
      %p526 = por %p524, %p525
      %p528 = scmp.ne.s32.totalorder %s513, %s527
      %p529 = scmp.eq.s32.totalorder %s41, 0
      %p530 = por %p528, %p529
      %s532 = sadd.s32 %s531, 1
      %p535 = scmp.eq.s32.totalorder %s35, 1
      %p536 = scmp.ne.s32.totalorder %s531, %s533
      %p537 = scmp.eq.s32.totalorder %s35, 0
      %p538 = por %p536, %p537
      %p539 = scmp.ne.s32.totalorder %s531, %s533
      %p540 = scmp.eq.s32.totalorder %s40, 1
      %p541 = por %p539, %p540
      %p542 = scmp.ne.s32.totalorder %s533, %s534
      %p543 = scmp.eq.s32.totalorder %s40, 0
      %p544 = por %p542, %p543
      %p545 = scmp.ne.s32.totalorder %s533, %s534
      %p546 = scmp.eq.s32.totalorder %s41, 1
      %p547 = por %p545, %p546
      %p549 = scmp.ne.s32.totalorder %s534, %s548
      %p550 = scmp.eq.s32.totalorder %s41, 0
      %p551 = por %p549, %p550
      %s553 = sadd.s32 %s552, 1
      %p556 = scmp.eq.s32.totalorder %s35, 1
      %p557 = scmp.ne.s32.totalorder %s552, %s554
      %p558 = scmp.eq.s32.totalorder %s35, 0
      %p559 = por %p557, %p558
      %p560 = scmp.ne.s32.totalorder %s552, %s554
      %p561 = scmp.eq.s32.totalorder %s40, 1
      %p562 = por %p560, %p561
      %p563 = scmp.ne.s32.totalorder %s554, %s555
      %p564 = scmp.eq.s32.totalorder %s40, 0
      %p565 = por %p563, %p564
      %p566 = scmp.ne.s32.totalorder %s554, %s555
      %p567 = scmp.eq.s32.totalorder %s41, 1
      %p568 = por %p566, %p567
      %p570 = scmp.ne.s32.totalorder %s555, %s569
      %p571 = scmp.eq.s32.totalorder %s41, 0
      %p572 = por %p570, %p571
      %s574 = sadd.s32 %s573, 1
      %p577 = scmp.eq.s32.totalorder %s35, 1
      %p578 = scmp.ne.s32.totalorder %s573, %s575
      %p579 = scmp.eq.s32.totalorder %s35, 0
      %p580 = por %p578, %p579
      %p581 = scmp.ne.s32.totalorder %s573, %s575
      %p582 = scmp.eq.s32.totalorder %s40, 1
      %p583 = por %p581, %p582
      %p584 = scmp.ne.s32.totalorder %s575, %s576
      %p585 = scmp.eq.s32.totalorder %s40, 0
      %p586 = por %p584, %p585
      %p587 = scmp.ne.s32.totalorder %s575, %s576
      %p588 = scmp.eq.s32.totalorder %s41, 1
      %p589 = por %p587, %p588
      %p591 = scmp.ne.s32.totalorder %s576, %s590
      %p592 = scmp.eq.s32.totalorder %s41, 0
      %p593 = por %p591, %p592
      %s594 = ssub.s32 %s35, %s42
      %p595 = scmp.eq.s32.totalorder %s594, 0
      %s597 = sadd.s32 %s596, 1
      %s598 = scalar_select %p595, %s596, %s597
      %p601 = pneg %p595
      %p602 = scmp.eq.s32.totalorder %s35, 1
      %p603 = por %p601, %p602
      %p604 = scmp.ne.s32.totalorder %s596, %s599
      %p605 = scmp.eq.s32.totalorder %s35, 0
      %p606 = por %p604, %p605
      %p607 = scmp.ne.s32.totalorder %s596, %s599
      %p608 = scmp.eq.s32.totalorder %s40, 1
      %p609 = por %p607, %p608
      %p610 = scmp.ne.s32.totalorder %s599, %s600
      %p611 = scmp.eq.s32.totalorder %s40, 0
      %p612 = por %p610, %p611
      %p613 = scmp.ne.s32.totalorder %s599, %s600
      %p614 = scmp.eq.s32.totalorder %s41, 1
      %p615 = por %p613, %p614
      %p617 = scmp.ne.s32.totalorder %s600, %s616
      %p618 = scmp.eq.s32.totalorder %s41, 0
      %p619 = por %p617, %p618
      %p620 = scmp.le.s32.totalorder 1, %s35
      %p621 = scmp.lt.s32.totalorder %s35, 3
      %p622 = pnand %p620, %p621
      %p623 = pneg %p622
      // Predicated region
      $region9: #{tpu_custom_call.1} parent=5 // pred_check
        _
      $region10: #{tpu_custom_call.1} parent=5 // pred_check_branch
        %625 = sbr.rel (%p622) target = $region12
      $region11: #{tpu_custom_call.1} parent=5 // pred_region
        %s626 = ssub.s32 %s35, 1
        // Predicated region
        $region13: #{tpu_custom_call.1} parent=11 // pred_check
          %p627 = pneg %p82
        $region14: #{tpu_custom_call.1} parent=11 // pred_check_branch
          %629 = sbr.rel (%p627) target = $region16
        $region15: #{tpu_custom_call.1} parent=11 // pred_region
          _
        $region16: #{tpu_custom_call.1} parent=11 // pred_fallthru
          _
        // Predicated region
        $region17: #{tpu_custom_call.1} parent=11 // pred_check
          %p630 = pneg %p103
        $region18: #{tpu_custom_call.1} parent=11 // pred_check_branch
          %632 = sbr.rel (%p630) target = $region20
        $region19: #{tpu_custom_call.1} parent=11 // pred_region
          _
        $region20: #{tpu_custom_call.1} parent=11 // pred_fallthru
          _
        // Predicated region
        $region21: #{tpu_custom_call.1} parent=11 // pred_check
          %p633 = pneg %p124
        $region22: #{tpu_custom_call.1} parent=11 // pred_check_branch
          %635 = sbr.rel (%p633) target = $region24
        $region23: #{tpu_custom_call.1} parent=11 // pred_region
          _
        $region24: #{tpu_custom_call.1} parent=11 // pred_fallthru
          _
        // Predicated region
        $region25: #{tpu_custom_call.1} parent=11 // pred_check
          %p636 = pneg %p145
        $region26: #{tpu_custom_call.1} parent=11 // pred_check_branch
          %638 = sbr.rel (%p636) target = $region28
        $region27: #{tpu_custom_call.1} parent=11 // pred_region
          _
        $region28: #{tpu_custom_call.1} parent=11 // pred_fallthru
          _
        // Predicated region
        $region29: #{tpu_custom_call.1} parent=11 // pred_check
          %p639 = pneg %p166
        $region30: #{tpu_custom_call.1} parent=11 // pred_check_branch
          %641 = sbr.rel (%p639) target = $region32
        $region31: #{tpu_custom_call.1} parent=11 // pred_region
          _
        $region32: #{tpu_custom_call.1} parent=11 // pred_fallthru
          _
        // Predicated region
        $region33: #{tpu_custom_call.1} parent=11 // pred_check
          %p642 = pneg %p187
        $region34: #{tpu_custom_call.1} parent=11 // pred_check_branch
          %644 = sbr.rel (%p642) target = $region36
        $region35: #{tpu_custom_call.1} parent=11 // pred_region
          _
        $region36: #{tpu_custom_call.1} parent=11 // pred_fallthru
          _
        // Predicated region
        $region37: #{tpu_custom_call.1} parent=11 // pred_check
          %p645 = pneg %p208
        $region38: #{tpu_custom_call.1} parent=11 // pred_check_branch
          %647 = sbr.rel (%p645) target = $region40
        $region39: #{tpu_custom_call.1} parent=11 // pred_region
          _
        $region40: #{tpu_custom_call.1} parent=11 // pred_fallthru
          _
        // Predicated region
        $region41: #{tpu_custom_call.1} parent=11 // pred_check
          %p648 = pneg %p229
        $region42: #{tpu_custom_call.1} parent=11 // pred_check_branch
          %650 = sbr.rel (%p648) target = $region44
        $region43: #{tpu_custom_call.1} parent=11 // pred_region
          _
        $region44: #{tpu_custom_call.1} parent=11 // pred_fallthru
          _
        // Predicated region
        $region45: #{tpu_custom_call.1} parent=11 // pred_check
          %p651 = pneg %p250
        $region46: #{tpu_custom_call.1} parent=11 // pred_check_branch
          %653 = sbr.rel (%p651) target = $region48
        $region47: #{tpu_custom_call.1} parent=11 // pred_region
          _
        $region48: #{tpu_custom_call.1} parent=11 // pred_fallthru
          _
        // Predicated region
        $region49: #{tpu_custom_call.1} parent=11 // pred_check
          %p654 = pneg %p271
        $region50: #{tpu_custom_call.1} parent=11 // pred_check_branch
          %656 = sbr.rel (%p654) target = $region52
        $region51: #{tpu_custom_call.1} parent=11 // pred_region
          _
        $region52: #{tpu_custom_call.1} parent=11 // pred_fallthru
          _
        // Predicated region
        $region53: #{tpu_custom_call.1} parent=11 // pred_check
          %p657 = pneg %p292
        $region54: #{tpu_custom_call.1} parent=11 // pred_check_branch
          %659 = sbr.rel (%p657) target = $region56
        $region55: #{tpu_custom_call.1} parent=11 // pred_region
          _
        $region56: #{tpu_custom_call.1} parent=11 // pred_fallthru
          _
        // Predicated region
        $region57: #{tpu_custom_call.1} parent=11 // pred_check
          %p660 = pneg %p313
        $region58: #{tpu_custom_call.1} parent=11 // pred_check_branch
          %662 = sbr.rel (%p660) target = $region60
        $region59: #{tpu_custom_call.1} parent=11 // pred_region
          _
        $region60: #{tpu_custom_call.1} parent=11 // pred_fallthru
          _
        // Predicated region
        $region61: #{tpu_custom_call.1} parent=11 // pred_check
          %p663 = pneg %p334
        $region62: #{tpu_custom_call.1} parent=11 // pred_check_branch
          %665 = sbr.rel (%p663) target = $region64
        $region63: #{tpu_custom_call.1} parent=11 // pred_region
          _
        $region64: #{tpu_custom_call.1} parent=11 // pred_fallthru
          _
        // Predicated region
        $region65: #{tpu_custom_call.1} parent=11 // pred_check
          %p666 = pneg %p355
        $region66: #{tpu_custom_call.1} parent=11 // pred_check_branch
          %668 = sbr.rel (%p666) target = $region68
        $region67: #{tpu_custom_call.1} parent=11 // pred_region
          _
        $region68: #{tpu_custom_call.1} parent=11 // pred_fallthru
          _
        // Predicated region
        $region69: #{tpu_custom_call.1} parent=11 // pred_check
          %p669 = pneg %p376
        $region70: #{tpu_custom_call.1} parent=11 // pred_check_branch
          %671 = sbr.rel (%p669) target = $region72
        $region71: #{tpu_custom_call.1} parent=11 // pred_region
          _
        $region72: #{tpu_custom_call.1} parent=11 // pred_fallthru
          _
        // Predicated region
        $region73: #{tpu_custom_call.1} parent=11 // pred_check
          %p672 = pneg %p397
        $region74: #{tpu_custom_call.1} parent=11 // pred_check_branch
          %674 = sbr.rel (%p672) target = $region76
        $region75: #{tpu_custom_call.1} parent=11 // pred_region
          _
        $region76: #{tpu_custom_call.1} parent=11 // pred_fallthru
          _
        // Predicated region
        $region77: #{tpu_custom_call.1} parent=11 // pred_check
          %p675 = pneg %p418
        $region78: #{tpu_custom_call.1} parent=11 // pred_check_branch
          %677 = sbr.rel (%p675) target = $region80
        $region79: #{tpu_custom_call.1} parent=11 // pred_region
          _
        $region80: #{tpu_custom_call.1} parent=11 // pred_fallthru
          _
        // Predicated region
        $region81: #{tpu_custom_call.1} parent=11 // pred_check
          %p678 = pneg %p439
        $region82: #{tpu_custom_call.1} parent=11 // pred_check_branch
          %680 = sbr.rel (%p678) target = $region84
        $region83: #{tpu_custom_call.1} parent=11 // pred_region
          _
        $region84: #{tpu_custom_call.1} parent=11 // pred_fallthru
          _
        // Predicated region
        $region85: #{tpu_custom_call.1} parent=11 // pred_check
          %p681 = pneg %p460
        $region86: #{tpu_custom_call.1} parent=11 // pred_check_branch
          %683 = sbr.rel (%p681) target = $region88
        $region87: #{tpu_custom_call.1} parent=11 // pred_region
          _
        $region88: #{tpu_custom_call.1} parent=11 // pred_fallthru
          _
        // Predicated region
        $region89: #{tpu_custom_call.1} parent=11 // pred_check
          %p684 = pneg %p481
        $region90: #{tpu_custom_call.1} parent=11 // pred_check_branch
          %686 = sbr.rel (%p684) target = $region92
        $region91: #{tpu_custom_call.1} parent=11 // pred_region
          _
        $region92: #{tpu_custom_call.1} parent=11 // pred_fallthru
          _
        // Predicated region
        $region93: #{tpu_custom_call.1} parent=11 // pred_check
          %p687 = pneg %p502
        $region94: #{tpu_custom_call.1} parent=11 // pred_check_branch
          %689 = sbr.rel (%p687) target = $region96
        $region95: #{tpu_custom_call.1} parent=11 // pred_region
          _
        $region96: #{tpu_custom_call.1} parent=11 // pred_fallthru
          _
        // Predicated region
        $region97: #{tpu_custom_call.1} parent=11 // pred_check
          %p690 = pneg %p523
        $region98: #{tpu_custom_call.1} parent=11 // pred_check_branch
          %692 = sbr.rel (%p690) target = $region100
        $region99: #{tpu_custom_call.1} parent=11 // pred_region
          _
        $region100: #{tpu_custom_call.1} parent=11 // pred_fallthru
          _
        // Predicated region
        $region101: #{tpu_custom_call.1} parent=11 // pred_check
          %p693 = pneg %p544
        $region102: #{tpu_custom_call.1} parent=11 // pred_check_branch
          %695 = sbr.rel (%p693) target = $region104
        $region103: #{tpu_custom_call.1} parent=11 // pred_region
          _
        $region104: #{tpu_custom_call.1} parent=11 // pred_fallthru
          _
        // Predicated region
        $region105: #{tpu_custom_call.1} parent=11 // pred_check
          %p696 = pneg %p565
        $region106: #{tpu_custom_call.1} parent=11 // pred_check_branch
          %698 = sbr.rel (%p696) target = $region108
        $region107: #{tpu_custom_call.1} parent=11 // pred_region
          _
        $region108: #{tpu_custom_call.1} parent=11 // pred_fallthru
          _
        // Predicated region
        $region109: #{tpu_custom_call.1} parent=11 // pred_check
          %p699 = pneg %p586
        $region110: #{tpu_custom_call.1} parent=11 // pred_check_branch
          %701 = sbr.rel (%p699) target = $region112
        $region111: #{tpu_custom_call.1} parent=11 // pred_region
          _
        $region112: #{tpu_custom_call.1} parent=11 // pred_fallthru
          _
      $region12: #{tpu_custom_call.1} parent=5 // pred_fallthru
        _
      %p702 = scmp.lt.s32.totalorder %s35, 2
      // Predicated region
      $region113: #{tpu_custom_call.1} parent=5 // pred_check
        %p703 = pneg %p702
      $region114: #{tpu_custom_call.1} parent=5 // pred_check_branch
        %705 = sbr.rel (%p703) target = $region116
      $region115: #{tpu_custom_call.1} parent=5 // pred_region
        // Predicated region
        $region117: #{tpu_custom_call.1} parent=115 // pred_check
          %p706 = pneg %p55
        $region118: #{tpu_custom_call.1} parent=115 // pred_check_branch
          %708 = sbr.rel (%p706) target = $region120
        $region119: #{tpu_custom_call.1} parent=115 // pred_region
          %p709 = scmp.lt.s32.totalorder %s35, 1
          %s710 = scalar_select %p709, %s35, 1
          %s711 = smul.addr %s710, 8
          %s712 = smul.addr %s711, 8
          %s713 = scalar_lea.vmem %s0, %s712
        $region120: #{tpu_custom_call.1} parent=115 // pred_fallthru
          _
      $region116: #{tpu_custom_call.1} parent=5 // pred_fallthru
        _
      %p714 = scmp.le.s32.totalorder 1, %s35
      %p715 = scmp.lt.s32.totalorder %s35, 3
      %p716 = pnand %p714, %p715
      %p717 = pneg %p716
      // Predicated region
      $region121: #{tpu_custom_call.1} parent=5 // pred_check
        _
      $region122: #{tpu_custom_call.1} parent=5 // pred_check_branch
        %719 = sbr.rel (%p716) target = $region124
      $region123: #{tpu_custom_call.1} parent=5 // pred_region
        %s720 = ssub.s32 %s35, 1
        %p721 = scmp.lt.s32.totalorder %s40, 1
        %s722 = scalar_select %p721, %s40, 1
        %s723 = smul.addr %s722, 8
        %s724 = smul.addr %s723, 8
        %s725 = scalar_lea.vmem %s0, %s724
        %p726 = pneg %p61
        %p727 = pneg %p58
        %p728 = pneg %p82
        %p729 = pneg %p79
        %p730 = pneg %p103
        %p731 = pneg %p100
        %p732 = pneg %p124
        %p733 = pneg %p121
        %p734 = pneg %p145
        %p735 = pneg %p142
        %p736 = pneg %p166
        %p737 = pneg %p163
        %p738 = pneg %p187
        %p739 = pneg %p184
        %p740 = pneg %p208
        %p741 = pneg %p205
        %p742 = pneg %p229
        %p743 = pneg %p226
        %p744 = pneg %p250
        %p745 = pneg %p247
        %p746 = pneg %p271
        %p747 = pneg %p268
        %p748 = pneg %p292
        %p749 = pneg %p289
        %p750 = pneg %p313
        %p751 = pneg %p310
        %p752 = pneg %p334
        %p753 = pneg %p331
        %p754 = pneg %p355
        %p755 = pneg %p352
        %p756 = pneg %p376
        %p757 = pneg %p373
        %p758 = pneg %p397
        %p759 = pneg %p394
        %p760 = pneg %p418
        %p761 = pneg %p415
        %p762 = pneg %p439
        %p763 = pneg %p436
        %p764 = pneg %p460
        %p765 = pneg %p457
        %p766 = pneg %p481
        %p767 = pneg %p478
        %p768 = pneg %p502
        %p769 = pneg %p499
        %p770 = pneg %p523
        %p771 = pneg %p520
        %p772 = pneg %p544
        %p773 = pneg %p541
        %p774 = pneg %p565
        %p775 = pneg %p562
        %p776 = pneg %p586
        %p777 = pneg %p583
        %p778 = pneg %p612
        %p779 = pneg %p609
        %s780 = sand.u32 %s599, 1
        %s781 = scalar_lea.sflag [#allocation3], %s780
        %s782 = sand.u32 %s599, 1
        %s783 = smul.addr %s782, 16
        %s784 = scalar_lea.vmem [#allocation2], %s783
        %p785 = scmp.lt.s32.totalorder %s40, 1
        %s786 = scalar_select %p785, %s40, 1
        %s787 = smul.addr %s786, 8
        %s788 = smul.addr %s787, 8
        %s789 = scalar_lea.vmem %s0, %s788
        %v790 = vld [vmem:[%s2] sm:$0xff]
        %v791 = vld [vmem:[%s2 + $0x8] sm:$0xff]
        %v792 = vld [vmem:[%s2 + $0x10] sm:$0xff]
        %v793 = vld [vmem:[%s2 + $0x18] sm:$0xff]
        %v794 = vld [vmem:[%s3] sm:$0xff]
        %v795 = vld [vmem:[%s4] sm:$0xff]
        %v796 = vld [vmem:[%s4 + $0x8] sm:$0xff]
        %v797 = vld [vmem:[%s4 + $0x10] sm:$0xff]
        %v798 = vld [vmem:[%s4 + $0x18] sm:$0xff]
        %v799 = vld [vmem:[%s5] sm:$0xff]
        %v800 = vld [vmem:[%s5 + $0x8] sm:$0xff]
        %v801 = vld [vmem:[%s5 + $0x10] sm:$0xff]
        %v802 = vld [vmem:[%s5 + $0x18] sm:$0xff]
        %v803 = vld [vmem:[%s5 + $0x20] sm:$0xff]
        %v804 = vld [vmem:[%s5 + $0x28] sm:$0xff]
        %v805 = vld [vmem:[%s5 + $0x30] sm:$0xff]
        %v806 = vld [vmem:[%s5 + $0x38] sm:$0xff]
        %v807 = vld [vmem:[%s5 + $0x40] sm:$0xff]
        %v808 = vld [vmem:[%s6] sm:$0xff]
        %v809 = vld [vmem:[%s7] sm:$0xff]
        %v810 = vld [vmem:[%s7 + $0x8] sm:$0xff]
        %v811 = vld [vmem:[%s7 + $0x10] sm:$0xff]
        %v812 = vld [vmem:[%s7 + $0x18] sm:$0xff]
        %v813 = vld [vmem:[%s8] sm:$0xf]
        %v814 = vld [vmem:[%s9] sm:$0xff]
        %v815 = vld [vmem:[%s9 + $0x8] sm:$0xff]
        %v816 = vld [vmem:[%s9 + $0x10] sm:$0xff]
        %v817 = vld [vmem:[%s9 + $0x18] sm:$0xff]
        %v818 = vld [vmem:[%s10] sm:$0xff]
        %v819 = vld [vmem:[%s10 + $0x8] sm:$0xff]
        %v820 = vld [vmem:[%s10 + $0x10] sm:$0xff]
        %v821 = vld [vmem:[%s10 + $0x18] sm:$0xff]
        %v822 = vld [vmem:[%s10 + $0x20] sm:$0xff]
        %v823 = vld [vmem:[%s10 + $0x28] sm:$0xff]
        %v824 = vld [vmem:[%s10 + $0x30] sm:$0xff]
        %v825 = vld [vmem:[%s10 + $0x38] sm:$0xff]
        %v826 = vld [vmem:[%s11] sm:$0xf]
        %v827 = vld [vmem:[%s12] sm:$0xff]
        %v828 = vld [vmem:[%s12 + $0x8] sm:$0xff]
        %v829 = vld [vmem:[%s12 + $0x10] sm:$0xff]
        %v830 = vld [vmem:[%s12 + $0x18] sm:$0xff]
        %v831 = vld [vmem:[%s12 + $0x20] sm:$0xff]
        %v832 = vld [vmem:[%s12 + $0x28] sm:$0xff]
        %v833 = vld [vmem:[%s12 + $0x30] sm:$0xff]
        %v834 = vld [vmem:[%s12 + $0x38] sm:$0xff]
        %v835 = vld [vmem:[%s13] sm:$0x7f]
        %v836 = vld [vmem:[%s14] sm:$0xff]
        %v837 = vld [vmem:[%s14 + $0x8] sm:$0xff]
        %v838 = vld [vmem:[%s14 + $0x10] sm:$0xff]
        %v839 = vld [vmem:[%s14 + $0x18] sm:$0xff]
        %v840 = vld [vmem:[%s15] sm:$0xff]
        %v841 = vld [vmem:[%s16] sm:$0xff]
        %v842 = vld [vmem:[%s16 + $0x8] sm:$0xff]
        %v843 = vld [vmem:[%s16 + $0x10] sm:$0xff]
        %v844 = vld [vmem:[%s16 + $0x18] sm:$0xff]
        %v845 = vld [vmem:[%s17] sm:$0xff]
        %v846 = vld [vmem:[%s17 + $0x8] sm:$0xff]
        %v847 = vld [vmem:[%s17 + $0x10] sm:$0xff]
        %v848 = vld [vmem:[%s17 + $0x18] sm:$0xff]
        %v849 = vld [vmem:[%s17 + $0x20] sm:$0xff]
        %v850 = vld [vmem:[%s17 + $0x28] sm:$0xff]
        %v851 = vld [vmem:[%s17 + $0x30] sm:$0xff]
        %v852 = vld [vmem:[%s17 + $0x38] sm:$0xff]
        %v853 = vld [vmem:[%s17 + $0x40] sm:$0xff]
        %v854 = vld [vmem:[%s18] sm:$0xff]
        %v855 = vld [vmem:[%s19] sm:$0xff]
        %v856 = vld [vmem:[%s19 + $0x8] sm:$0xff]
        %v857 = vld [vmem:[%s19 + $0x10] sm:$0xff]
        %v858 = vld [vmem:[%s19 + $0x18] sm:$0xff]
        %v859 = vld [vmem:[%s20] sm:$0xf]
        %v860 = vld [vmem:[%s21] sm:$0xff]
        %v861 = vld [vmem:[%s21 + $0x8] sm:$0xff]
        %v862 = vld [vmem:[%s21 + $0x10] sm:$0xff]
        %v863 = vld [vmem:[%s21 + $0x18] sm:$0xff]
        %v864 = vld [vmem:[%s22] sm:$0xff]
        %v865 = vld [vmem:[%s22 + $0x8] sm:$0xff]
        %v866 = vld [vmem:[%s22 + $0x10] sm:$0xff]
        %v867 = vld [vmem:[%s22 + $0x18] sm:$0xff]
        %v868 = vld [vmem:[%s22 + $0x20] sm:$0xff]
        %v869 = vld [vmem:[%s22 + $0x28] sm:$0xff]
        %v870 = vld [vmem:[%s22 + $0x30] sm:$0xff]
        %v871 = vld [vmem:[%s22 + $0x38] sm:$0xff]
        %v872 = vld [vmem:[%s23] sm:$0xf]
        %v873 = vld [vmem:[%s24] sm:$0xff]
        %v874 = vld [vmem:[%s24 + $0x8] sm:$0xff]
        %v875 = vld [vmem:[%s24 + $0x10] sm:$0xff]
        %v876 = vld [vmem:[%s24 + $0x18] sm:$0xff]
        %v877 = vld [vmem:[%s24 + $0x20] sm:$0xff]
        %v878 = vld [vmem:[%s24 + $0x28] sm:$0xff]
        %v879 = vld [vmem:[%s24 + $0x30] sm:$0xff]
        %v880 = vld [vmem:[%s24 + $0x38] sm:$0xff]
        %v881 = vld [vmem:[%s25] sm:$0x7f]
        %v882 = vld [vmem:[%s789] sm:$0xff]
        %v883 = vld [vmem:[%s789 + $0x8] sm:$0xff]
        %v884 = vld [vmem:[%s789 + $0x10] sm:$0xff]
        %v885 = vld [vmem:[%s789 + $0x18] sm:$0xff]
        %v886 = vld [vmem:[%s789 + $0x20] sm:$0xff]
        %v887 = vld [vmem:[%s789 + $0x28] sm:$0xff]
        %v888 = vld [vmem:[%s789 + $0x30] sm:$0xff]
        %v889 = vld [vmem:[%s789 + $0x38] sm:$0xff]
        %v890 = vld [vmem:[%s1] sm:$0xff]
        %v891 = vld [vmem:[%s1 + $0x8] sm:$0xff]
        %vm892 = vcmask 261120
        %v893 = vsel %vm892, %v882, 0.0
        %v894 = vsel %vm892, %v884, 0.0
        %v895 = vadd.f32 %v893, %v894
        %v896 = vsel %vm892, %v886, 0.0
        %v897 = vadd.f32 %v895, %v896
        %v898 = vsel %vm892, %v888, 0.0
        %v899 = vadd.f32 %v897, %v898
        %v900 = vsel %vm892, %v883, 0.0
        %v901 = vsel %vm892, %v885, 0.0
        %v902 = vadd.f32 %v900, %v901
        %v903 = vsel %vm892, %v887, 0.0
        %v904 = vadd.f32 %v902, %v903
        %v905 = vsel %vm892, %v889, 0.0
        %v906 = vadd.f32 %v904, %v905
        %v907 = vsel %vm892, %v899, 0.0
        %v908 = vsel %vm892, %v906, 0.0
        %v909 = vadd.f32 %v907, %v908
        %v910 = vrot.slane %v909, 4
        %v911 = vadd.f32 %v909, %v910
        %v912 = vrot.slane %v911, 2
        %v913 = vadd.f32 %v911, %v912
        %v914 = vrot.slane %v913, 1
        %v915 = vadd.f32 %v913, %v914
        %v916 = vrcp.pop 16.0
        %v917 = vmul.f32 %v915, %v916
        %v919 = vsel %vm892, %v917, 0
        %921 = vmatprep.subr.mxu0 0.0
        %922 = vmatpush1.msra.mxu0 %v790
        %923 = vmatprep.subr.mxu0 0.0
        %924 = vmatpush1.msra.mxu0 %v791
        %925 = vmatprep.subr.mxu0 0.0
        %926 = vmatpush1.msra.mxu0 %v792
        %927 = vmatprep.subr.mxu0 0.0
        %928 = vmatpush1.msra.mxu0 %v793
        %929 = vmatprep.subr.mxu0 0.0
        %930 = vmatpush1.msra.mxu0 0.0
        %931 = vmatprep.subr.mxu0 0.0
        %932 = vmatpush1.msra.mxu0 0.0
        %933 = vmatprep.subr.mxu0 0.0
        %934 = vmatpush1.msra.mxu0 0.0
        %935 = vmatprep.subr.mxu0 0.0
        %936 = vmatpush1.msra.mxu0 0.0
        %937 = vmatprep.subr.mxu0 0.0
        %938 = vmatpush1.msra.mxu0 0.0
        %939 = vmatprep.subr.mxu0 0.0
        %940 = vmatpush1.msra.mxu0 0.0
        %941 = vmatprep.subr.mxu0 0.0
        %942 = vmatpush1.msra.mxu0 0.0
        %943 = vmatprep.subr.mxu0 0.0
        %944 = vmatpush1.msra.mxu0 0.0
        %945 = vmatprep.subr.mxu0 0.0
        %946 = vmatpush1.msra.mxu0 0.0
        %947 = vmatprep.subr.mxu0 0.0
        %948 = vmatpush1.msra.mxu0 0.0
        %949 = vmatprep.subr.mxu0 0.0
        %950 = vmatpush1.msra.mxu0 0.0
        %951 = vmatprep.subr.mxu0 0.0
        %952 = vmatpush1.msra.mxu0 0.0
        %953 = vmatprep.subr.mxu0 0.0
        %954 = vmatpush1.msra.mxu0 0.0
        %955 = vmatprep.subr.mxu0 0.0
        %956 = vmatpush1.msra.mxu0 0.0
        %957 = vmatprep.subr.mxu0 0.0
        %958 = vmatpush1.msra.mxu0 0.0
        %959 = vmatprep.subr.mxu0 0.0
        %960 = vmatpush1.msra.mxu0 0.0
        %961 = vmatprep.subr.mxu0 0.0
        %962 = vmatpush1.msra.mxu0 0.0
        %963 = vmatprep.subr.mxu0 0.0
        %964 = vmatpush1.msra.mxu0 0.0
        %965 = vmatprep.subr.mxu0 0.0
        %966 = vmatpush1.msra.mxu0 0.0
        %967 = vmatprep.subr.mxu0 0.0
        %968 = vmatpush1.msra.mxu0 0.0
        %969 = vmatprep.subr.mxu0 0.0
        %970 = vmatpush1.msra.mxu0 0.0
        %971 = vmatprep.subr.mxu0 0.0
        %972 = vmatpush1.msra.mxu0 0.0
        %973 = vmatprep.subr.mxu0 0.0
        %974 = vmatpush1.msra.mxu0 0.0
        %975 = vmatprep.subr.mxu0 0.0
        %976 = vmatpush1.msra.mxu0 0.0
        %977 = vmatprep.subr.mxu0 0.0
        %978 = vmatpush1.msra.mxu0 0.0
        %979 = vmatprep.subr.mxu0 0.0
        %980 = vmatpush1.msra.mxu0 0.0
        %981 = vmatprep.subr.mxu0 0.0
        %982 = vmatpush1.msra.mxu0 0.0
        %983 = vmatprep.subr.mxu0 0.0
        %984 = vmatpush1.msra.mxu0 0.0
        %985 = vmatprep.mubr.f32.mxu0 0.0
        %986 = vmatmul.mubr.f32.gmra.mrb[0].mxu0 %v919
        %v987 = vpop.f32.mrb[0].mxu0
        %v988 = vadd.f32 %v835, %v987
        %v989 = vpop.f32.mrb[0].mxu0
        %990 = vdwg.mxu0
        %v991 = vmax.f32 %v988, 0.0
        %v993 = vrot.slane %v835, 1
        %vm995 = vcmask 64512
        %v997 = vsel %vm995, %v991, 0
        %999 = vmatprep.subr.mxu0 0.0
        %1000 = vmatpush1.msra.mxu0 %v794
        %1001 = vmatprep.subr.mxu0 0.0
        %1002 = vmatpush1.msra.mxu0 0.0
        %1003 = vmatprep.subr.mxu0 0.0
        %1004 = vmatpush1.msra.mxu0 0.0
        %1005 = vmatprep.subr.mxu0 0.0
        %1006 = vmatpush1.msra.mxu0 0.0
        %1007 = vmatprep.subr.mxu0 0.0
        %1008 = vmatpush1.msra.mxu0 0.0
        %1009 = vmatprep.subr.mxu0 0.0
        %1010 = vmatpush1.msra.mxu0 0.0
        %1011 = vmatprep.subr.mxu0 0.0
        %1012 = vmatpush1.msra.mxu0 0.0
        %1013 = vmatprep.subr.mxu0 0.0
        %1014 = vmatpush1.msra.mxu0 0.0
        %1015 = vmatprep.subr.mxu0 0.0
        %1016 = vmatpush1.msra.mxu0 0.0
        %1017 = vmatprep.subr.mxu0 0.0
        %1018 = vmatpush1.msra.mxu0 0.0
        %1019 = vmatprep.subr.mxu0 0.0
        %1020 = vmatpush1.msra.mxu0 0.0
        %1021 = vmatprep.subr.mxu0 0.0
        %1022 = vmatpush1.msra.mxu0 0.0
        %1023 = vmatprep.subr.mxu0 0.0
        %1024 = vmatpush1.msra.mxu0 0.0
        %1025 = vmatprep.subr.mxu0 0.0
        %1026 = vmatpush1.msra.mxu0 0.0
        %1027 = vmatprep.subr.mxu0 0.0
        %1028 = vmatpush1.msra.mxu0 0.0
        %1029 = vmatprep.subr.mxu0 0.0
        %1030 = vmatpush1.msra.mxu0 0.0
        %1031 = vmatprep.subr.mxu0 0.0
        %1032 = vmatpush1.msra.mxu0 0.0
        %1033 = vmatprep.subr.mxu0 0.0
        %1034 = vmatpush1.msra.mxu0 0.0
        %1035 = vmatprep.subr.mxu0 0.0
        %1036 = vmatpush1.msra.mxu0 0.0
        %1037 = vmatprep.subr.mxu0 0.0
        %1038 = vmatpush1.msra.mxu0 0.0
        %1039 = vmatprep.subr.mxu0 0.0
        %1040 = vmatpush1.msra.mxu0 0.0
        %1041 = vmatprep.subr.mxu0 0.0
        %1042 = vmatpush1.msra.mxu0 0.0
        %1043 = vmatprep.subr.mxu0 0.0
        %1044 = vmatpush1.msra.mxu0 0.0
        %1045 = vmatprep.subr.mxu0 0.0
        %1046 = vmatpush1.msra.mxu0 0.0
        %1047 = vmatprep.subr.mxu0 0.0
        %1048 = vmatpush1.msra.mxu0 0.0
        %1049 = vmatprep.subr.mxu0 0.0
        %1050 = vmatpush1.msra.mxu0 0.0
        %1051 = vmatprep.subr.mxu0 0.0
        %1052 = vmatpush1.msra.mxu0 0.0
        %1053 = vmatprep.subr.mxu0 0.0
        %1054 = vmatpush1.msra.mxu0 0.0
        %1055 = vmatprep.subr.mxu0 0.0
        %1056 = vmatpush1.msra.mxu0 0.0
        %1057 = vmatprep.subr.mxu0 0.0
        %1058 = vmatpush1.msra.mxu0 0.0
        %1059 = vmatprep.subr.mxu0 0.0
        %1060 = vmatpush1.msra.mxu0 0.0
        %1061 = vmatprep.subr.mxu0 0.0
        %1062 = vmatpush1.msra.mxu0 0.0
        %1063 = vmatprep.mubr.f32.mxu0 0.0
        %1064 = vmatmul.mubr.f32.gmra.mrb[0].mxu0 %v997
        %v1065 = vpop.f32.mrb[0].mxu0
        %v1066 = vadd.f32 %v993, %v1065
        %v1067 = vpop.f32.mrb[0].mxu0
        %1068 = vdwg.mxu0
        %v1069 = vsub.f32 0.0, %v1066
        %v1070 = vmul.f32 %v1069, 1.442695
        %v1071 = vpow.pop %v1070
        %v1072 = vadd.f32 %v1071, 1.0
        %v1073 = vrcp.pop %v1072
        %v1074 = vmul.f32 1.0, %v1073
        %v1075 = vrot.slane %v835, 5
        %v1078 = vsel %vm892, %v1074, 0
        %1080 = vmatprep.subr.mxu0 0.0
        %1081 = vmatpush1.msra.mxu0 %v809
        %1082 = vmatprep.subr.mxu0 0.0
        %1083 = vmatpush1.msra.mxu0 %v810
        %1084 = vmatprep.subr.mxu0 0.0
        %1085 = vmatpush1.msra.mxu0 %v811
        %1086 = vmatprep.subr.mxu0 0.0
        %1087 = vmatpush1.msra.mxu0 %v812
        %1088 = vmatprep.subr.mxu0 0.0
        %1089 = vmatpush1.msra.mxu0 0.0
        %1090 = vmatprep.subr.mxu0 0.0
        %1091 = vmatpush1.msra.mxu0 0.0
        %1092 = vmatprep.subr.mxu0 0.0
        %1093 = vmatpush1.msra.mxu0 0.0
        %1094 = vmatprep.subr.mxu0 0.0
        %1095 = vmatpush1.msra.mxu0 0.0
        %1096 = vmatprep.subr.mxu0 0.0
        %1097 = vmatpush1.msra.mxu0 0.0
        %1098 = vmatprep.subr.mxu0 0.0
        %1099 = vmatpush1.msra.mxu0 0.0
        %1100 = vmatprep.subr.mxu0 0.0
        %1101 = vmatpush1.msra.mxu0 0.0
        %1102 = vmatprep.subr.mxu0 0.0
        %1103 = vmatpush1.msra.mxu0 0.0
        %1104 = vmatprep.subr.mxu0 0.0
        %1105 = vmatpush1.msra.mxu0 0.0
        %1106 = vmatprep.subr.mxu0 0.0
        %1107 = vmatpush1.msra.mxu0 0.0
        %1108 = vmatprep.subr.mxu0 0.0
        %1109 = vmatpush1.msra.mxu0 0.0
        %1110 = vmatprep.subr.mxu0 0.0
        %1111 = vmatpush1.msra.mxu0 0.0
        %1112 = vmatprep.subr.mxu0 0.0
        %1113 = vmatpush1.msra.mxu0 0.0
        %1114 = vmatprep.subr.mxu0 0.0
        %1115 = vmatpush1.msra.mxu0 0.0
        %1116 = vmatprep.subr.mxu0 0.0
        %1117 = vmatpush1.msra.mxu0 0.0
        %1118 = vmatprep.subr.mxu0 0.0
        %1119 = vmatpush1.msra.mxu0 0.0
        %1120 = vmatprep.subr.mxu0 0.0
        %1121 = vmatpush1.msra.mxu0 0.0
        %1122 = vmatprep.subr.mxu0 0.0
        %1123 = vmatpush1.msra.mxu0 0.0
        %1124 = vmatprep.subr.mxu0 0.0
        %1125 = vmatpush1.msra.mxu0 0.0
        %1126 = vmatprep.subr.mxu0 0.0
        %1127 = vmatpush1.msra.mxu0 0.0
        %1128 = vmatprep.subr.mxu0 0.0
        %1129 = vmatpush1.msra.mxu0 0.0
        %1130 = vmatprep.subr.mxu0 0.0
        %1131 = vmatpush1.msra.mxu0 0.0
        %1132 = vmatprep.subr.mxu0 0.0
        %1133 = vmatpush1.msra.mxu0 0.0
        %1134 = vmatprep.subr.mxu0 0.0
        %1135 = vmatpush1.msra.mxu0 0.0
        %1136 = vmatprep.subr.mxu0 0.0
        %1137 = vmatpush1.msra.mxu0 0.0
        %1138 = vmatprep.subr.mxu0 0.0
        %1139 = vmatpush1.msra.mxu0 0.0
        %1140 = vmatprep.subr.mxu0 0.0
        %1141 = vmatpush1.msra.mxu0 0.0
        %1142 = vmatprep.subr.mxu0 0.0
        %1143 = vmatpush1.msra.mxu0 0.0
        %1144 = vmatprep.mubr.f32.mxu0 0.0
        %1145 = vmatmul.mubr.f32.gmra.mrb[0].mxu0 %v1078
        %v1146 = vpop.f32.mrb[0].mxu0
        %v1147 = vadd.f32 %v1075, %v1146
        %v1148 = vpop.f32.mrb[0].mxu0
        %1149 = vdwg.mxu0
        %v1150 = vsub.f32 0.0, %v1147
        %v1151 = vmul.f32 %v1150, 1.442695
        %v1152 = vpow.pop %v1151
        %v1153 = vadd.f32 %v1152, 1.0
        %v1154 = vrcp.pop %v1153
        %v1155 = vmul.f32 1.0, %v1154
        %v1156 = vlaneseq
        %v1157 = vshrl.u32 %v1156, 7
        %v1158 = vsub.s32 2, %v1157
        %v1159 = vrot.slane %v835, %v1158
        %v1161 = vsel %vm892, %v899, 0
        %v1164 = vsel %vm892, %v906, 0
        %1166 = vmatprep.subr.mxu0 0.0
        %1167 = vmatpush1.msra.mxu0 %v795
        %1168 = vmatprep.subr.mxu0 0.0
        %1169 = vmatpush1.msra.mxu0 %v796
        %1170 = vmatprep.subr.mxu0 0.0
        %1171 = vmatpush1.msra.mxu0 %v797
        %1172 = vmatprep.subr.mxu0 0.0
        %1173 = vmatpush1.msra.mxu0 %v798
        %1174 = vmatprep.subr.mxu0 0.0
        %1175 = vmatpush1.msra.mxu0 0.0
        %1176 = vmatprep.subr.mxu0 0.0
        %1177 = vmatpush1.msra.mxu0 0.0
        %1178 = vmatprep.subr.mxu0 0.0
        %1179 = vmatpush1.msra.mxu0 0.0
        %1180 = vmatprep.subr.mxu0 0.0
        %1181 = vmatpush1.msra.mxu0 0.0
        %1182 = vmatprep.subr.mxu0 0.0
        %1183 = vmatpush1.msra.mxu0 0.0
        %1184 = vmatprep.subr.mxu0 0.0
        %1185 = vmatpush1.msra.mxu0 0.0
        %1186 = vmatprep.subr.mxu0 0.0
        %1187 = vmatpush1.msra.mxu0 0.0
        %1188 = vmatprep.subr.mxu0 0.0
        %1189 = vmatpush1.msra.mxu0 0.0
        %1190 = vmatprep.subr.mxu0 0.0
        %1191 = vmatpush1.msra.mxu0 0.0
        %1192 = vmatprep.subr.mxu0 0.0
        %1193 = vmatpush1.msra.mxu0 0.0
        %1194 = vmatprep.subr.mxu0 0.0
        %1195 = vmatpush1.msra.mxu0 0.0
        %1196 = vmatprep.subr.mxu0 0.0
        %1197 = vmatpush1.msra.mxu0 0.0
        %1198 = vmatprep.subr.mxu0 0.0
        %1199 = vmatpush1.msra.mxu0 0.0
        %1200 = vmatprep.subr.mxu0 0.0
        %1201 = vmatpush1.msra.mxu0 0.0
        %1202 = vmatprep.subr.mxu0 0.0
        %1203 = vmatpush1.msra.mxu0 0.0
        %1204 = vmatprep.subr.mxu0 0.0
        %1205 = vmatpush1.msra.mxu0 0.0
        %1206 = vmatprep.subr.mxu0 0.0
        %1207 = vmatpush1.msra.mxu0 0.0
        %1208 = vmatprep.subr.mxu0 0.0
        %1209 = vmatpush1.msra.mxu0 0.0
        %1210 = vmatprep.subr.mxu0 0.0
        %1211 = vmatpush1.msra.mxu0 0.0
        %1212 = vmatprep.subr.mxu0 0.0
        %1213 = vmatpush1.msra.mxu0 0.0
        %1214 = vmatprep.subr.mxu0 0.0
        %1215 = vmatpush1.msra.mxu0 0.0
        %1216 = vmatprep.subr.mxu0 0.0
        %1217 = vmatpush1.msra.mxu0 0.0
        %1218 = vmatprep.subr.mxu0 0.0
        %1219 = vmatpush1.msra.mxu0 0.0
        %1220 = vmatprep.subr.mxu0 0.0
        %1221 = vmatpush1.msra.mxu0 0.0
        %1222 = vmatprep.subr.mxu0 0.0
        %1223 = vmatpush1.msra.mxu0 0.0
        %1224 = vmatprep.subr.mxu0 0.0
        %1225 = vmatpush1.msra.mxu0 0.0
        %1226 = vmatprep.subr.mxu0 0.0
        %1227 = vmatpush1.msra.mxu0 0.0
        %1228 = vmatprep.subr.mxu0 0.0
        %1229 = vmatpush1.msra.mxu0 0.0
        %1230 = vmatprep.mubr.f32.mxu0 0.0
        %1231 = vmatmul.mubr.f32.gmra.mrb[0].mxu0 %v1161
        %v1232 = vpop.f32.mrb[0].mxu0
        %v1233 = vadd.f32 %v1159, %v1232
        %v1234 = vpop.f32.mrb[0].mxu0
        %1235 = vmatprep.mubr.f32.mxu0 0.0
        %1236 = vmatmul.mubr.f32.gmra.mrb[0].mxu0 %v1164
        %v1237 = vpop.f32.mrb[0].mxu0
        %v1238 = vadd.f32 %v1159, %v1237
        %v1239 = vpop.f32.mrb[0].mxu0
        %1240 = vdwg.mxu0
        %v1241 = vmax.f32 %v1233, 0.0
        %v1242 = vmax.f32 %v1238, 0.0
        %v1244 = vrot.slane %v1241, 6
        %vm1246 = vcmask 1041408
        %v1247 = vsel %vm1246, 0.0, %v1244
        %1249 = vset.pattern.permute.xlu0 0
        %1250 = vperm.xlu0 %1249, %v890
        %v1251 = vpop.permute.xlu0 %1250
        %1254 = vset.pattern.permute.xlu0 0
        %1255 = vperm.xlu0 %1254, %v891
        %v1256 = vpop.permute.xlu0 %1255
        %v1258 = vmul.f32 %v1251, 0.0
        %v1259 = vmul.f32 %v1247, %v1256
        %1260 = vset.pattern.permute.xlu0 1
        %1261 = vperm.xlu0 %1260, %v890
        %v1262 = vpop.permute.xlu0 %1261
        %1264 = vset.pattern.permute.xlu0 1
        %1265 = vperm.xlu0 %1264, %v891
        %v1266 = vpop.permute.xlu0 %1265
        %v1268 = vmul.f32 %v1262, 0.0
        %v1269 = vmul.f32 %v1241, %v1266
        %vm1271 = vcmask 1045504
        %v1272 = vrot.slane %v1241, 2
        %v1273 = vrot.slane %v1242, 2
        %v1274 = vsel %vm1271, %v1272, %v1273
        %v1277 = vsel %vm1271, 0.0, %v1272
        %1278 = vset.pattern.permute.xlu0 2
        %1279 = vperm.xlu0 %1278, %v890
        %v1280 = vpop.permute.xlu0 %1279
        %1282 = vset.pattern.permute.xlu0 2
        %1283 = vperm.xlu0 %1282, %v891
        %v1284 = vpop.permute.xlu0 %1283
        %v1286 = vmul.f32 %v1277, %v1280
        %v1287 = vmul.f32 %v1274, %v1284
        %v1288 = vrot.slane %v1242, 6
        %v1289 = vsel %vm1246, %v1244, %v1288
        %1291 = vset.pattern.permute.xlu0 3
        %1292 = vperm.xlu0 %1291, %v890
        %v1293 = vpop.permute.xlu0 %1292
        %1295 = vset.pattern.permute.xlu0 3
        %1296 = vperm.xlu0 %1295, %v891
        %v1297 = vpop.permute.xlu0 %1296
        %v1299 = vmul.f32 %v1247, %v1293
        %v1300 = vmul.f32 %v1289, %v1297
        %1301 = vset.pattern.permute.xlu0 4
        %1302 = vperm.xlu0 %1301, %v890
        %v1303 = vpop.permute.xlu0 %1302
        %1305 = vset.pattern.permute.xlu0 4
        %1306 = vperm.xlu0 %1305, %v891
        %v1307 = vpop.permute.xlu0 %1306
        %v1309 = vmul.f32 %v1241, %v1303
        %v1310 = vmul.f32 %v1242, %v1307
        %v1312 = vsel %vm1271, %v1273, 0.0
        %1313 = vset.pattern.permute.xlu0 5
        %1314 = vperm.xlu0 %1313, %v890
        %v1315 = vpop.permute.xlu0 %1314
        %1317 = vset.pattern.permute.xlu0 5
        %1318 = vperm.xlu0 %1317, %v891
        %v1319 = vpop.permute.xlu0 %1318
        %v1321 = vmul.f32 %v1274, %v1315
        %v1322 = vmul.f32 %v1312, %v1319
        %v1324 = vsel %vm1246, %v1288, 0.0
        %1325 = vset.pattern.permute.xlu0 6
        %1326 = vperm.xlu0 %1325, %v890
        %v1327 = vpop.permute.xlu0 %1326
        %1329 = vset.pattern.permute.xlu0 6
        %1330 = vperm.xlu0 %1329, %v891
        %v1331 = vpop.permute.xlu0 %1330
        %v1333 = vmul.f32 %v1289, %v1327
        %v1334 = vmul.f32 %v1324, %v1331
        %1335 = vset.pattern.permute.xlu0 7
        %1336 = vperm.xlu0 %1335, %v890
        %v1337 = vpop.permute.xlu0 %1336
        %1339 = vset.pattern.permute.xlu0 7
        %1340 = vperm.xlu0 %1339, %v891
        %v1341 = vpop.permute.xlu0 %1340
        %v1343 = vmul.f32 %v1242, %v1337
        %v1344 = vmul.f32 %v1341, 0.0
        %1345 = vset.pattern.permute.xlu0 8
        %1346 = vperm.xlu0 %1345, %v890
        %v1347 = vpop.permute.xlu0 %1346
        %1349 = vset.pattern.permute.xlu0 8
        %1350 = vperm.xlu0 %1349, %v891
        %v1351 = vpop.permute.xlu0 %1350
        %v1353 = vmul.f32 %v1312, %v1347
        %v1354 = vmul.f32 %v1351, 0.0
        %1357 = vrot.lane.b32.xlu0 %v1268, 8
        %v1358 = vpop.permute.xlu0 %1357
        %1359 = vrot.lane.b32.xlu0 %v1269, 8
        %v1360 = vpop.permute.xlu0 %1359
        %1365 = vrot.lane.b32.xlu0 %v1286, 16
        %v1366 = vpop.permute.xlu0 %1365
        %1367 = vrot.lane.b32.xlu0 %v1287, 16
        %v1368 = vpop.permute.xlu0 %1367
        %1373 = vrot.lane.b32.xlu0 %v1299, 24
        %v1374 = vpop.permute.xlu0 %1373
        %1375 = vrot.lane.b32.xlu0 %v1300, 24
        %v1376 = vpop.permute.xlu0 %1375
        %1381 = vrot.lane.b32.xlu0 %v1309, 32
        %v1382 = vpop.permute.xlu0 %1381
        %1383 = vrot.lane.b32.xlu0 %v1310, 32
        %v1384 = vpop.permute.xlu0 %1383
        %1389 = vrot.lane.b32.xlu0 %v1321, 40
        %v1390 = vpop.permute.xlu0 %1389
        %1391 = vrot.lane.b32.xlu0 %v1322, 40
        %v1392 = vpop.permute.xlu0 %1391
        %1397 = vrot.lane.b32.xlu0 %v1333, 48
        %v1398 = vpop.permute.xlu0 %1397
        %1399 = vrot.lane.b32.xlu0 %v1334, 48
        %v1400 = vpop.permute.xlu0 %1399
        %1405 = vrot.lane.b32.xlu0 %v1343, 56
        %v1406 = vpop.permute.xlu0 %1405
        %1407 = vrot.lane.b32.xlu0 %v1344, 56
        %v1408 = vpop.permute.xlu0 %1407
        %1413 = vrot.lane.b32.xlu0 %v1353, 64
        %v1414 = vpop.permute.xlu0 %1413
        %1415 = vrot.lane.b32.xlu0 %v1354, 64
        %v1416 = vpop.permute.xlu0 %1415
        %v1419 = vsel %vm995, %v1258, %v1358
        %v1420 = vsel %vm995, %v1259, %v1360
        %vm1421 = vcmask 130048
        %v1422 = vsel %vm1421, %v1419, %v1366
        %v1423 = vsel %vm1421, %v1420, %v1368
        %vm1424 = vcmask 195584
        %v1425 = vsel %vm1424, %v1422, %v1374
        %v1426 = vsel %vm1424, %v1423, %v1376
        %v1427 = vsel %vm892, %v1425, %v1382
        %v1428 = vsel %vm892, %v1426, %v1384
        %vm1429 = vcmask 326656
        %v1430 = vsel %vm1429, %v1427, %v1390
        %v1431 = vsel %vm1429, %v1428, %v1392
        %vm1432 = vcmask 392192
        %v1433 = vsel %vm1432, %v1430, %v1398
        %v1434 = vsel %vm1432, %v1431, %v1400
        %vm1435 = vcmask 457728
        %v1436 = vsel %vm1435, %v1433, %v1406
        %v1437 = vsel %vm1435, %v1434, %v1408
        %vm1438 = vcmask 523264
        %v1439 = vsel %vm1438, %v1436, %v1414
        %v1440 = vsel %vm1438, %v1437, %v1416
        %v1441 = vlaneseq
        %v1442 = vshrl.u32 %v1441, 7
        %v1443 = vsub.s32 3, %v1442
        %v1444 = vrot.slane %v835, %v1443
        %vm1445 = vcmask 588800
        %v1447 = vsel %vm1445, %v1439, 0
        %v1450 = vsel %vm1445, %v1440, 0
        %1452 = vmatprep.subr.mxu0 0.0
        %1453 = vmatpush1.msra.mxu0 %v799
        %1454 = vmatprep.subr.mxu0 0.0
        %1455 = vmatpush1.msra.mxu0 %v800
        %1456 = vmatprep.subr.mxu0 0.0
        %1457 = vmatpush1.msra.mxu0 %v801
        %1458 = vmatprep.subr.mxu0 0.0
        %1459 = vmatpush1.msra.mxu0 %v802
        %1460 = vmatprep.subr.mxu0 0.0
        %1461 = vmatpush1.msra.mxu0 %v803
        %1462 = vmatprep.subr.mxu0 0.0
        %1463 = vmatpush1.msra.mxu0 %v804
        %1464 = vmatprep.subr.mxu0 0.0
        %1465 = vmatpush1.msra.mxu0 %v805
        %1466 = vmatprep.subr.mxu0 0.0
        %1467 = vmatpush1.msra.mxu0 %v806
        %1468 = vmatprep.subr.mxu0 0.0
        %1469 = vmatpush1.msra.mxu0 %v807
        %1470 = vmatprep.subr.mxu0 0.0
        %1471 = vmatpush1.msra.mxu0 0.0
        %1472 = vmatprep.subr.mxu0 0.0
        %1473 = vmatpush1.msra.mxu0 0.0
        %1474 = vmatprep.subr.mxu0 0.0
        %1475 = vmatpush1.msra.mxu0 0.0
        %1476 = vmatprep.subr.mxu0 0.0
        %1477 = vmatpush1.msra.mxu0 0.0
        %1478 = vmatprep.subr.mxu0 0.0
        %1479 = vmatpush1.msra.mxu0 0.0
        %1480 = vmatprep.subr.mxu0 0.0
        %1481 = vmatpush1.msra.mxu0 0.0
        %1482 = vmatprep.subr.mxu0 0.0
        %1483 = vmatpush1.msra.mxu0 0.0
        %1484 = vmatprep.subr.mxu0 0.0
        %1485 = vmatpush1.msra.mxu0 0.0
        %1486 = vmatprep.subr.mxu0 0.0
        %1487 = vmatpush1.msra.mxu0 0.0
        %1488 = vmatprep.subr.mxu0 0.0
        %1489 = vmatpush1.msra.mxu0 0.0
        %1490 = vmatprep.subr.mxu0 0.0
        %1491 = vmatpush1.msra.mxu0 0.0
        %1492 = vmatprep.subr.mxu0 0.0
        %1493 = vmatpush1.msra.mxu0 0.0
        %1494 = vmatprep.subr.mxu0 0.0
        %1495 = vmatpush1.msra.mxu0 0.0
        %1496 = vmatprep.subr.mxu0 0.0
        %1497 = vmatpush1.msra.mxu0 0.0
        %1498 = vmatprep.subr.mxu0 0.0
        %1499 = vmatpush1.msra.mxu0 0.0
        %1500 = vmatprep.subr.mxu0 0.0
        %1501 = vmatpush1.msra.mxu0 0.0
        %1502 = vmatprep.subr.mxu0 0.0
        %1503 = vmatpush1.msra.mxu0 0.0
        %1504 = vmatprep.subr.mxu0 0.0
        %1505 = vmatpush1.msra.mxu0 0.0
        %1506 = vmatprep.subr.mxu0 0.0
        %1507 = vmatpush1.msra.mxu0 0.0
        %1508 = vmatprep.subr.mxu0 0.0
        %1509 = vmatpush1.msra.mxu0 0.0
        %1510 = vmatprep.subr.mxu0 0.0
        %1511 = vmatpush1.msra.mxu0 0.0
        %1512 = vmatprep.subr.mxu0 0.0
        %1513 = vmatpush1.msra.mxu0 0.0
        %1514 = vmatprep.subr.mxu0 0.0
        %1515 = vmatpush1.msra.mxu0 0.0
        %1516 = vmatprep.mubr.f32.mxu0 0.0
        %1517 = vmatmul.mubr.f32.gmra.mrb[0].mxu0 %v1447
        %v1518 = vpop.f32.mrb[0].mxu0
        %v1519 = vadd.f32 %v1444, %v1518
        %v1520 = vpop.f32.mrb[0].mxu0
        %1521 = vmatprep.mubr.f32.mxu0 0.0
        %1522 = vmatmul.mubr.f32.gmra.mrb[0].mxu0 %v1450
        %v1523 = vpop.f32.mrb[0].mxu0
        %v1524 = vadd.f32 %v1444, %v1523
        %v1525 = vpop.f32.mrb[0].mxu0
        %1526 = vdwg.mxu0
        %v1527 = vmax.f32 %v1519, 0.0
        %v1528 = vmax.f32 %v1524, 0.0
        %v1529 = vlaneseq
        %v1530 = vshrl.u32 %v1529, 7
        %v1531 = vsub.s32 4, %v1530
        %v1532 = vrot.slane %v835, %v1531
        %v1534 = vsel %vm995, %v1527, 0
        %v1537 = vsel %vm995, %v1528, 0
        %1539 = vmatprep.subr.mxu0 0.0
        %1540 = vmatpush1.msra.mxu0 %v808
        %1541 = vmatprep.subr.mxu0 0.0
        %1542 = vmatpush1.msra.mxu0 0.0
        %1543 = vmatprep.subr.mxu0 0.0
        %1544 = vmatpush1.msra.mxu0 0.0
        %1545 = vmatprep.subr.mxu0 0.0
        %1546 = vmatpush1.msra.mxu0 0.0
        %1547 = vmatprep.subr.mxu0 0.0
        %1548 = vmatpush1.msra.mxu0 0.0
        %1549 = vmatprep.subr.mxu0 0.0
        %1550 = vmatpush1.msra.mxu0 0.0
        %1551 = vmatprep.subr.mxu0 0.0
        %1552 = vmatpush1.msra.mxu0 0.0
        %1553 = vmatprep.subr.mxu0 0.0
        %1554 = vmatpush1.msra.mxu0 0.0
        %1555 = vmatprep.subr.mxu0 0.0
        %1556 = vmatpush1.msra.mxu0 0.0
        %1557 = vmatprep.subr.mxu0 0.0
        %1558 = vmatpush1.msra.mxu0 0.0
        %1559 = vmatprep.subr.mxu0 0.0
        %1560 = vmatpush1.msra.mxu0 0.0
        %1561 = vmatprep.subr.mxu0 0.0
        %1562 = vmatpush1.msra.mxu0 0.0
        %1563 = vmatprep.subr.mxu0 0.0
        %1564 = vmatpush1.msra.mxu0 0.0
        %1565 = vmatprep.subr.mxu0 0.0
        %1566 = vmatpush1.msra.mxu0 0.0
        %1567 = vmatprep.subr.mxu0 0.0
        %1568 = vmatpush1.msra.mxu0 0.0
        %1569 = vmatprep.subr.mxu0 0.0
        %1570 = vmatpush1.msra.mxu0 0.0
        %1571 = vmatprep.subr.mxu0 0.0
        %1572 = vmatpush1.msra.mxu0 0.0
        %1573 = vmatprep.subr.mxu0 0.0
        %1574 = vmatpush1.msra.mxu0 0.0
        %1575 = vmatprep.subr.mxu0 0.0
        %1576 = vmatpush1.msra.mxu0 0.0
        %1577 = vmatprep.subr.mxu0 0.0
        %1578 = vmatpush1.msra.mxu0 0.0
        %1579 = vmatprep.subr.mxu0 0.0
        %1580 = vmatpush1.msra.mxu0 0.0
        %1581 = vmatprep.subr.mxu0 0.0
        %1582 = vmatpush1.msra.mxu0 0.0
        %1583 = vmatprep.subr.mxu0 0.0
        %1584 = vmatpush1.msra.mxu0 0.0
        %1585 = vmatprep.subr.mxu0 0.0
        %1586 = vmatpush1.msra.mxu0 0.0
        %1587 = vmatprep.subr.mxu0 0.0
        %1588 = vmatpush1.msra.mxu0 0.0
        %1589 = vmatprep.subr.mxu0 0.0
        %1590 = vmatpush1.msra.mxu0 0.0
        %1591 = vmatprep.subr.mxu0 0.0
        %1592 = vmatpush1.msra.mxu0 0.0
        %1593 = vmatprep.subr.mxu0 0.0
        %1594 = vmatpush1.msra.mxu0 0.0
        %1595 = vmatprep.subr.mxu0 0.0
        %1596 = vmatpush1.msra.mxu0 0.0
        %1597 = vmatprep.subr.mxu0 0.0
        %1598 = vmatpush1.msra.mxu0 0.0
        %1599 = vmatprep.subr.mxu0 0.0
        %1600 = vmatpush1.msra.mxu0 0.0
        %1601 = vmatprep.subr.mxu0 0.0
        %1602 = vmatpush1.msra.mxu0 0.0
        %1603 = vmatprep.mubr.f32.mxu0 0.0
        %1604 = vmatmul.mubr.f32.gmra.mrb[0].mxu0 %v1534
        %v1605 = vpop.f32.mrb[0].mxu0
        %v1606 = vadd.f32 %v1532, %v1605
        %v1607 = vpop.f32.mrb[0].mxu0
        %1608 = vmatprep.mubr.f32.mxu0 0.0
        %1609 = vmatmul.mubr.f32.gmra.mrb[0].mxu0 %v1537
        %v1610 = vpop.f32.mrb[0].mxu0
        %v1611 = vadd.f32 %v1532, %v1610
        %v1612 = vpop.f32.mrb[0].mxu0
        %1613 = vdwg.mxu0
        %v1614 = vsub.f32 0.0, %v1606
        %v1615 = vsub.f32 0.0, %v1611
        %v1616 = vmul.f32 %v1614, 1.442695
        %v1617 = vpow.pop %v1616
        %v1618 = vmul.f32 %v1615, 1.442695
        %v1619 = vpow.pop %v1618
        %v1620 = vadd.f32 %v1617, 1.0
        %v1621 = vadd.f32 %v1619, 1.0
        %v1622 = vrcp.pop %v1620
        %v1623 = vmul.f32 1.0, %v1622
        %v1624 = vrcp.pop %v1621
        %v1625 = vmul.f32 1.0, %v1624
        %v1627 = vsel %vm1421, %v813, 0
        %1629 = vmatprep.subr.mxu0 0.0
        %1630 = vmatpush1.msra.mxu0 %v1623
        %1631 = vmatprep.subr.mxu0 0.0
        %1632 = vmatpush1.msra.mxu0 %v1625
        %1633 = vmatprep.subr.mxu0 0.0
        %1634 = vmatpush1.msra.mxu0 0.0
        %1635 = vmatprep.subr.mxu0 0.0
        %1636 = vmatpush1.msra.mxu0 0.0
        %1637 = vmatprep.subr.mxu0 0.0
        %1638 = vmatpush1.msra.mxu0 0.0
        %1639 = vmatprep.subr.mxu0 0.0
        %1640 = vmatpush1.msra.mxu0 0.0
        %1641 = vmatprep.subr.mxu0 0.0
        %1642 = vmatpush1.msra.mxu0 0.0
        %1643 = vmatprep.subr.mxu0 0.0
        %1644 = vmatpush1.msra.mxu0 0.0
        %1645 = vmatprep.subr.mxu0 0.0
        %1646 = vmatpush1.msra.mxu0 0.0
        %1647 = vmatprep.subr.mxu0 0.0
        %1648 = vmatpush1.msra.mxu0 0.0
        %1649 = vmatprep.subr.mxu0 0.0
        %1650 = vmatpush1.msra.mxu0 0.0
        %1651 = vmatprep.subr.mxu0 0.0
        %1652 = vmatpush1.msra.mxu0 0.0
        %1653 = vmatprep.subr.mxu0 0.0
        %1654 = vmatpush1.msra.mxu0 0.0
        %1655 = vmatprep.subr.mxu0 0.0
        %1656 = vmatpush1.msra.mxu0 0.0
        %1657 = vmatprep.subr.mxu0 0.0
        %1658 = vmatpush1.msra.mxu0 0.0
        %1659 = vmatprep.subr.mxu0 0.0
        %1660 = vmatpush1.msra.mxu0 0.0
        %1661 = vmatprep.subr.mxu0 0.0
        %1662 = vmatpush1.msra.mxu0 0.0
        %1663 = vmatprep.subr.mxu0 0.0
        %1664 = vmatpush1.msra.mxu0 0.0
        %1665 = vmatprep.subr.mxu0 0.0
        %1666 = vmatpush1.msra.mxu0 0.0
        %1667 = vmatprep.subr.mxu0 0.0
        %1668 = vmatpush1.msra.mxu0 0.0
        %1669 = vmatprep.subr.mxu0 0.0
        %1670 = vmatpush1.msra.mxu0 0.0
        %1671 = vmatprep.subr.mxu0 0.0
        %1672 = vmatpush1.msra.mxu0 0.0
        %1673 = vmatprep.subr.mxu0 0.0
        %1674 = vmatpush1.msra.mxu0 0.0
        %1675 = vmatprep.subr.mxu0 0.0
        %1676 = vmatpush1.msra.mxu0 0.0
        %1677 = vmatprep.subr.mxu0 0.0
        %1678 = vmatpush1.msra.mxu0 0.0
        %1679 = vmatprep.subr.mxu0 0.0
        %1680 = vmatpush1.msra.mxu0 0.0
        %1681 = vmatprep.subr.mxu0 0.0
        %1682 = vmatpush1.msra.mxu0 0.0
        %1683 = vmatprep.subr.mxu0 0.0
        %1684 = vmatpush1.msra.mxu0 0.0
        %1685 = vmatprep.subr.mxu0 0.0
        %1686 = vmatpush1.msra.mxu0 0.0
        %1687 = vmatprep.subr.mxu0 0.0
        %1688 = vmatpush1.msra.mxu0 0.0
        %1689 = vmatprep.subr.mxu0 0.0
        %1690 = vmatpush1.msra.mxu0 0.0
        %1691 = vmatprep.subr.mxu0 0.0
        %1692 = vmatpush1.msra.mxu0 0.0
        %1693 = vmatprep.mubr.f32.mxu0 0.0
        %1694 = vmatmul.mubr.f32.gmra.mrb[0].mxu0 %v1627
        %v1695 = vpop.f32.mrb[0].mxu0
        %v1696 = vadd.f32 %v826, %v1695
        %v1697 = vpop.f32.mrb[0].mxu0
        %1698 = vdwg.mxu0
        %v1699 = vsub.f32 0.0, %v1696
        %v1700 = vmul.f32 %v1699, 1.442695
        %v1701 = vpow.pop %v1700
        %v1702 = vadd.f32 %v1701, 1.0
        %v1703 = vrcp.pop %v1702
        %v1704 = vmul.f32 1.0, %v1703
        %v1705 = vrot.slane %v835, 6
        %v1708 = vsel %vm892, %v1155, 0
        %1710 = vmatprep.subr.mxu0 0.0
        %1711 = vmatpush1.msra.mxu0 %v814
        %1712 = vmatprep.subr.mxu0 0.0
        %1713 = vmatpush1.msra.mxu0 %v815
        %1714 = vmatprep.subr.mxu0 0.0
        %1715 = vmatpush1.msra.mxu0 %v816
        %1716 = vmatprep.subr.mxu0 0.0
        %1717 = vmatpush1.msra.mxu0 %v817
        %1718 = vmatprep.subr.mxu0 0.0
        %1719 = vmatpush1.msra.mxu0 0.0
        %1720 = vmatprep.subr.mxu0 0.0
        %1721 = vmatpush1.msra.mxu0 0.0
        %1722 = vmatprep.subr.mxu0 0.0
        %1723 = vmatpush1.msra.mxu0 0.0
        %1724 = vmatprep.subr.mxu0 0.0
        %1725 = vmatpush1.msra.mxu0 0.0
        %1726 = vmatprep.subr.mxu0 0.0
        %1727 = vmatpush1.msra.mxu0 0.0
        %1728 = vmatprep.subr.mxu0 0.0
        %1729 = vmatpush1.msra.mxu0 0.0
        %1730 = vmatprep.subr.mxu0 0.0
        %1731 = vmatpush1.msra.mxu0 0.0
        %1732 = vmatprep.subr.mxu0 0.0
        %1733 = vmatpush1.msra.mxu0 0.0
        %1734 = vmatprep.subr.mxu0 0.0
        %1735 = vmatpush1.msra.mxu0 0.0
        %1736 = vmatprep.subr.mxu0 0.0
        %1737 = vmatpush1.msra.mxu0 0.0
        %1738 = vmatprep.subr.mxu0 0.0
        %1739 = vmatpush1.msra.mxu0 0.0
        %1740 = vmatprep.subr.mxu0 0.0
        %1741 = vmatpush1.msra.mxu0 0.0
        %1742 = vmatprep.subr.mxu0 0.0
        %1743 = vmatpush1.msra.mxu0 0.0
        %1744 = vmatprep.subr.mxu0 0.0
        %1745 = vmatpush1.msra.mxu0 0.0
        %1746 = vmatprep.subr.mxu0 0.0
        %1747 = vmatpush1.msra.mxu0 0.0
        %1748 = vmatprep.subr.mxu0 0.0
        %1749 = vmatpush1.msra.mxu0 0.0
        %1750 = vmatprep.subr.mxu0 0.0
        %1751 = vmatpush1.msra.mxu0 0.0
        %1752 = vmatprep.subr.mxu0 0.0
        %1753 = vmatpush1.msra.mxu0 0.0
        %1754 = vmatprep.subr.mxu0 0.0
        %1755 = vmatpush1.msra.mxu0 0.0
        %1756 = vmatprep.subr.mxu0 0.0
        %1757 = vmatpush1.msra.mxu0 0.0
        %1758 = vmatprep.subr.mxu0 0.0
        %1759 = vmatpush1.msra.mxu0 0.0
        %1760 = vmatprep.subr.mxu0 0.0
        %1761 = vmatpush1.msra.mxu0 0.0
        %1762 = vmatprep.subr.mxu0 0.0
        %1763 = vmatpush1.msra.mxu0 0.0
        %1764 = vmatprep.subr.mxu0 0.0
        %1765 = vmatpush1.msra.mxu0 0.0
        %1766 = vmatprep.subr.mxu0 0.0
        %1767 = vmatpush1.msra.mxu0 0.0
        %1768 = vmatprep.subr.mxu0 0.0
        %1769 = vmatpush1.msra.mxu0 0.0
        %1770 = vmatprep.subr.mxu0 0.0
        %1771 = vmatpush1.msra.mxu0 0.0
        %1772 = vmatprep.subr.mxu0 0.0
        %1773 = vmatpush1.msra.mxu0 0.0
        %1774 = vmatprep.mubr.f32.mxu0 0.0
        %1775 = vmatmul.mubr.f32.gmra.mrb[0].mxu0 %v1708
        %v1776 = vpop.f32.mrb[0].mxu0
        %v1777 = vadd.f32 %v1705, %v1776
        %v1778 = vpop.f32.mrb[0].mxu0
        %1779 = vdwg.mxu0
        %v1780 = vsub.f32 0.0, %v1777
        %v1781 = vmul.f32 %v1780, 1.442695
        %v1782 = vpow.pop %v1781
        %v1783 = vadd.f32 %v1782, 1.0
        %v1784 = vrcp.pop %v1783
        %v1785 = vmul.f32 1.0, %v1784
        %vm1786 = vcmask 31744
        %v1788 = vsel %vm1786, %v818, 0
        %v1791 = vsel %vm1786, %v819, 0
        %v1794 = vsel %vm1786, %v820, 0
        %v1797 = vsel %vm1786, %v821, 0
        %v1800 = vsel %vm1786, %v822, 0
        %v1803 = vsel %vm1786, %v823, 0
        %v1806 = vsel %vm1786, %v824, 0
        %v1809 = vsel %vm1786, %v825, 0
        %vm1811 = vcmask 1043456
        %v1813 = vsel %vm1811, %v1704, 0
        %1815 = vmatprep.subr.mxu0 0.0
        %1816 = vmatpush1.msra.mxu0 %v1813
        %1817 = vmatprep.subr.mxu0 0.0
        %1818 = vmatpush1.msra.mxu0 0.0
        %1819 = vmatprep.subr.mxu0 0.0
        %1820 = vmatpush1.msra.mxu0 0.0
        %1821 = vmatprep.subr.mxu0 0.0
        %1822 = vmatpush1.msra.mxu0 0.0
        %1823 = vmatprep.subr.mxu0 0.0
        %1824 = vmatpush1.msra.mxu0 0.0
        %1825 = vmatprep.subr.mxu0 0.0
        %1826 = vmatpush1.msra.mxu0 0.0
        %1827 = vmatprep.subr.mxu0 0.0
        %1828 = vmatpush1.msra.mxu0 0.0
        %1829 = vmatprep.subr.mxu0 0.0
        %1830 = vmatpush1.msra.mxu0 0.0
        %1831 = vmatprep.subr.mxu0 0.0
        %1832 = vmatpush1.msra.mxu0 0.0
        %1833 = vmatprep.subr.mxu0 0.0
        %1834 = vmatpush1.msra.mxu0 0.0
        %1835 = vmatprep.subr.mxu0 0.0
        %1836 = vmatpush1.msra.mxu0 0.0
        %1837 = vmatprep.subr.mxu0 0.0
        %1838 = vmatpush1.msra.mxu0 0.0
        %1839 = vmatprep.subr.mxu0 0.0
        %1840 = vmatpush1.msra.mxu0 0.0
        %1841 = vmatprep.subr.mxu0 0.0
        %1842 = vmatpush1.msra.mxu0 0.0
        %1843 = vmatprep.subr.mxu0 0.0
        %1844 = vmatpush1.msra.mxu0 0.0
        %1845 = vmatprep.subr.mxu0 0.0
        %1846 = vmatpush1.msra.mxu0 0.0
        %1847 = vmatprep.subr.mxu0 0.0
        %1848 = vmatpush1.msra.mxu0 0.0
        %1849 = vmatprep.subr.mxu0 0.0
        %1850 = vmatpush1.msra.mxu0 0.0
        %1851 = vmatprep.subr.mxu0 0.0
        %1852 = vmatpush1.msra.mxu0 0.0
        %1853 = vmatprep.subr.mxu0 0.0
        %1854 = vmatpush1.msra.mxu0 0.0
        %1855 = vmatprep.subr.mxu0 0.0
        %1856 = vmatpush1.msra.mxu0 0.0
        %1857 = vmatprep.subr.mxu0 0.0
        %1858 = vmatpush1.msra.mxu0 0.0
        %1859 = vmatprep.subr.mxu0 0.0
        %1860 = vmatpush1.msra.mxu0 0.0
        %1861 = vmatprep.subr.mxu0 0.0
        %1862 = vmatpush1.msra.mxu0 0.0
        %1863 = vmatprep.subr.mxu0 0.0
        %1864 = vmatpush1.msra.mxu0 0.0
        %1865 = vmatprep.subr.mxu0 0.0
        %1866 = vmatpush1.msra.mxu0 0.0
        %1867 = vmatprep.subr.mxu0 0.0
        %1868 = vmatpush1.msra.mxu0 0.0
        %1869 = vmatprep.subr.mxu0 0.0
        %1870 = vmatpush1.msra.mxu0 0.0
        %1871 = vmatprep.subr.mxu0 0.0
        %1872 = vmatpush1.msra.mxu0 0.0
        %1873 = vmatprep.subr.mxu0 0.0
        %1874 = vmatpush1.msra.mxu0 0.0
        %1875 = vmatprep.subr.mxu0 0.0
        %1876 = vmatpush1.msra.mxu0 0.0
        %1877 = vmatprep.subr.mxu0 0.0
        %1878 = vmatpush1.msra.mxu0 0.0
        %1879 = vmatprep.mubr.f32.mxu0 0.0
        %1880 = vmatmul.mubr.f32.gmra.mrb[0].mxu0 %v1788
        %v1881 = vpop.f32.mrb[0].mxu0
        %v1882 = vadd.f32 %v827, %v1881
        %v1883 = vpop.f32.mrb[0].mxu0
        %1884 = vmatprep.mubr.f32.mxu0 0.0
        %1885 = vmatmul.mubr.f32.gmra.mrb[0].mxu0 %v1791
        %v1886 = vpop.f32.mrb[0].mxu0
        %v1887 = vadd.f32 %v828, %v1886
        %v1888 = vpop.f32.mrb[0].mxu0
        %1889 = vmatprep.mubr.f32.mxu0 0.0
        %1890 = vmatmul.mubr.f32.gmra.mrb[0].mxu0 %v1794
        %v1891 = vpop.f32.mrb[0].mxu0
        %v1892 = vadd.f32 %v829, %v1891
        %v1893 = vpop.f32.mrb[0].mxu0
        %1894 = vmatprep.mubr.f32.mxu0 0.0
        %1895 = vmatmul.mubr.f32.gmra.mrb[0].mxu0 %v1797
        %v1896 = vpop.f32.mrb[0].mxu0
        %v1897 = vadd.f32 %v830, %v1896
        %v1898 = vpop.f32.mrb[0].mxu0
        %1899 = vmatprep.mubr.f32.mxu0 0.0
        %1900 = vmatmul.mubr.f32.gmra.mrb[0].mxu0 %v1800
        %v1901 = vpop.f32.mrb[0].mxu0
        %v1902 = vadd.f32 %v831, %v1901
        %v1903 = vpop.f32.mrb[0].mxu0
        %1904 = vmatprep.mubr.f32.mxu0 0.0
        %1905 = vmatmul.mubr.f32.gmra.mrb[0].mxu0 %v1803
        %v1906 = vpop.f32.mrb[0].mxu0
        %v1907 = vadd.f32 %v832, %v1906
        %v1908 = vpop.f32.mrb[0].mxu0
        %1909 = vmatprep.mubr.f32.mxu0 0.0
        %1910 = vmatmul.mubr.f32.gmra.mrb[0].mxu0 %v1806
        %v1911 = vpop.f32.mrb[0].mxu0
        %v1912 = vadd.f32 %v833, %v1911
        %v1913 = vpop.f32.mrb[0].mxu0
        %1914 = vmatprep.mubr.f32.mxu0 0.0
        %1915 = vmatmul.mubr.f32.gmra.mrb[0].mxu0 %v1809
        %v1916 = vpop.f32.mrb[0].mxu0
        %v1917 = vadd.f32 %v834, %v1916
        %v1918 = vpop.f32.mrb[0].mxu0
        %1919 = vdwg.mxu0
        %v1920 = vsub.f32 0.0, %v1882
        %v1921 = vsub.f32 0.0, %v1887
        %v1922 = vsub.f32 0.0, %v1892
        %v1923 = vsub.f32 0.0, %v1897
        %v1924 = vsub.f32 0.0, %v1902
        %v1925 = vsub.f32 0.0, %v1907
        %v1926 = vsub.f32 0.0, %v1912
        %v1927 = vsub.f32 0.0, %v1917
        %v1928 = vmul.f32 %v1920, 1.442695
        %v1929 = vpow.pop %v1928
        %v1930 = vmul.f32 %v1921, 1.442695
        %v1931 = vpow.pop %v1930
        %v1932 = vmul.f32 %v1922, 1.442695
        %v1933 = vpow.pop %v1932
        %v1934 = vmul.f32 %v1923, 1.442695
        %v1935 = vpow.pop %v1934
        %v1936 = vmul.f32 %v1924, 1.442695
        %v1937 = vpow.pop %v1936
        %v1938 = vmul.f32 %v1925, 1.442695
        %v1939 = vpow.pop %v1938
        %v1940 = vmul.f32 %v1926, 1.442695
        %v1941 = vpow.pop %v1940
        %v1942 = vmul.f32 %v1927, 1.442695
        %v1943 = vpow.pop %v1942
        %v1944 = vadd.f32 %v1929, 1.0
        %v1945 = vadd.f32 %v1931, 1.0
        %v1946 = vadd.f32 %v1933, 1.0
        %v1947 = vadd.f32 %v1935, 1.0
        %v1948 = vadd.f32 %v1937, 1.0
        %v1949 = vadd.f32 %v1939, 1.0
        %v1950 = vadd.f32 %v1941, 1.0
        %v1951 = vadd.f32 %v1943, 1.0
        %v1952 = vrcp.pop %v1944
        %v1953 = vmul.f32 1.0, %v1952
        %v1954 = vrcp.pop %v1945
        %v1955 = vmul.f32 1.0, %v1954
        %v1956 = vrcp.pop %v1946
        %v1957 = vmul.f32 1.0, %v1956
        %v1958 = vrcp.pop %v1947
        %v1959 = vmul.f32 1.0, %v1958
        %v1960 = vrcp.pop %v1948
        %v1961 = vmul.f32 1.0, %v1960
        %v1962 = vrcp.pop %v1949
        %v1963 = vmul.f32 1.0, %v1962
        %v1964 = vrcp.pop %v1950
        %v1965 = vmul.f32 1.0, %v1964
        %v1966 = vrcp.pop %v1951
        %v1967 = vmul.f32 1.0, %v1966
        %v1968 = vlaneseq
        %v1969 = vshrl.u32 %v1968, 7
        %v1970 = vsub.s32 0, %v1969
        %v1971 = vrot.slane %v1785, %v1970
        %1973 = vset.pattern.permute.xlu0 0
        %1974 = vperm.xlu0 %1973, %v1953
        %v1975 = vpop.permute.xlu0 %1974
        %1978 = vset.pattern.permute.xlu0 0
        %1979 = vperm.xlu0 %1978, %v1955
        %v1980 = vpop.permute.xlu0 %1979
        %v1982 = vadd.f32 %v1971, %v1975
        %v1983 = vadd.f32 %v1971, %v1980
        %1985 = vset.pattern.permute.xlu0 0
        %1986 = vperm.xlu0 %1985, %v1957
        %v1987 = vpop.permute.xlu0 %1986
        %1990 = vset.pattern.permute.xlu0 0
        %1991 = vperm.xlu0 %1990, %v1959
        %v1992 = vpop.permute.xlu0 %1991
        %v1994 = vadd.f32 %v1971, %v1987
        %v1995 = vadd.f32 %v1971, %v1992
        %1997 = vset.pattern.permute.xlu0 0
        %1998 = vperm.xlu0 %1997, %v1961
        %v1999 = vpop.permute.xlu0 %1998
        %2002 = vset.pattern.permute.xlu0 0
        %2003 = vperm.xlu0 %2002, %v1963
        %v2004 = vpop.permute.xlu0 %2003
        %v2006 = vadd.f32 %v1971, %v1999
        %v2007 = vadd.f32 %v1971, %v2004
        %2009 = vset.pattern.permute.xlu0 0
        %2010 = vperm.xlu0 %2009, %v1965
        %v2011 = vpop.permute.xlu0 %2010
        %2014 = vset.pattern.permute.xlu0 0
        %2015 = vperm.xlu0 %2014, %v1967
        %v2016 = vpop.permute.xlu0 %2015
        %v2018 = vadd.f32 %v1971, %v2011
        %v2019 = vadd.f32 %v1971, %v2016
        %2022 = vrot.lane.b32.xlu0 %v1994, 96
        %v2023 = vpop.permute.xlu0 %2022
        %2024 = vrot.lane.b32.xlu0 %v1995, 96
        %v2025 = vpop.permute.xlu0 %2024
        %2030 = vrot.lane.b32.xlu0 %v2006, 64
        %v2031 = vpop.permute.xlu0 %2030
        %2032 = vrot.lane.b32.xlu0 %v2007, 64
        %v2033 = vpop.permute.xlu0 %2032
        %2038 = vrot.lane.b32.xlu0 %v2018, 32
        %v2039 = vpop.permute.xlu0 %2038
        %2040 = vrot.lane.b32.xlu0 %v2019, 32
        %v2041 = vpop.permute.xlu0 %2040
        %v2044 = vsel %vm892, %v1982, -inf
        %v2045 = vsel %vm892, %v2023, -inf
        %v2046 = vsel %vm892, %v2031, -inf
        %v2047 = vmax.f32 %v2044, %v2046
        %v2048 = vsel %vm892, %v2039, -inf
        %v2049 = vmax.f32 %v2045, %v2048
        %v2050 = vmax.f32 %v2047, %v2049
        %v2051 = vsel %vm892, %v1983, -inf
        %v2052 = vsel %vm892, %v2025, -inf
        %v2053 = vsel %vm892, %v2033, -inf
        %v2054 = vmax.f32 %v2051, %v2053
        %v2055 = vsel %vm892, %v2041, -inf
        %v2056 = vmax.f32 %v2052, %v2055
        %v2057 = vmax.f32 %v2054, %v2056
        %v2058 = vsub.f32 %v1982, %v2050
        %v2059 = vsub.f32 %v1983, %v2057
        %v2060 = vsub.f32 %v2023, %v2050
        %v2061 = vsub.f32 %v2025, %v2057
        %v2062 = vsub.f32 %v2031, %v2050
        %v2063 = vsub.f32 %v2033, %v2057
        %v2064 = vsub.f32 %v2039, %v2050
        %v2065 = vsub.f32 %v2041, %v2057
        %v2066 = vmul.f32 %v2058, 1.442695
        %v2067 = vpow.pop %v2066
        %v2068 = vmul.f32 %v2059, 1.442695
        %v2069 = vpow.pop %v2068
        %v2070 = vmul.f32 %v2060, 1.442695
        %v2071 = vpow.pop %v2070
        %v2072 = vmul.f32 %v2061, 1.442695
        %v2073 = vpow.pop %v2072
        %v2074 = vmul.f32 %v2062, 1.442695
        %v2075 = vpow.pop %v2074
        %v2076 = vmul.f32 %v2063, 1.442695
        %v2077 = vpow.pop %v2076
        %v2078 = vmul.f32 %v2064, 1.442695
        %v2079 = vpow.pop %v2078
        %v2080 = vmul.f32 %v2065, 1.442695
        %v2081 = vpow.pop %v2080
        %v2082 = vsel %vm892, %v2067, 0.0
        %v2083 = vsel %vm892, %v2071, 0.0
        %v2084 = vadd.f32 %v2082, %v2083
        %v2085 = vsel %vm892, %v2075, 0.0
        %v2086 = vadd.f32 %v2084, %v2085
        %v2087 = vsel %vm892, %v2079, 0.0
        %v2088 = vadd.f32 %v2086, %v2087
        %v2089 = vsel %vm892, %v2069, 0.0
        %v2090 = vsel %vm892, %v2073, 0.0
        %v2091 = vadd.f32 %v2089, %v2090
        %v2092 = vsel %vm892, %v2077, 0.0
        %v2093 = vadd.f32 %v2091, %v2092
        %v2094 = vsel %vm892, %v2081, 0.0
        %v2095 = vadd.f32 %v2093, %v2094
        %v2096 = vrcp.pop %v2088
        %v2097 = vrcp.pop %v2095
        %v2098 = vmul.f32 %v2067, %v2096
        %v2099 = vmul.f32 %v2069, %v2097
        %v2100 = vmul.f32 %v2071, %v2096
        %v2101 = vmul.f32 %v2073, %v2097
        %v2102 = vmul.f32 %v2075, %v2096
        %v2103 = vmul.f32 %v2077, %v2097
        %v2104 = vmul.f32 %v2079, %v2096
        %v2105 = vmul.f32 %v2081, %v2097
        %v2106 = vadd.f32 %v2098, 1.0
        %v2107 = vadd.f32 %v2099, 1.0
        %v2108 = vadd.f32 %v2100, 1.0
        %v2109 = vadd.f32 %v2101, 1.0
        %v2110 = vadd.f32 %v2102, 1.0
        %v2111 = vadd.f32 %v2103, 1.0
        %v2112 = vadd.f32 %v2104, 1.0
        %v2113 = vadd.f32 %v2105, 1.0
        %v2114 = vmul.f32 %v882, %v2106
        %v2115 = vmul.f32 %v883, %v2107
        %v2116 = vmul.f32 %v884, %v2108
        %v2117 = vmul.f32 %v885, %v2109
        %v2118 = vmul.f32 %v886, %v2110
        %v2119 = vmul.f32 %v887, %v2111
        %v2120 = vmul.f32 %v888, %v2112
        %v2121 = vmul.f32 %v889, %v2113
        %v2122 = vsel %vm892, %v2114, 0.0
        %v2123 = vsel %vm892, %v2116, 0.0
        %v2124 = vadd.f32 %v2122, %v2123
        %v2125 = vsel %vm892, %v2118, 0.0
        %v2126 = vadd.f32 %v2124, %v2125
        %v2127 = vsel %vm892, %v2120, 0.0
        %v2128 = vadd.f32 %v2126, %v2127
        %v2129 = vsel %vm892, %v2115, 0.0
        %v2130 = vsel %vm892, %v2117, 0.0
        %v2131 = vadd.f32 %v2129, %v2130
        %v2132 = vsel %vm892, %v2119, 0.0
        %v2133 = vadd.f32 %v2131, %v2132
        %v2134 = vsel %vm892, %v2121, 0.0
        %v2135 = vadd.f32 %v2133, %v2134
        %v2136 = vsel %vm892, %v2128, 0.0
        %v2137 = vsel %vm892, %v2135, 0.0
        %v2138 = vadd.f32 %v2136, %v2137
        %v2139 = vrot.slane %v2138, 4
        %v2140 = vadd.f32 %v2138, %v2139
        %v2141 = vrot.slane %v2140, 2
        %v2142 = vadd.f32 %v2140, %v2141
        %v2143 = vrot.slane %v2142, 1
        %v2144 = vadd.f32 %v2142, %v2143
        %v2145 = vmul.f32 %v2144, %v916
        %v2147 = vsel %vm892, %v2145, 0
        %2149 = vmatprep.subr.mxu0 0.0
        %2150 = vmatpush1.msra.mxu0 %v836
        %2151 = vmatprep.subr.mxu0 0.0
        %2152 = vmatpush1.msra.mxu0 %v837
        %2153 = vmatprep.subr.mxu0 0.0
        %2154 = vmatpush1.msra.mxu0 %v838
        %2155 = vmatprep.subr.mxu0 0.0
        %2156 = vmatpush1.msra.mxu0 %v839
        %2157 = vmatprep.subr.mxu0 0.0
        %2158 = vmatpush1.msra.mxu0 0.0
        %2159 = vmatprep.subr.mxu0 0.0
        %2160 = vmatpush1.msra.mxu0 0.0
        %2161 = vmatprep.subr.mxu0 0.0
        %2162 = vmatpush1.msra.mxu0 0.0
        %2163 = vmatprep.subr.mxu0 0.0
        %2164 = vmatpush1.msra.mxu0 0.0
        %2165 = vmatprep.subr.mxu0 0.0
        %2166 = vmatpush1.msra.mxu0 0.0
        %2167 = vmatprep.subr.mxu0 0.0
        %2168 = vmatpush1.msra.mxu0 0.0
        %2169 = vmatprep.subr.mxu0 0.0
        %2170 = vmatpush1.msra.mxu0 0.0
        %2171 = vmatprep.subr.mxu0 0.0
        %2172 = vmatpush1.msra.mxu0 0.0
        %2173 = vmatprep.subr.mxu0 0.0
        %2174 = vmatpush1.msra.mxu0 0.0
        %2175 = vmatprep.subr.mxu0 0.0
        %2176 = vmatpush1.msra.mxu0 0.0
        %2177 = vmatprep.subr.mxu0 0.0
        %2178 = vmatpush1.msra.mxu0 0.0
        %2179 = vmatprep.subr.mxu0 0.0
        %2180 = vmatpush1.msra.mxu0 0.0
        %2181 = vmatprep.subr.mxu0 0.0
        %2182 = vmatpush1.msra.mxu0 0.0
        %2183 = vmatprep.subr.mxu0 0.0
        %2184 = vmatpush1.msra.mxu0 0.0
        %2185 = vmatprep.subr.mxu0 0.0
        %2186 = vmatpush1.msra.mxu0 0.0
        %2187 = vmatprep.subr.mxu0 0.0
        %2188 = vmatpush1.msra.mxu0 0.0
        %2189 = vmatprep.subr.mxu0 0.0
        %2190 = vmatpush1.msra.mxu0 0.0
        %2191 = vmatprep.subr.mxu0 0.0
        %2192 = vmatpush1.msra.mxu0 0.0
        %2193 = vmatprep.subr.mxu0 0.0
        %2194 = vmatpush1.msra.mxu0 0.0
        %2195 = vmatprep.subr.mxu0 0.0
        %2196 = vmatpush1.msra.mxu0 0.0
        %2197 = vmatprep.subr.mxu0 0.0
        %2198 = vmatpush1.msra.mxu0 0.0
        %2199 = vmatprep.subr.mxu0 0.0
        %2200 = vmatpush1.msra.mxu0 0.0
        %2201 = vmatprep.subr.mxu0 0.0
        %2202 = vmatpush1.msra.mxu0 0.0
        %2203 = vmatprep.subr.mxu0 0.0
        %2204 = vmatpush1.msra.mxu0 0.0
        %2205 = vmatprep.subr.mxu0 0.0
        %2206 = vmatpush1.msra.mxu0 0.0
        %2207 = vmatprep.subr.mxu0 0.0
        %2208 = vmatpush1.msra.mxu0 0.0
        %2209 = vmatprep.subr.mxu0 0.0
        %2210 = vmatpush1.msra.mxu0 0.0
        %2211 = vmatprep.subr.mxu0 0.0
        %2212 = vmatpush1.msra.mxu0 0.0
        %2213 = vmatprep.mubr.f32.mxu0 0.0
        %2214 = vmatmul.mubr.f32.gmra.mrb[0].mxu0 %v2147
        %v2215 = vpop.f32.mrb[0].mxu0
        %v2216 = vadd.f32 %v881, %v2215
        %v2217 = vpop.f32.mrb[0].mxu0
        %2218 = vdwg.mxu0
        %v2219 = vmax.f32 %v2216, 0.0
        %v2221 = vrot.slane %v881, 1
        %v2224 = vsel %vm995, %v2219, 0
        %2226 = vmatprep.subr.mxu0 0.0
        %2227 = vmatpush1.msra.mxu0 %v840
        %2228 = vmatprep.subr.mxu0 0.0
        %2229 = vmatpush1.msra.mxu0 0.0
        %2230 = vmatprep.subr.mxu0 0.0
        %2231 = vmatpush1.msra.mxu0 0.0
        %2232 = vmatprep.subr.mxu0 0.0
        %2233 = vmatpush1.msra.mxu0 0.0
        %2234 = vmatprep.subr.mxu0 0.0
        %2235 = vmatpush1.msra.mxu0 0.0
        %2236 = vmatprep.subr.mxu0 0.0
        %2237 = vmatpush1.msra.mxu0 0.0
        %2238 = vmatprep.subr.mxu0 0.0
        %2239 = vmatpush1.msra.mxu0 0.0
        %2240 = vmatprep.subr.mxu0 0.0
        %2241 = vmatpush1.msra.mxu0 0.0
        %2242 = vmatprep.subr.mxu0 0.0
        %2243 = vmatpush1.msra.mxu0 0.0
        %2244 = vmatprep.subr.mxu0 0.0
        %2245 = vmatpush1.msra.mxu0 0.0
        %2246 = vmatprep.subr.mxu0 0.0
        %2247 = vmatpush1.msra.mxu0 0.0
        %2248 = vmatprep.subr.mxu0 0.0
        %2249 = vmatpush1.msra.mxu0 0.0
        %2250 = vmatprep.subr.mxu0 0.0
        %2251 = vmatpush1.msra.mxu0 0.0
        %2252 = vmatprep.subr.mxu0 0.0
        %2253 = vmatpush1.msra.mxu0 0.0
        %2254 = vmatprep.subr.mxu0 0.0
        %2255 = vmatpush1.msra.mxu0 0.0
        %2256 = vmatprep.subr.mxu0 0.0
        %2257 = vmatpush1.msra.mxu0 0.0
        %2258 = vmatprep.subr.mxu0 0.0
        %2259 = vmatpush1.msra.mxu0 0.0
        %2260 = vmatprep.subr.mxu0 0.0
        %2261 = vmatpush1.msra.mxu0 0.0
        %2262 = vmatprep.subr.mxu0 0.0
        %2263 = vmatpush1.msra.mxu0 0.0
        %2264 = vmatprep.subr.mxu0 0.0
        %2265 = vmatpush1.msra.mxu0 0.0
        %2266 = vmatprep.subr.mxu0 0.0
        %2267 = vmatpush1.msra.mxu0 0.0
        %2268 = vmatprep.subr.mxu0 0.0
        %2269 = vmatpush1.msra.mxu0 0.0
        %2270 = vmatprep.subr.mxu0 0.0
        %2271 = vmatpush1.msra.mxu0 0.0
        %2272 = vmatprep.subr.mxu0 0.0
        %2273 = vmatpush1.msra.mxu0 0.0
        %2274 = vmatprep.subr.mxu0 0.0
        %2275 = vmatpush1.msra.mxu0 0.0
        %2276 = vmatprep.subr.mxu0 0.0
        %2277 = vmatpush1.msra.mxu0 0.0
        %2278 = vmatprep.subr.mxu0 0.0
        %2279 = vmatpush1.msra.mxu0 0.0
        %2280 = vmatprep.subr.mxu0 0.0
        %2281 = vmatpush1.msra.mxu0 0.0
        %2282 = vmatprep.subr.mxu0 0.0
        %2283 = vmatpush1.msra.mxu0 0.0
        %2284 = vmatprep.subr.mxu0 0.0
        %2285 = vmatpush1.msra.mxu0 0.0
        %2286 = vmatprep.subr.mxu0 0.0
        %2287 = vmatpush1.msra.mxu0 0.0
        %2288 = vmatprep.subr.mxu0 0.0
        %2289 = vmatpush1.msra.mxu0 0.0
        %2290 = vmatprep.mubr.f32.mxu0 0.0
        %2291 = vmatmul.mubr.f32.gmra.mrb[0].mxu0 %v2224
        %v2292 = vpop.f32.mrb[0].mxu0
        %v2293 = vadd.f32 %v2221, %v2292
        %v2294 = vpop.f32.mrb[0].mxu0
        %2295 = vdwg.mxu0
        %v2296 = vsub.f32 0.0, %v2293
        %v2297 = vmul.f32 %v2296, 1.442695
        %v2298 = vpow.pop %v2297
        %v2299 = vadd.f32 %v2298, 1.0
        %v2300 = vrcp.pop %v2299
        %v2301 = vmul.f32 1.0, %v2300
        %v2302 = vrot.slane %v881, 5
        %v2305 = vsel %vm892, %v2301, 0
        %2307 = vmatprep.subr.mxu0 0.0
        %2308 = vmatpush1.msra.mxu0 %v855
        %2309 = vmatprep.subr.mxu0 0.0
        %2310 = vmatpush1.msra.mxu0 %v856
        %2311 = vmatprep.subr.mxu0 0.0
        %2312 = vmatpush1.msra.mxu0 %v857
        %2313 = vmatprep.subr.mxu0 0.0
        %2314 = vmatpush1.msra.mxu0 %v858
        %2315 = vmatprep.subr.mxu0 0.0
        %2316 = vmatpush1.msra.mxu0 0.0
        %2317 = vmatprep.subr.mxu0 0.0
        %2318 = vmatpush1.msra.mxu0 0.0
        %2319 = vmatprep.subr.mxu0 0.0
        %2320 = vmatpush1.msra.mxu0 0.0
        %2321 = vmatprep.subr.mxu0 0.0
        %2322 = vmatpush1.msra.mxu0 0.0
        %2323 = vmatprep.subr.mxu0 0.0
        %2324 = vmatpush1.msra.mxu0 0.0
        %2325 = vmatprep.subr.mxu0 0.0
        %2326 = vmatpush1.msra.mxu0 0.0
        %2327 = vmatprep.subr.mxu0 0.0
        %2328 = vmatpush1.msra.mxu0 0.0
        %2329 = vmatprep.subr.mxu0 0.0
        %2330 = vmatpush1.msra.mxu0 0.0
        %2331 = vmatprep.subr.mxu0 0.0
        %2332 = vmatpush1.msra.mxu0 0.0
        %2333 = vmatprep.subr.mxu0 0.0
        %2334 = vmatpush1.msra.mxu0 0.0
        %2335 = vmatprep.subr.mxu0 0.0
        %2336 = vmatpush1.msra.mxu0 0.0
        %2337 = vmatprep.subr.mxu0 0.0
        %2338 = vmatpush1.msra.mxu0 0.0
        %2339 = vmatprep.subr.mxu0 0.0
        %2340 = vmatpush1.msra.mxu0 0.0
        %2341 = vmatprep.subr.mxu0 0.0
        %2342 = vmatpush1.msra.mxu0 0.0
        %2343 = vmatprep.subr.mxu0 0.0
        %2344 = vmatpush1.msra.mxu0 0.0
        %2345 = vmatprep.subr.mxu0 0.0
        %2346 = vmatpush1.msra.mxu0 0.0
        %2347 = vmatprep.subr.mxu0 0.0
        %2348 = vmatpush1.msra.mxu0 0.0
        %2349 = vmatprep.subr.mxu0 0.0
        %2350 = vmatpush1.msra.mxu0 0.0
        %2351 = vmatprep.subr.mxu0 0.0
        %2352 = vmatpush1.msra.mxu0 0.0
        %2353 = vmatprep.subr.mxu0 0.0
        %2354 = vmatpush1.msra.mxu0 0.0
        %2355 = vmatprep.subr.mxu0 0.0
        %2356 = vmatpush1.msra.mxu0 0.0
        %2357 = vmatprep.subr.mxu0 0.0
        %2358 = vmatpush1.msra.mxu0 0.0
        %2359 = vmatprep.subr.mxu0 0.0
        %2360 = vmatpush1.msra.mxu0 0.0
        %2361 = vmatprep.subr.mxu0 0.0
        %2362 = vmatpush1.msra.mxu0 0.0
        %2363 = vmatprep.subr.mxu0 0.0
        %2364 = vmatpush1.msra.mxu0 0.0
        %2365 = vmatprep.subr.mxu0 0.0
        %2366 = vmatpush1.msra.mxu0 0.0
        %2367 = vmatprep.subr.mxu0 0.0
        %2368 = vmatpush1.msra.mxu0 0.0
        %2369 = vmatprep.subr.mxu0 0.0
        %2370 = vmatpush1.msra.mxu0 0.0
        %2371 = vmatprep.mubr.f32.mxu0 0.0
        %2372 = vmatmul.mubr.f32.gmra.mrb[0].mxu0 %v2305
        %v2373 = vpop.f32.mrb[0].mxu0
        %v2374 = vadd.f32 %v2302, %v2373
        %v2375 = vpop.f32.mrb[0].mxu0
        %2376 = vdwg.mxu0
        %v2377 = vsub.f32 0.0, %v2374
        %v2378 = vmul.f32 %v2377, 1.442695
        %v2379 = vpow.pop %v2378
        %v2380 = vadd.f32 %v2379, 1.0
        %v2381 = vrcp.pop %v2380
        %v2382 = vmul.f32 1.0, %v2381
        %v2383 = vlaneseq
        %v2384 = vshrl.u32 %v2383, 7
        %v2385 = vsub.s32 2, %v2384
        %v2386 = vrot.slane %v881, %v2385
        %v2388 = vsel %vm892, %v2128, 0
        %v2391 = vsel %vm892, %v2135, 0
        %2393 = vmatprep.subr.mxu0 0.0
        %2394 = vmatpush1.msra.mxu0 %v841
        %2395 = vmatprep.subr.mxu0 0.0
        %2396 = vmatpush1.msra.mxu0 %v842
        %2397 = vmatprep.subr.mxu0 0.0
        %2398 = vmatpush1.msra.mxu0 %v843
        %2399 = vmatprep.subr.mxu0 0.0
        %2400 = vmatpush1.msra.mxu0 %v844
        %2401 = vmatprep.subr.mxu0 0.0
        %2402 = vmatpush1.msra.mxu0 0.0
        %2403 = vmatprep.subr.mxu0 0.0
        %2404 = vmatpush1.msra.mxu0 0.0
        %2405 = vmatprep.subr.mxu0 0.0
        %2406 = vmatpush1.msra.mxu0 0.0
        %2407 = vmatprep.subr.mxu0 0.0
        %2408 = vmatpush1.msra.mxu0 0.0
        %2409 = vmatprep.subr.mxu0 0.0
        %2410 = vmatpush1.msra.mxu0 0.0
        %2411 = vmatprep.subr.mxu0 0.0
        %2412 = vmatpush1.msra.mxu0 0.0
        %2413 = vmatprep.subr.mxu0 0.0
        %2414 = vmatpush1.msra.mxu0 0.0
        %2415 = vmatprep.subr.mxu0 0.0
        %2416 = vmatpush1.msra.mxu0 0.0
        %2417 = vmatprep.subr.mxu0 0.0
        %2418 = vmatpush1.msra.mxu0 0.0
        %2419 = vmatprep.subr.mxu0 0.0
        %2420 = vmatpush1.msra.mxu0 0.0
        %2421 = vmatprep.subr.mxu0 0.0
        %2422 = vmatpush1.msra.mxu0 0.0
        %2423 = vmatprep.subr.mxu0 0.0
        %2424 = vmatpush1.msra.mxu0 0.0
        %2425 = vmatprep.subr.mxu0 0.0
        %2426 = vmatpush1.msra.mxu0 0.0
        %2427 = vmatprep.subr.mxu0 0.0
        %2428 = vmatpush1.msra.mxu0 0.0
        %2429 = vmatprep.subr.mxu0 0.0
        %2430 = vmatpush1.msra.mxu0 0.0
        %2431 = vmatprep.subr.mxu0 0.0
        %2432 = vmatpush1.msra.mxu0 0.0
        %2433 = vmatprep.subr.mxu0 0.0
        %2434 = vmatpush1.msra.mxu0 0.0
        %2435 = vmatprep.subr.mxu0 0.0
        %2436 = vmatpush1.msra.mxu0 0.0
        %2437 = vmatprep.subr.mxu0 0.0
        %2438 = vmatpush1.msra.mxu0 0.0
        %2439 = vmatprep.subr.mxu0 0.0
        %2440 = vmatpush1.msra.mxu0 0.0
        %2441 = vmatprep.subr.mxu0 0.0
        %2442 = vmatpush1.msra.mxu0 0.0
        %2443 = vmatprep.subr.mxu0 0.0
        %2444 = vmatpush1.msra.mxu0 0.0
        %2445 = vmatprep.subr.mxu0 0.0
        %2446 = vmatpush1.msra.mxu0 0.0
        %2447 = vmatprep.subr.mxu0 0.0
        %2448 = vmatpush1.msra.mxu0 0.0
        %2449 = vmatprep.subr.mxu0 0.0
        %2450 = vmatpush1.msra.mxu0 0.0
        %2451 = vmatprep.subr.mxu0 0.0
        %2452 = vmatpush1.msra.mxu0 0.0
        %2453 = vmatprep.subr.mxu0 0.0
        %2454 = vmatpush1.msra.mxu0 0.0
        %2455 = vmatprep.subr.mxu0 0.0
        %2456 = vmatpush1.msra.mxu0 0.0
        %2457 = vmatprep.mubr.f32.mxu0 0.0
        %2458 = vmatmul.mubr.f32.gmra.mrb[0].mxu0 %v2388
        %v2459 = vpop.f32.mrb[0].mxu0
        %v2460 = vadd.f32 %v2386, %v2459
        %v2461 = vpop.f32.mrb[0].mxu0
        %2462 = vmatprep.mubr.f32.mxu0 0.0
        %2463 = vmatmul.mubr.f32.gmra.mrb[0].mxu0 %v2391
        %v2464 = vpop.f32.mrb[0].mxu0
        %v2465 = vadd.f32 %v2386, %v2464
        %v2466 = vpop.f32.mrb[0].mxu0
        %2467 = vdwg.mxu0
        %v2468 = vmax.f32 %v2460, 0.0
        %v2469 = vmax.f32 %v2465, 0.0
        %v2471 = vrot.slane %v2468, 6
        %v2473 = vsel %vm1246, 0.0, %v2471
        %v2474 = vmul.f32 %v2473, %v1256
        %v2475 = vmul.f32 %v2468, %v1266
        %v2477 = vrot.slane %v2468, 2
        %v2478 = vrot.slane %v2469, 2
        %v2479 = vsel %vm1271, %v2477, %v2478
        %v2482 = vsel %vm1271, 0.0, %v2477
        %v2483 = vmul.f32 %v2482, %v1280
        %v2484 = vmul.f32 %v2479, %v1284
        %v2485 = vrot.slane %v2469, 6
        %v2486 = vsel %vm1246, %v2471, %v2485
        %v2488 = vmul.f32 %v2473, %v1293
        %v2489 = vmul.f32 %v2486, %v1297
        %v2490 = vmul.f32 %v2468, %v1303
        %v2491 = vmul.f32 %v2469, %v1307
        %v2493 = vsel %vm1271, %v2478, 0.0
        %v2494 = vmul.f32 %v2479, %v1315
        %v2495 = vmul.f32 %v2493, %v1319
        %v2497 = vsel %vm1246, %v2485, 0.0
        %v2498 = vmul.f32 %v2486, %v1327
        %v2499 = vmul.f32 %v2497, %v1331
        %v2500 = vmul.f32 %v2469, %v1337
        %v2501 = vmul.f32 %v2493, %v1347
        %2503 = vrot.lane.b32.xlu0 %v2475, 8
        %v2504 = vpop.permute.xlu0 %2503
        %2508 = vrot.lane.b32.xlu0 %v2483, 16
        %v2509 = vpop.permute.xlu0 %2508
        %2510 = vrot.lane.b32.xlu0 %v2484, 16
        %v2511 = vpop.permute.xlu0 %2510
        %2516 = vrot.lane.b32.xlu0 %v2488, 24
        %v2517 = vpop.permute.xlu0 %2516
        %2518 = vrot.lane.b32.xlu0 %v2489, 24
        %v2519 = vpop.permute.xlu0 %2518
        %2524 = vrot.lane.b32.xlu0 %v2490, 32
        %v2525 = vpop.permute.xlu0 %2524
        %2526 = vrot.lane.b32.xlu0 %v2491, 32
        %v2527 = vpop.permute.xlu0 %2526
        %2532 = vrot.lane.b32.xlu0 %v2494, 40
        %v2533 = vpop.permute.xlu0 %2532
        %2534 = vrot.lane.b32.xlu0 %v2495, 40
        %v2535 = vpop.permute.xlu0 %2534
        %2540 = vrot.lane.b32.xlu0 %v2498, 48
        %v2541 = vpop.permute.xlu0 %2540
        %2542 = vrot.lane.b32.xlu0 %v2499, 48
        %v2543 = vpop.permute.xlu0 %2542
        %2547 = vrot.lane.b32.xlu0 %v2500, 56
        %v2548 = vpop.permute.xlu0 %2547
        %2551 = vrot.lane.b32.xlu0 %v2501, 64
        %v2552 = vpop.permute.xlu0 %2551
        %v2554 = vsel %vm995, %v2474, %v2504
        %v2555 = vsel %vm1421, %v1419, %v2509
        %v2556 = vsel %vm1421, %v2554, %v2511
        %v2557 = vsel %vm1424, %v2555, %v2517
        %v2558 = vsel %vm1424, %v2556, %v2519
        %v2559 = vsel %vm892, %v2557, %v2525
        %v2560 = vsel %vm892, %v2558, %v2527
        %v2561 = vsel %vm1429, %v2559, %v2533
        %v2562 = vsel %vm1429, %v2560, %v2535
        %v2563 = vsel %vm1432, %v2561, %v2541
        %v2564 = vsel %vm1432, %v2562, %v2543
        %v2565 = vsel %vm1435, %v2563, %v2548
        %v2566 = vsel %vm1435, %v2564, %v1408
        %v2567 = vsel %vm1438, %v2565, %v2552
        %v2568 = vsel %vm1438, %v2566, %v1416
        %v2569 = vlaneseq
        %v2570 = vshrl.u32 %v2569, 7
        %v2571 = vsub.s32 3, %v2570
        %v2572 = vrot.slane %v881, %v2571
        %v2574 = vsel %vm1445, %v2567, 0
        %v2577 = vsel %vm1445, %v2568, 0
        %2579 = vmatprep.subr.mxu0 0.0
        %2580 = vmatpush1.msra.mxu0 %v845
        %2581 = vmatprep.subr.mxu0 0.0
        %2582 = vmatpush1.msra.mxu0 %v846
        %2583 = vmatprep.subr.mxu0 0.0
        %2584 = vmatpush1.msra.mxu0 %v847
        %2585 = vmatprep.subr.mxu0 0.0
        %2586 = vmatpush1.msra.mxu0 %v848
        %2587 = vmatprep.subr.mxu0 0.0
        %2588 = vmatpush1.msra.mxu0 %v849
        %2589 = vmatprep.subr.mxu0 0.0
        %2590 = vmatpush1.msra.mxu0 %v850
        %2591 = vmatprep.subr.mxu0 0.0
        %2592 = vmatpush1.msra.mxu0 %v851
        %2593 = vmatprep.subr.mxu0 0.0
        %2594 = vmatpush1.msra.mxu0 %v852
        %2595 = vmatprep.subr.mxu0 0.0
        %2596 = vmatpush1.msra.mxu0 %v853
        %2597 = vmatprep.subr.mxu0 0.0
        %2598 = vmatpush1.msra.mxu0 0.0
        %2599 = vmatprep.subr.mxu0 0.0
        %2600 = vmatpush1.msra.mxu0 0.0
        %2601 = vmatprep.subr.mxu0 0.0
        %2602 = vmatpush1.msra.mxu0 0.0
        %2603 = vmatprep.subr.mxu0 0.0
        %2604 = vmatpush1.msra.mxu0 0.0
        %2605 = vmatprep.subr.mxu0 0.0
        %2606 = vmatpush1.msra.mxu0 0.0
        %2607 = vmatprep.subr.mxu0 0.0
        %2608 = vmatpush1.msra.mxu0 0.0
        %2609 = vmatprep.subr.mxu0 0.0
        %2610 = vmatpush1.msra.mxu0 0.0
        %2611 = vmatprep.subr.mxu0 0.0
        %2612 = vmatpush1.msra.mxu0 0.0
        %2613 = vmatprep.subr.mxu0 0.0
        %2614 = vmatpush1.msra.mxu0 0.0
        %2615 = vmatprep.subr.mxu0 0.0
        %2616 = vmatpush1.msra.mxu0 0.0
        %2617 = vmatprep.subr.mxu0 0.0
        %2618 = vmatpush1.msra.mxu0 0.0
        %2619 = vmatprep.subr.mxu0 0.0
        %2620 = vmatpush1.msra.mxu0 0.0
        %2621 = vmatprep.subr.mxu0 0.0
        %2622 = vmatpush1.msra.mxu0 0.0
        %2623 = vmatprep.subr.mxu0 0.0
        %2624 = vmatpush1.msra.mxu0 0.0
        %2625 = vmatprep.subr.mxu0 0.0
        %2626 = vmatpush1.msra.mxu0 0.0
        %2627 = vmatprep.subr.mxu0 0.0
        %2628 = vmatpush1.msra.mxu0 0.0
        %2629 = vmatprep.subr.mxu0 0.0
        %2630 = vmatpush1.msra.mxu0 0.0
        %2631 = vmatprep.subr.mxu0 0.0
        %2632 = vmatpush1.msra.mxu0 0.0
        %2633 = vmatprep.subr.mxu0 0.0
        %2634 = vmatpush1.msra.mxu0 0.0
        %2635 = vmatprep.subr.mxu0 0.0
        %2636 = vmatpush1.msra.mxu0 0.0
        %2637 = vmatprep.subr.mxu0 0.0
        %2638 = vmatpush1.msra.mxu0 0.0
        %2639 = vmatprep.subr.mxu0 0.0
        %2640 = vmatpush1.msra.mxu0 0.0
        %2641 = vmatprep.subr.mxu0 0.0
        %2642 = vmatpush1.msra.mxu0 0.0
        %2643 = vmatprep.mubr.f32.mxu0 0.0
        %2644 = vmatmul.mubr.f32.gmra.mrb[0].mxu0 %v2574
        %v2645 = vpop.f32.mrb[0].mxu0
        %v2646 = vadd.f32 %v2572, %v2645
        %v2647 = vpop.f32.mrb[0].mxu0
        %2648 = vmatprep.mubr.f32.mxu0 0.0
        %2649 = vmatmul.mubr.f32.gmra.mrb[0].mxu0 %v2577
        %v2650 = vpop.f32.mrb[0].mxu0
        %v2651 = vadd.f32 %v2572, %v2650
        %v2652 = vpop.f32.mrb[0].mxu0
        %2653 = vdwg.mxu0
        %v2654 = vmax.f32 %v2646, 0.0
        %v2655 = vmax.f32 %v2651, 0.0
        %v2656 = vlaneseq
        %v2657 = vshrl.u32 %v2656, 7
        %v2658 = vsub.s32 4, %v2657
        %v2659 = vrot.slane %v881, %v2658
        %v2661 = vsel %vm995, %v2654, 0
        %v2664 = vsel %vm995, %v2655, 0
        %2666 = vmatprep.subr.mxu0 0.0
        %2667 = vmatpush1.msra.mxu0 %v854
        %2668 = vmatprep.subr.mxu0 0.0
        %2669 = vmatpush1.msra.mxu0 0.0
        %2670 = vmatprep.subr.mxu0 0.0
        %2671 = vmatpush1.msra.mxu0 0.0
        %2672 = vmatprep.subr.mxu0 0.0
        %2673 = vmatpush1.msra.mxu0 0.0
        %2674 = vmatprep.subr.mxu0 0.0
        %2675 = vmatpush1.msra.mxu0 0.0
        %2676 = vmatprep.subr.mxu0 0.0
        %2677 = vmatpush1.msra.mxu0 0.0
        %2678 = vmatprep.subr.mxu0 0.0
        %2679 = vmatpush1.msra.mxu0 0.0
        %2680 = vmatprep.subr.mxu0 0.0
        %2681 = vmatpush1.msra.mxu0 0.0
        %2682 = vmatprep.subr.mxu0 0.0
        %2683 = vmatpush1.msra.mxu0 0.0
        %2684 = vmatprep.subr.mxu0 0.0
        %2685 = vmatpush1.msra.mxu0 0.0
        %2686 = vmatprep.subr.mxu0 0.0
        %2687 = vmatpush1.msra.mxu0 0.0
        %2688 = vmatprep.subr.mxu0 0.0
        %2689 = vmatpush1.msra.mxu0 0.0
        %2690 = vmatprep.subr.mxu0 0.0
        %2691 = vmatpush1.msra.mxu0 0.0
        %2692 = vmatprep.subr.mxu0 0.0
        %2693 = vmatpush1.msra.mxu0 0.0
        %2694 = vmatprep.subr.mxu0 0.0
        %2695 = vmatpush1.msra.mxu0 0.0
        %2696 = vmatprep.subr.mxu0 0.0
        %2697 = vmatpush1.msra.mxu0 0.0
        %2698 = vmatprep.subr.mxu0 0.0
        %2699 = vmatpush1.msra.mxu0 0.0
        %2700 = vmatprep.subr.mxu0 0.0
        %2701 = vmatpush1.msra.mxu0 0.0
        %2702 = vmatprep.subr.mxu0 0.0
        %2703 = vmatpush1.msra.mxu0 0.0
        %2704 = vmatprep.subr.mxu0 0.0
        %2705 = vmatpush1.msra.mxu0 0.0
        %2706 = vmatprep.subr.mxu0 0.0
        %2707 = vmatpush1.msra.mxu0 0.0
        %2708 = vmatprep.subr.mxu0 0.0
        %2709 = vmatpush1.msra.mxu0 0.0
        %2710 = vmatprep.subr.mxu0 0.0
        %2711 = vmatpush1.msra.mxu0 0.0
        %2712 = vmatprep.subr.mxu0 0.0
        %2713 = vmatpush1.msra.mxu0 0.0
        %2714 = vmatprep.subr.mxu0 0.0
        %2715 = vmatpush1.msra.mxu0 0.0
        %2716 = vmatprep.subr.mxu0 0.0
        %2717 = vmatpush1.msra.mxu0 0.0
        %2718 = vmatprep.subr.mxu0 0.0
        %2719 = vmatpush1.msra.mxu0 0.0
        %2720 = vmatprep.subr.mxu0 0.0
        %2721 = vmatpush1.msra.mxu0 0.0
        %2722 = vmatprep.subr.mxu0 0.0
        %2723 = vmatpush1.msra.mxu0 0.0
        %2724 = vmatprep.subr.mxu0 0.0
        %2725 = vmatpush1.msra.mxu0 0.0
        %2726 = vmatprep.subr.mxu0 0.0
        %2727 = vmatpush1.msra.mxu0 0.0
        %2728 = vmatprep.subr.mxu0 0.0
        %2729 = vmatpush1.msra.mxu0 0.0
        %2730 = vmatprep.mubr.f32.mxu0 0.0
        %2731 = vmatmul.mubr.f32.gmra.mrb[0].mxu0 %v2661
        %v2732 = vpop.f32.mrb[0].mxu0
        %v2733 = vadd.f32 %v2659, %v2732
        %v2734 = vpop.f32.mrb[0].mxu0
        %2735 = vmatprep.mubr.f32.mxu0 0.0
        %2736 = vmatmul.mubr.f32.gmra.mrb[0].mxu0 %v2664
        %v2737 = vpop.f32.mrb[0].mxu0
        %v2738 = vadd.f32 %v2659, %v2737
        %v2739 = vpop.f32.mrb[0].mxu0
        %2740 = vdwg.mxu0
        %v2741 = vsub.f32 0.0, %v2733
        %v2742 = vsub.f32 0.0, %v2738
        %v2743 = vmul.f32 %v2741, 1.442695
        %v2744 = vpow.pop %v2743
        %v2745 = vmul.f32 %v2742, 1.442695
        %v2746 = vpow.pop %v2745
        %v2747 = vadd.f32 %v2744, 1.0
        %v2748 = vadd.f32 %v2746, 1.0
        %v2749 = vrcp.pop %v2747
        %v2750 = vmul.f32 1.0, %v2749
        %v2751 = vrcp.pop %v2748
        %v2752 = vmul.f32 1.0, %v2751
        %v2754 = vsel %vm1421, %v859, 0
        %2756 = vmatprep.subr.mxu0 0.0
        %2757 = vmatpush1.msra.mxu0 %v2750
        %2758 = vmatprep.subr.mxu0 0.0
        %2759 = vmatpush1.msra.mxu0 %v2752
        %2760 = vmatprep.subr.mxu0 0.0
        %2761 = vmatpush1.msra.mxu0 0.0
        %2762 = vmatprep.subr.mxu0 0.0
        %2763 = vmatpush1.msra.mxu0 0.0
        %2764 = vmatprep.subr.mxu0 0.0
        %2765 = vmatpush1.msra.mxu0 0.0
        %2766 = vmatprep.subr.mxu0 0.0
        %2767 = vmatpush1.msra.mxu0 0.0
        %2768 = vmatprep.subr.mxu0 0.0
        %2769 = vmatpush1.msra.mxu0 0.0
        %2770 = vmatprep.subr.mxu0 0.0
        %2771 = vmatpush1.msra.mxu0 0.0
        %2772 = vmatprep.subr.mxu0 0.0
        %2773 = vmatpush1.msra.mxu0 0.0
        %2774 = vmatprep.subr.mxu0 0.0
        %2775 = vmatpush1.msra.mxu0 0.0
        %2776 = vmatprep.subr.mxu0 0.0
        %2777 = vmatpush1.msra.mxu0 0.0
        %2778 = vmatprep.subr.mxu0 0.0
        %2779 = vmatpush1.msra.mxu0 0.0
        %2780 = vmatprep.subr.mxu0 0.0
        %2781 = vmatpush1.msra.mxu0 0.0
        %2782 = vmatprep.subr.mxu0 0.0
        %2783 = vmatpush1.msra.mxu0 0.0
        %2784 = vmatprep.subr.mxu0 0.0
        %2785 = vmatpush1.msra.mxu0 0.0
        %2786 = vmatprep.subr.mxu0 0.0
        %2787 = vmatpush1.msra.mxu0 0.0
        %2788 = vmatprep.subr.mxu0 0.0
        %2789 = vmatpush1.msra.mxu0 0.0
        %2790 = vmatprep.subr.mxu0 0.0
        %2791 = vmatpush1.msra.mxu0 0.0
        %2792 = vmatprep.subr.mxu0 0.0
        %2793 = vmatpush1.msra.mxu0 0.0
        %2794 = vmatprep.subr.mxu0 0.0
        %2795 = vmatpush1.msra.mxu0 0.0
        %2796 = vmatprep.subr.mxu0 0.0
        %2797 = vmatpush1.msra.mxu0 0.0
        %2798 = vmatprep.subr.mxu0 0.0
        %2799 = vmatpush1.msra.mxu0 0.0
        %2800 = vmatprep.subr.mxu0 0.0
        %2801 = vmatpush1.msra.mxu0 0.0
        %2802 = vmatprep.subr.mxu0 0.0
        %2803 = vmatpush1.msra.mxu0 0.0
        %2804 = vmatprep.subr.mxu0 0.0
        %2805 = vmatpush1.msra.mxu0 0.0
        %2806 = vmatprep.subr.mxu0 0.0
        %2807 = vmatpush1.msra.mxu0 0.0
        %2808 = vmatprep.subr.mxu0 0.0
        %2809 = vmatpush1.msra.mxu0 0.0
        %2810 = vmatprep.subr.mxu0 0.0
        %2811 = vmatpush1.msra.mxu0 0.0
        %2812 = vmatprep.subr.mxu0 0.0
        %2813 = vmatpush1.msra.mxu0 0.0
        %2814 = vmatprep.subr.mxu0 0.0
        %2815 = vmatpush1.msra.mxu0 0.0
        %2816 = vmatprep.subr.mxu0 0.0
        %2817 = vmatpush1.msra.mxu0 0.0
        %2818 = vmatprep.subr.mxu0 0.0
        %2819 = vmatpush1.msra.mxu0 0.0
        %2820 = vmatprep.mubr.f32.mxu0 0.0
        %2821 = vmatmul.mubr.f32.gmra.mrb[0].mxu0 %v2754
        %v2822 = vpop.f32.mrb[0].mxu0
        %v2823 = vadd.f32 %v872, %v2822
        %v2824 = vpop.f32.mrb[0].mxu0
        %2825 = vdwg.mxu0
        %v2826 = vsub.f32 0.0, %v2823
        %v2827 = vmul.f32 %v2826, 1.442695
        %v2828 = vpow.pop %v2827
        %v2829 = vadd.f32 %v2828, 1.0
        %v2830 = vrcp.pop %v2829
        %v2831 = vmul.f32 1.0, %v2830
        %v2832 = vrot.slane %v881, 6
        %v2835 = vsel %vm892, %v2382, 0
        %2837 = vmatprep.subr.mxu0 0.0
        %2838 = vmatpush1.msra.mxu0 %v860
        %2839 = vmatprep.subr.mxu0 0.0
        %2840 = vmatpush1.msra.mxu0 %v861
        %2841 = vmatprep.subr.mxu0 0.0
        %2842 = vmatpush1.msra.mxu0 %v862
        %2843 = vmatprep.subr.mxu0 0.0
        %2844 = vmatpush1.msra.mxu0 %v863
        %2845 = vmatprep.subr.mxu0 0.0
        %2846 = vmatpush1.msra.mxu0 0.0
        %2847 = vmatprep.subr.mxu0 0.0
        %2848 = vmatpush1.msra.mxu0 0.0
        %2849 = vmatprep.subr.mxu0 0.0
        %2850 = vmatpush1.msra.mxu0 0.0
        %2851 = vmatprep.subr.mxu0 0.0
        %2852 = vmatpush1.msra.mxu0 0.0
        %2853 = vmatprep.subr.mxu0 0.0
        %2854 = vmatpush1.msra.mxu0 0.0
        %2855 = vmatprep.subr.mxu0 0.0
        %2856 = vmatpush1.msra.mxu0 0.0
        %2857 = vmatprep.subr.mxu0 0.0
        %2858 = vmatpush1.msra.mxu0 0.0
        %2859 = vmatprep.subr.mxu0 0.0
        %2860 = vmatpush1.msra.mxu0 0.0
        %2861 = vmatprep.subr.mxu0 0.0
        %2862 = vmatpush1.msra.mxu0 0.0
        %2863 = vmatprep.subr.mxu0 0.0
        %2864 = vmatpush1.msra.mxu0 0.0
        %2865 = vmatprep.subr.mxu0 0.0
        %2866 = vmatpush1.msra.mxu0 0.0
        %2867 = vmatprep.subr.mxu0 0.0
        %2868 = vmatpush1.msra.mxu0 0.0
        %2869 = vmatprep.subr.mxu0 0.0
        %2870 = vmatpush1.msra.mxu0 0.0
        %2871 = vmatprep.subr.mxu0 0.0
        %2872 = vmatpush1.msra.mxu0 0.0
        %2873 = vmatprep.subr.mxu0 0.0
        %2874 = vmatpush1.msra.mxu0 0.0
        %2875 = vmatprep.subr.mxu0 0.0
        %2876 = vmatpush1.msra.mxu0 0.0
        %2877 = vmatprep.subr.mxu0 0.0
        %2878 = vmatpush1.msra.mxu0 0.0
        %2879 = vmatprep.subr.mxu0 0.0
        %2880 = vmatpush1.msra.mxu0 0.0
        %2881 = vmatprep.subr.mxu0 0.0
        %2882 = vmatpush1.msra.mxu0 0.0
        %2883 = vmatprep.subr.mxu0 0.0
        %2884 = vmatpush1.msra.mxu0 0.0
        %2885 = vmatprep.subr.mxu0 0.0
        %2886 = vmatpush1.msra.mxu0 0.0
        %2887 = vmatprep.subr.mxu0 0.0
        %2888 = vmatpush1.msra.mxu0 0.0
        %2889 = vmatprep.subr.mxu0 0.0
        %2890 = vmatpush1.msra.mxu0 0.0
        %2891 = vmatprep.subr.mxu0 0.0
        %2892 = vmatpush1.msra.mxu0 0.0
        %2893 = vmatprep.subr.mxu0 0.0
        %2894 = vmatpush1.msra.mxu0 0.0
        %2895 = vmatprep.subr.mxu0 0.0
        %2896 = vmatpush1.msra.mxu0 0.0
        %2897 = vmatprep.subr.mxu0 0.0
        %2898 = vmatpush1.msra.mxu0 0.0
        %2899 = vmatprep.subr.mxu0 0.0
        %2900 = vmatpush1.msra.mxu0 0.0
        %2901 = vmatprep.mubr.f32.mxu0 0.0
        %2902 = vmatmul.mubr.f32.gmra.mrb[0].mxu0 %v2835
        %v2903 = vpop.f32.mrb[0].mxu0
        %v2904 = vadd.f32 %v2832, %v2903
        %v2905 = vpop.f32.mrb[0].mxu0
        %2906 = vdwg.mxu0
        %v2907 = vsub.f32 0.0, %v2904
        %v2908 = vmul.f32 %v2907, 1.442695
        %v2909 = vpow.pop %v2908
        %v2910 = vadd.f32 %v2909, 1.0
        %v2911 = vrcp.pop %v2910
        %v2912 = vmul.f32 1.0, %v2911
        %v2914 = vsel %vm1786, %v864, 0
        %v2917 = vsel %vm1786, %v865, 0
        %v2920 = vsel %vm1786, %v866, 0
        %v2923 = vsel %vm1786, %v867, 0
        %v2926 = vsel %vm1786, %v868, 0
        %v2929 = vsel %vm1786, %v869, 0
        %v2932 = vsel %vm1786, %v870, 0
        %v2935 = vsel %vm1786, %v871, 0
        %v2938 = vsel %vm1811, %v2831, 0
        %2940 = vmatprep.subr.mxu0 0.0
        %2941 = vmatpush1.msra.mxu0 %v2938
        %2942 = vmatprep.subr.mxu0 0.0
        %2943 = vmatpush1.msra.mxu0 0.0
        %2944 = vmatprep.subr.mxu0 0.0
        %2945 = vmatpush1.msra.mxu0 0.0
        %2946 = vmatprep.subr.mxu0 0.0
        %2947 = vmatpush1.msra.mxu0 0.0
        %2948 = vmatprep.subr.mxu0 0.0
        %2949 = vmatpush1.msra.mxu0 0.0
        %2950 = vmatprep.subr.mxu0 0.0
        %2951 = vmatpush1.msra.mxu0 0.0
        %2952 = vmatprep.subr.mxu0 0.0
        %2953 = vmatpush1.msra.mxu0 0.0
        %2954 = vmatprep.subr.mxu0 0.0
        %2955 = vmatpush1.msra.mxu0 0.0
        %2956 = vmatprep.subr.mxu0 0.0
        %2957 = vmatpush1.msra.mxu0 0.0
        %2958 = vmatprep.subr.mxu0 0.0
        %2959 = vmatpush1.msra.mxu0 0.0
        %2960 = vmatprep.subr.mxu0 0.0
        %2961 = vmatpush1.msra.mxu0 0.0
        %2962 = vmatprep.subr.mxu0 0.0
        %2963 = vmatpush1.msra.mxu0 0.0
        %2964 = vmatprep.subr.mxu0 0.0
        %2965 = vmatpush1.msra.mxu0 0.0
        %2966 = vmatprep.subr.mxu0 0.0
        %2967 = vmatpush1.msra.mxu0 0.0
        %2968 = vmatprep.subr.mxu0 0.0
        %2969 = vmatpush1.msra.mxu0 0.0
        %2970 = vmatprep.subr.mxu0 0.0
        %2971 = vmatpush1.msra.mxu0 0.0
        %2972 = vmatprep.subr.mxu0 0.0
        %2973 = vmatpush1.msra.mxu0 0.0
        %2974 = vmatprep.subr.mxu0 0.0
        %2975 = vmatpush1.msra.mxu0 0.0
        %2976 = vmatprep.subr.mxu0 0.0
        %2977 = vmatpush1.msra.mxu0 0.0
        %2978 = vmatprep.subr.mxu0 0.0
        %2979 = vmatpush1.msra.mxu0 0.0
        %2980 = vmatprep.subr.mxu0 0.0
        %2981 = vmatpush1.msra.mxu0 0.0
        %2982 = vmatprep.subr.mxu0 0.0
        %2983 = vmatpush1.msra.mxu0 0.0
        %2984 = vmatprep.subr.mxu0 0.0
        %2985 = vmatpush1.msra.mxu0 0.0
        %2986 = vmatprep.subr.mxu0 0.0
        %2987 = vmatpush1.msra.mxu0 0.0
        %2988 = vmatprep.subr.mxu0 0.0
        %2989 = vmatpush1.msra.mxu0 0.0
        %2990 = vmatprep.subr.mxu0 0.0
        %2991 = vmatpush1.msra.mxu0 0.0
        %2992 = vmatprep.subr.mxu0 0.0
        %2993 = vmatpush1.msra.mxu0 0.0
        %2994 = vmatprep.subr.mxu0 0.0
        %2995 = vmatpush1.msra.mxu0 0.0
        %2996 = vmatprep.subr.mxu0 0.0
        %2997 = vmatpush1.msra.mxu0 0.0
        %2998 = vmatprep.subr.mxu0 0.0
        %2999 = vmatpush1.msra.mxu0 0.0
        %3000 = vmatprep.subr.mxu0 0.0
        %3001 = vmatpush1.msra.mxu0 0.0
        %3002 = vmatprep.subr.mxu0 0.0
        %3003 = vmatpush1.msra.mxu0 0.0
        %3004 = vmatprep.mubr.f32.mxu0 0.0
        %3005 = vmatmul.mubr.f32.gmra.mrb[0].mxu0 %v2914
        %v3006 = vpop.f32.mrb[0].mxu0
        %v3007 = vadd.f32 %v873, %v3006
        %v3008 = vpop.f32.mrb[0].mxu0
        %3009 = vmatprep.mubr.f32.mxu0 0.0
        %3010 = vmatmul.mubr.f32.gmra.mrb[0].mxu0 %v2917
        %v3011 = vpop.f32.mrb[0].mxu0
        %v3012 = vadd.f32 %v874, %v3011
        %v3013 = vpop.f32.mrb[0].mxu0
        %3014 = vmatprep.mubr.f32.mxu0 0.0
        %3015 = vmatmul.mubr.f32.gmra.mrb[0].mxu0 %v2920
        %v3016 = vpop.f32.mrb[0].mxu0
        %v3017 = vadd.f32 %v875, %v3016
        %v3018 = vpop.f32.mrb[0].mxu0
        %3019 = vmatprep.mubr.f32.mxu0 0.0
        %3020 = vmatmul.mubr.f32.gmra.mrb[0].mxu0 %v2923
        %v3021 = vpop.f32.mrb[0].mxu0
        %v3022 = vadd.f32 %v876, %v3021
        %v3023 = vpop.f32.mrb[0].mxu0
        %3024 = vmatprep.mubr.f32.mxu0 0.0
        %3025 = vmatmul.mubr.f32.gmra.mrb[0].mxu0 %v2926
        %v3026 = vpop.f32.mrb[0].mxu0
        %v3027 = vadd.f32 %v877, %v3026
        %v3028 = vpop.f32.mrb[0].mxu0
        %3029 = vmatprep.mubr.f32.mxu0 0.0
        %3030 = vmatmul.mubr.f32.gmra.mrb[0].mxu0 %v2929
        %v3031 = vpop.f32.mrb[0].mxu0
        %v3032 = vadd.f32 %v878, %v3031
        %v3033 = vpop.f32.mrb[0].mxu0
        %3034 = vmatprep.mubr.f32.mxu0 0.0
        %3035 = vmatmul.mubr.f32.gmra.mrb[0].mxu0 %v2932
        %v3036 = vpop.f32.mrb[0].mxu0
        %v3037 = vadd.f32 %v879, %v3036
        %v3038 = vpop.f32.mrb[0].mxu0
        %3039 = vmatprep.mubr.f32.mxu0 0.0
        %3040 = vmatmul.mubr.f32.gmra.mrb[0].mxu0 %v2935
        %v3041 = vpop.f32.mrb[0].mxu0
        %v3042 = vadd.f32 %v880, %v3041
        %v3043 = vpop.f32.mrb[0].mxu0
        %3044 = vdwg.mxu0
        %v3045 = vsub.f32 0.0, %v3007
        %v3046 = vsub.f32 0.0, %v3012
        %v3047 = vsub.f32 0.0, %v3017
        %v3048 = vsub.f32 0.0, %v3022
        %v3049 = vsub.f32 0.0, %v3027
        %v3050 = vsub.f32 0.0, %v3032
        %v3051 = vsub.f32 0.0, %v3037
        %v3052 = vsub.f32 0.0, %v3042
        %v3053 = vmul.f32 %v3045, 1.442695
        %v3054 = vpow.pop %v3053
        %v3055 = vmul.f32 %v3046, 1.442695
        %v3056 = vpow.pop %v3055
        %v3057 = vmul.f32 %v3047, 1.442695
        %v3058 = vpow.pop %v3057
        %v3059 = vmul.f32 %v3048, 1.442695
        %v3060 = vpow.pop %v3059
        %v3061 = vmul.f32 %v3049, 1.442695
        %v3062 = vpow.pop %v3061
        %v3063 = vmul.f32 %v3050, 1.442695
        %v3064 = vpow.pop %v3063
        %v3065 = vmul.f32 %v3051, 1.442695
        %v3066 = vpow.pop %v3065
        %v3067 = vmul.f32 %v3052, 1.442695
        %v3068 = vpow.pop %v3067
        %v3069 = vadd.f32 %v3054, 1.0
        %v3070 = vadd.f32 %v3056, 1.0
        %v3071 = vadd.f32 %v3058, 1.0
        %v3072 = vadd.f32 %v3060, 1.0
        %v3073 = vadd.f32 %v3062, 1.0
        %v3074 = vadd.f32 %v3064, 1.0
        %v3075 = vadd.f32 %v3066, 1.0
        %v3076 = vadd.f32 %v3068, 1.0
        %v3077 = vrcp.pop %v3069
        %v3078 = vmul.f32 1.0, %v3077
        %v3079 = vrcp.pop %v3070
        %v3080 = vmul.f32 1.0, %v3079
        %v3081 = vrcp.pop %v3071
        %v3082 = vmul.f32 1.0, %v3081
        %v3083 = vrcp.pop %v3072
        %v3084 = vmul.f32 1.0, %v3083
        %v3085 = vrcp.pop %v3073
        %v3086 = vmul.f32 1.0, %v3085
        %v3087 = vrcp.pop %v3074
        %v3088 = vmul.f32 1.0, %v3087
        %v3089 = vrcp.pop %v3075
        %v3090 = vmul.f32 1.0, %v3089
        %v3091 = vrcp.pop %v3076
        %v3092 = vmul.f32 1.0, %v3091
        %v3093 = vlaneseq
        %v3094 = vshrl.u32 %v3093, 7
        %v3095 = vsub.s32 0, %v3094
        %v3096 = vrot.slane %v2912, %v3095
        %3098 = vset.pattern.permute.xlu0 0
        %3099 = vperm.xlu0 %3098, %v3078
        %v3100 = vpop.permute.xlu0 %3099
        %3103 = vset.pattern.permute.xlu0 0
        %3104 = vperm.xlu0 %3103, %v3080
        %v3105 = vpop.permute.xlu0 %3104
        %v3107 = vadd.f32 %v3096, %v3100
        %v3108 = vadd.f32 %v3096, %v3105
        %3110 = vset.pattern.permute.xlu0 0
        %3111 = vperm.xlu0 %3110, %v3082
        %v3112 = vpop.permute.xlu0 %3111
        %3115 = vset.pattern.permute.xlu0 0
        %3116 = vperm.xlu0 %3115, %v3084
        %v3117 = vpop.permute.xlu0 %3116
        %v3119 = vadd.f32 %v3096, %v3112
        %v3120 = vadd.f32 %v3096, %v3117
        %3122 = vset.pattern.permute.xlu0 0
        %3123 = vperm.xlu0 %3122, %v3086
        %v3124 = vpop.permute.xlu0 %3123
        %3127 = vset.pattern.permute.xlu0 0
        %3128 = vperm.xlu0 %3127, %v3088
        %v3129 = vpop.permute.xlu0 %3128
        %v3131 = vadd.f32 %v3096, %v3124
        %v3132 = vadd.f32 %v3096, %v3129
        %3134 = vset.pattern.permute.xlu0 0
        %3135 = vperm.xlu0 %3134, %v3090
        %v3136 = vpop.permute.xlu0 %3135
        %3139 = vset.pattern.permute.xlu0 0
        %3140 = vperm.xlu0 %3139, %v3092
        %v3141 = vpop.permute.xlu0 %3140
        %v3143 = vadd.f32 %v3096, %v3136
        %v3144 = vadd.f32 %v3096, %v3141
        %3147 = vrot.lane.b32.xlu0 %v3119, 96
        %v3148 = vpop.permute.xlu0 %3147
        %3149 = vrot.lane.b32.xlu0 %v3120, 96
        %v3150 = vpop.permute.xlu0 %3149
        %3155 = vrot.lane.b32.xlu0 %v3131, 64
        %v3156 = vpop.permute.xlu0 %3155
        %3157 = vrot.lane.b32.xlu0 %v3132, 64
        %v3158 = vpop.permute.xlu0 %3157
        %3163 = vrot.lane.b32.xlu0 %v3143, 32
        %v3164 = vpop.permute.xlu0 %3163
        %3165 = vrot.lane.b32.xlu0 %v3144, 32
        %v3166 = vpop.permute.xlu0 %3165
        %v3169 = vsel %vm892, %v3107, -inf
        %v3170 = vsel %vm892, %v3148, -inf
        %v3171 = vsel %vm892, %v3156, -inf
        %v3172 = vmax.f32 %v3169, %v3171
        %v3173 = vsel %vm892, %v3164, -inf
        %v3174 = vmax.f32 %v3170, %v3173
        %v3175 = vmax.f32 %v3172, %v3174
        %v3176 = vsel %vm892, %v3108, -inf
        %v3177 = vsel %vm892, %v3150, -inf
        %v3178 = vsel %vm892, %v3158, -inf
        %v3179 = vmax.f32 %v3176, %v3178
        %v3180 = vsel %vm892, %v3166, -inf
        %v3181 = vmax.f32 %v3177, %v3180
        %v3182 = vmax.f32 %v3179, %v3181
        %v3183 = vsub.f32 %v3107, %v3175
        %v3184 = vsub.f32 %v3108, %v3182
        %v3185 = vsub.f32 %v3148, %v3175
        %v3186 = vsub.f32 %v3150, %v3182
        %v3187 = vsub.f32 %v3156, %v3175
        %v3188 = vsub.f32 %v3158, %v3182
        %v3189 = vsub.f32 %v3164, %v3175
        %v3190 = vsub.f32 %v3166, %v3182
        %v3191 = vmul.f32 %v3183, 1.442695
        %v3192 = vpow.pop %v3191
        %v3193 = vmul.f32 %v3184, 1.442695
        %v3194 = vpow.pop %v3193
        %v3195 = vmul.f32 %v3185, 1.442695
        %v3196 = vpow.pop %v3195
        %v3197 = vmul.f32 %v3186, 1.442695
        %v3198 = vpow.pop %v3197
        %v3199 = vmul.f32 %v3187, 1.442695
        %v3200 = vpow.pop %v3199
        %v3201 = vmul.f32 %v3188, 1.442695
        %v3202 = vpow.pop %v3201
        %v3203 = vmul.f32 %v3189, 1.442695
        %v3204 = vpow.pop %v3203
        %v3205 = vmul.f32 %v3190, 1.442695
        %v3206 = vpow.pop %v3205
        %v3207 = vsel %vm892, %v3192, 0.0
        %v3208 = vsel %vm892, %v3196, 0.0
        %v3209 = vadd.f32 %v3207, %v3208
        %v3210 = vsel %vm892, %v3200, 0.0
        %v3211 = vadd.f32 %v3209, %v3210
        %v3212 = vsel %vm892, %v3204, 0.0
        %v3213 = vadd.f32 %v3211, %v3212
        %v3214 = vsel %vm892, %v3194, 0.0
        %v3215 = vsel %vm892, %v3198, 0.0
        %v3216 = vadd.f32 %v3214, %v3215
        %v3217 = vsel %vm892, %v3202, 0.0
        %v3218 = vadd.f32 %v3216, %v3217
        %v3219 = vsel %vm892, %v3206, 0.0
        %v3220 = vadd.f32 %v3218, %v3219
        %v3221 = vrcp.pop %v3213
        %v3222 = vrcp.pop %v3220
        %v3223 = vmul.f32 %v3192, %v3221
        %v3224 = vmul.f32 %v3194, %v3222
        %v3225 = vmul.f32 %v3196, %v3221
        %v3226 = vmul.f32 %v3198, %v3222
        %v3227 = vmul.f32 %v3200, %v3221
        %v3228 = vmul.f32 %v3202, %v3222
        %v3229 = vmul.f32 %v3204, %v3221
        %v3230 = vmul.f32 %v3206, %v3222
        %v3231 = vadd.f32 %v3223, 1.0
        %v3232 = vadd.f32 %v3224, 1.0
        %v3233 = vadd.f32 %v3225, 1.0
        %v3234 = vadd.f32 %v3226, 1.0
        %v3235 = vadd.f32 %v3227, 1.0
        %v3236 = vadd.f32 %v3228, 1.0
        %v3237 = vadd.f32 %v3229, 1.0
        %v3238 = vadd.f32 %v3230, 1.0
        %v3239 = vmul.f32 %v882, %v3231
        %v3240 = vmul.f32 %v883, %v3232
        %v3241 = vmul.f32 %v884, %v3233
        %v3242 = vmul.f32 %v885, %v3234
        %v3243 = vmul.f32 %v886, %v3235
        %v3244 = vmul.f32 %v887, %v3236
        %v3245 = vmul.f32 %v888, %v3237
        %v3246 = vmul.f32 %v889, %v3238
        %v3247 = vsel %vm892, %v3239, 0.0
        %v3248 = vsel %vm892, %v3241, 0.0
        %v3249 = vadd.f32 %v3247, %v3248
        %v3250 = vsel %vm892, %v3243, 0.0
        %v3251 = vadd.f32 %v3249, %v3250
        %v3252 = vsel %vm892, %v3245, 0.0
        %v3253 = vadd.f32 %v3251, %v3252
        %v3254 = vsel %vm892, %v3240, 0.0
        %v3255 = vsel %vm892, %v3242, 0.0
        %v3256 = vadd.f32 %v3254, %v3255
        %v3257 = vsel %vm892, %v3244, 0.0
        %v3258 = vadd.f32 %v3256, %v3257
        %v3259 = vsel %vm892, %v3246, 0.0
        %v3260 = vadd.f32 %v3258, %v3259
        %3261 = vst.msk [vmem:[%s784] sm:$0xff] %vm892, %v3253
        %3262 = vst.msk [vmem:[%s784 + $0x8] sm:$0xff] %vm892, %v3260
        %s3263 = sand.u32 %s599, 1
        %s3264 = scalar_lea.sflag [#allocation3], %s3263
        %s3265 = sand.u32 %s599, 1
        %s3266 = smul.addr %s3265, 16
        %s3267 = scalar_lea.vmem [#allocation2], %s3266
        // Predicated region
        $region125: #{tpu_custom_call.1} parent=123 // pred_check
          %p3268 = pneg %p609
        $region126: #{tpu_custom_call.1} parent=123 // pred_check_branch
          %3270 = sbr.rel (%p3268) target = $region128
        $region127: #{tpu_custom_call.1} parent=123 // pred_region
          %s3272 = ssub.s32 256, 256
          %3273 = vsyncadd %s3264, %s3272
          %s3274 = smul.addr %s40, 2
          %s3275 = smul.addr %s3274, 128
          %s3276 = scalar_lea.hbm %s26, %s3275
          %s3277 = sshll.u32 %s3267, 4
          %s3278 = int_to_ptr.vmem [resolvable:$true] %s3277
          %3283 = dma.vmem_to_hbm [thread:$0]  %s3278, 256, %s3276, %s3264, 128, 128, 8
        $region128: #{tpu_custom_call.1} parent=123 // pred_fallthru
          _
      $region124: #{tpu_custom_call.1} parent=5 // pred_fallthru
        _
      %p3284 = scmp.le.s32.totalorder 2, %s35
      // Predicated region
      $region129: #{tpu_custom_call.1} parent=5 // pred_check
        %p3285 = pneg %p3284
      $region130: #{tpu_custom_call.1} parent=5 // pred_check_branch
        %3287 = sbr.rel (%p3285) target = $region132
      $region131: #{tpu_custom_call.1} parent=5 // pred_region
        %s3288 = ssub.s32 %s35, 2
        // Predicated region
        $region133: #{tpu_custom_call.1} parent=131 // pred_check
          %p3289 = pneg %p615
        $region134: #{tpu_custom_call.1} parent=131 // pred_check_branch
          %3291 = sbr.rel (%p3289) target = $region136
        $region135: #{tpu_custom_call.1} parent=131 // pred_region
          %s3292 = sand.u32 %s600, 1
          %s3293 = scalar_lea.sflag [#allocation3], %s3292
          %s3294 = sand.u32 %s600, 1
          %s3295 = smul.addr %s3294, 16
          %s3296 = scalar_lea.vmem [#allocation2], %s3295
          %3297 = dma.done %s3293, 256
        $region136: #{tpu_custom_call.1} parent=131 // pred_fallthru
          _
      $region132: #{tpu_custom_call.1} parent=5 // pred_fallthru
        _
    $region6: #{tpu_custom_call.1} parent=1 // loop_footer
      %s39 = sadd.s32 1, %s35
    $region7: #{tpu_custom_call.1} parent=1 // loop_footer_branch
      %34 = sbr.rel target = $region3
    $region8: #{tpu_custom_call.1} parent=1 // loop_exit
      _
    %3298 = vsyncpa [#allocation3], 1
    %s3299 = scalar_lea.sflag [#allocation3], 1
    %3300 = vsyncpa %s3299, 1

</llo_original>
